<compile_context>
chip_gen: v7x
topology: tpu7x:2x2x1
jax: 0.10.0
libtpu: 0.0.40
codegen_flags: <defaults>
</compile_context>

<pallas_src>
import functools

import jax
import jax.numpy as jnp
from jax.experimental import pallas as pl
from jax.experimental.pallas import tpu as pltpu

EPS = 1e-5
LANE = 128


def _round_up(x, m):
    return (x + m - 1) // m * m


# -------- Phase 1: in-kernel im2col conv (K*K accumulating dots) + partial BN stats ------
def _make_conv_stats_kernel(Hout, Wout, K, Cin_p, Cout_k):
    HW = Hout * Wout

    def kernel(x_ref, w_ref, y_ref, sum_ref, sq_ref):
        # x_ref: (Hp, Wp, Cin_p) padded image of one batch element (VMEM)
        # w_ref: (K*K, Cin_p, Cout_k)
        acc = jnp.zeros((HW, Cout_k), jnp.float32)
        for kh in range(K):          # static unrolled K*K shifted windows
            for kw in range(K):
                win = x_ref[kh:kh + Hout, kw:kw + Wout, :].reshape(HW, Cin_p)
                acc = acc + jnp.dot(win, w_ref[kh * K + kw],
                                    preferred_element_type=jnp.float32)
        y_ref[...] = acc
        # Per-grid-step partial stats (reduced in JAX afterwards) -> grid stays "parallel".
        s = jnp.sum(acc, axis=0, keepdims=True)           # (1, Cout_k)
        sq = jnp.sum(acc * acc, axis=0, keepdims=True)    # (1, Cout_k)
        sum_ref[...] = jnp.broadcast_to(s, (8, Cout_k))
        sq_ref[...] = jnp.broadcast_to(sq, (8, Cout_k))

    return kernel


# -------- Phase 2 (only for lane-dense Cout >= 128): folded BN FMA + ReLU, in-place ------
def bn_relu_kernel(y_ref, scale_ref, shift_ref, o_ref):
    o_ref[...] = jnp.maximum(
        y_ref[...] * scale_ref[...] + shift_ref[...], 0.0).astype(o_ref.dtype)


@functools.partial(jax.jit, static_argnames=("kernel", "pad"))
def conv_block_forward(x, w, b, gamma, beta, *, kernel, pad):
    """x: (N, Cin, H, W) NCHW, w: (Cout, Cin, K, K). Returns (N, Cout, Hout, Wout)."""
    del b  # Conv bias is exactly cancelled by train-mode BatchNorm mean subtraction.

    N, Cin, H, W = x.shape
    Cout = w.shape[0]
    K = kernel
    Hout = H + 2 * pad - K + 1
    Wout = W + 2 * pad - K + 1
    HW = Hout * Wout
    M = N * HW

    Cin_p = _round_up(Cin, 8)                                  # sublane-align only (cheap)
    Cout_p = Cout if Cout < LANE else _round_up(Cout, LANE)    # lane-pad only when large

    # One boundary transpose NCHW->NHWC; spatial zero-pad (conv padding) + channel pad.
    x_nhwc = jnp.transpose(x, (0, 2, 3, 1)).astype(jnp.float32)
    x_pad = jnp.pad(x_nhwc, ((0, 0), (pad, pad), (pad, pad), (0, Cin_p - Cin)))
    Hp, Wp = H + 2 * pad, W + 2 * pad

    # Weights: (Cout, Cin, K, K) -> (K*K, Cin_p, Cout_p), patch ordering (kh, kw, cin).
    w_k = jnp.transpose(w, (2, 3, 1, 0)).astype(jnp.float32)          # (K, K, Cin, Cout)
    w_k = jnp.pad(w_k, ((0, 0), (0, 0), (0, Cin_p - Cin), (0, Cout_p - Cout)))
    w_k = w_k.reshape(K * K, Cin_p, Cout_p)

    conv_kernel = _make_conv_stats_kernel(Hout, Wout, K, Cin_p, Cout_p)

    # ---- Phase 1: per-image conv + partial stats, grid parallel over batch.
    y, sum_part, sq_part = pl.pallas_call(
        conv_kernel,
        out_shape=(
            jax.ShapeDtypeStruct((M, Cout_p), jnp.float32),
            jax.ShapeDtypeStruct((N, 8, Cout_p), jnp.float32),
            jax.ShapeDtypeStruct((N, 8, Cout_p), jnp.float32),
        ),
        grid_spec=pltpu.PrefetchScalarGridSpec(
            num_scalar_prefetch=0,
            grid=(N,),
            in_specs=[
                pl.BlockSpec((None, Hp, Wp, Cin_p), lambda n: (n, 0, 0, 0)),
                pl.BlockSpec((K * K, Cin_p, Cout_p), lambda n: (0, 0, 0)),
            ],
            out_specs=[
                pl.BlockSpec((HW, Cout_p), lambda n: (n, 0)),
                pl.BlockSpec((None, 8, Cout_p), lambda n: (n, 0, 0)),
                pl.BlockSpec((None, 8, Cout_p), lambda n: (n, 0, 0)),
            ],
        ),
        compiler_params=pltpu.CompilerParams(
            dimension_semantics=("parallel",)),
    )(x_pad, w_k)

    # ---- Finalize BN stats (tiny (Cout_p,) math) and fold into scale/shift.
    csum = jnp.sum(sum_part[:, 0, :], axis=0)                  # (Cout_p,)
    csq = jnp.sum(sq_part[:, 0, :], axis=0)                    # (Cout_p,)
    inv_m = 1.0 / M
    mean = csum * inv_m
    var = jnp.maximum(csq * inv_m - mean * mean, 0.0)
    gamma_p = jnp.pad(gamma.astype(jnp.float32), (0, Cout_p - Cout))
    beta_p = jnp.pad(beta.astype(jnp.float32), (0, Cout_p - Cout))
    scale = gamma_p * jax.lax.rsqrt(var + EPS)                 # (Cout_p,)
    shift = beta_p - mean * scale

    if Cout_p >= LANE:
        # Lane-dense channels: Pallas BN+ReLU pass, y aliased in place (no extra buffer).
        TM = min(1024, M)
        out_mat = pl.pallas_call(
            bn_relu_kernel,
            out_shape=jax.ShapeDtypeStruct((M, Cout_p), jnp.float32),
            grid_spec=pltpu.PrefetchScalarGridSpec(
                num_scalar_prefetch=0,
                grid=(pl.cdiv(M, TM),),
                in_specs=[
                    pl.BlockSpec((TM, Cout_p), lambda i: (i, 0)),
                    pl.BlockSpec((1, Cout_p), lambda i: (0, 0)),
                    pl.BlockSpec((1, Cout_p), lambda i: (0, 0)),
                ],
                out_specs=pl.BlockSpec((TM, Cout_p), lambda i: (i, 0)),
            ),
            compiler_params=pltpu.CompilerParams(
                dimension_semantics=("parallel",)),
            input_output_aliases={0: 0},
        )(y, scale.reshape(1, Cout_p), shift.reshape(1, Cout_p))
        out_nhwc = out_mat[:, :Cout].reshape(N, Hout, Wout, Cout)
    else:
        # Small Cout: BN+ReLU fuses into the existing XLA epilogue (single elementwise pass).
        out_nhwc = jnp.maximum(
            y.reshape(N, Hout, Wout, Cout) * scale + shift, 0.0)

    return jnp.transpose(out_nhwc, (0, 3, 1, 2))               # back to NCHW


def _reference(x, w, b, gamma, beta, pad):
    # Pure-JAX reference: conv (+bias) + train-mode BN + ReLU (NCHW).
    y = jax.lax.conv_general_dilated(
        x, w, window_strides=(1, 1), padding=((pad, pad), (pad, pad)),
        dimension_numbers=("NCHW", "OIHW", "NCHW"))
    y = y + b.reshape(1, -1, 1, 1)
    mean = jnp.mean(y, axis=(0, 2, 3), keepdims=True)
    var = jnp.mean((y - mean) ** 2, axis=(0, 2, 3), keepdims=True)
    y = (y - mean) * jax.lax.rsqrt(var + EPS)
    y = y * gamma.reshape(1, -1, 1, 1) + beta.reshape(1, -1, 1, 1)
    return jnp.maximum(y, 0.0)


if __name__ == "__main__":
    # conv_block(inp=4, out=8, kernal=3, pad=1); input x: (2, 4, 16, 16) NCHW.
    N, Cin, H, W = 2, 4, 16, 16
    Cout, K, pad = 8, 3, 1

    key = jax.random.PRNGKey(0)
    k_x, k_w, k_b = jax.random.split(key, 3)
    x = jax.random.normal(k_x, (N, Cin, H, W), dtype=jnp.float32)
    fan_in = Cin * K * K
    w = jax.random.uniform(k_w, (Cout, Cin, K, K), jnp.float32,
                           minval=-1.0, maxval=1.0) / jnp.sqrt(fan_in)
    b = jax.random.uniform(k_b, (Cout,), jnp.float32,
                           minval=-1.0, maxval=1.0) / jnp.sqrt(fan_in)
    gamma = jnp.ones((Cout,), jnp.float32)   # BatchNorm2d default init
    beta = jnp.zeros((Cout,), jnp.float32)

    out = conv_block_forward(x, w, b, gamma, beta, kernel=K, pad=pad)
    out = jax.block_until_ready(out)

    ref = _reference(x, w, b, gamma, beta, pad)
    assert out.shape == (N, Cout, H, W)
    err = float(jnp.max(jnp.abs(out - ref)))
    assert jnp.allclose(out, ref, atol=1e-4, rtol=1e-4), err

    print("KERNEL_OK")
</pallas_src>

<mosaic_0001>
module attributes {stable_mosaic.version = 11 : i64} {
  func.func @kernel(%arg0: i32, %arg1: memref<1x18x18x8xf32, #tpu.memory_space<vmem>>, %arg2: memref<9x8x8xf32, #tpu.memory_space<vmem>>, %arg3: memref<256x8xf32, #tpu.memory_space<vmem>>, %arg4: memref<1x8x8xf32, #tpu.memory_space<vmem>>, %arg5: memref<1x8x8xf32, #tpu.memory_space<vmem>>) attributes {dimension_semantics = [#tpu.dimension_semantics<parallel>], iteration_bounds = array<i64: 2>, scalar_prefetch = 0 : i64, scratch_operands = 0 : i64, tpu.core_type = #tpu.core_type<tc>, window_params = [{transform_indices = @transform_0, window_bounds = array<i64: 1, 18, 18, 8>}, {pipeline_mode = #tpu.pipeline_mode<synchronous>, transform_indices = @transform_1, window_bounds = array<i64: 9, 8, 8>}, {transform_indices = @transform_2, window_bounds = array<i64: 256, 8>}, {transform_indices = @transform_3, window_bounds = array<i64: 1, 8, 8>}, {transform_indices = @transform_4, window_bounds = array<i64: 1, 8, 8>}]} {
    %cst = arith.constant 0.000000e+00 : f32
    %0 = vector.broadcast %cst : f32 to vector<256x8xf32>
    %c0 = arith.constant 0 : index
    %c0_0 = arith.constant 0 : index
    %c0_1 = arith.constant 0 : index
    %c0_2 = arith.constant 0 : index
    %1 = vector.load %arg1[%c0, %c0_0, %c0_1, %c0_2] : memref<1x18x18x8xf32, #tpu.memory_space<vmem>>, vector<1x16x16x8xf32>
    %2 = vector.shape_cast %1 : vector<1x16x16x8xf32> to vector<16x16x8xf32>
    %3 = vector.shape_cast %2 : vector<16x16x8xf32> to vector<256x8xf32>
    %c0_3 = arith.constant 0 : index
    %c0_4 = arith.constant 0 : index
    %c0_5 = arith.constant 0 : index
    %4 = vector.load %arg2[%c0_3, %c0_4, %c0_5] : memref<9x8x8xf32, #tpu.memory_space<vmem>>, vector<1x8x8xf32>
    %5 = vector.shape_cast %4 : vector<1x8x8xf32> to vector<8x8xf32>
    %cst_6 = arith.constant dense<0.000000e+00> : vector<256x8xf32>
    %6 = tpu.matmul %3, %5, %cst_6 {dimension_numbers = #tpu.dot_dimension_numbers<[1], [0], [0], [1], [0, 0, 1, 1], [], []>} : vector<256x8xf32>, vector<8x8xf32>, vector<256x8xf32> -> vector<256x8xf32>
    %7 = arith.addf %0, %6 : vector<256x8xf32>
    %c0_7 = arith.constant 0 : index
    %c0_8 = arith.constant 0 : index
    %c1 = arith.constant 1 : index
    %c0_9 = arith.constant 0 : index
    %8 = vector.load %arg1[%c0_7, %c0_8, %c1, %c0_9] : memref<1x18x18x8xf32, #tpu.memory_space<vmem>>, vector<1x16x16x8xf32>
    %9 = vector.shape_cast %8 : vector<1x16x16x8xf32> to vector<16x16x8xf32>
    %10 = vector.shape_cast %9 : vector<16x16x8xf32> to vector<256x8xf32>
    %c1_10 = arith.constant 1 : index
    %c0_11 = arith.constant 0 : index
    %c0_12 = arith.constant 0 : index
    %11 = vector.load %arg2[%c1_10, %c0_11, %c0_12] : memref<9x8x8xf32, #tpu.memory_space<vmem>>, vector<1x8x8xf32>
    %12 = vector.shape_cast %11 : vector<1x8x8xf32> to vector<8x8xf32>
    %cst_13 = arith.constant dense<0.000000e+00> : vector<256x8xf32>
    %13 = tpu.matmul %10, %12, %cst_13 {dimension_numbers = #tpu.dot_dimension_numbers<[1], [0], [0], [1], [0, 0, 1, 1], [], []>} : vector<256x8xf32>, vector<8x8xf32>, vector<256x8xf32> -> vector<256x8xf32>
    %14 = arith.addf %7, %13 : vector<256x8xf32>
    %c0_14 = arith.constant 0 : index
    %c0_15 = arith.constant 0 : index
    %c2 = arith.constant 2 : index
    %c0_16 = arith.constant 0 : index
    %15 = vector.load %arg1[%c0_14, %c0_15, %c2, %c0_16] : memref<1x18x18x8xf32, #tpu.memory_space<vmem>>, vector<1x16x16x8xf32>
    %16 = vector.shape_cast %15 : vector<1x16x16x8xf32> to vector<16x16x8xf32>
    %17 = vector.shape_cast %16 : vector<16x16x8xf32> to vector<256x8xf32>
    %c2_17 = arith.constant 2 : index
    %c0_18 = arith.constant 0 : index
    %c0_19 = arith.constant 0 : index
    %18 = vector.load %arg2[%c2_17, %c0_18, %c0_19] : memref<9x8x8xf32, #tpu.memory_space<vmem>>, vector<1x8x8xf32>
    %19 = vector.shape_cast %18 : vector<1x8x8xf32> to vector<8x8xf32>
    %cst_20 = arith.constant dense<0.000000e+00> : vector<256x8xf32>
    %20 = tpu.matmul %17, %19, %cst_20 {dimension_numbers = #tpu.dot_dimension_numbers<[1], [0], [0], [1], [0, 0, 1, 1], [], []>} : vector<256x8xf32>, vector<8x8xf32>, vector<256x8xf32> -> vector<256x8xf32>
    %21 = arith.addf %14, %20 : vector<256x8xf32>
    %c0_21 = arith.constant 0 : index
    %c1_22 = arith.constant 1 : index
    %c0_23 = arith.constant 0 : index
    %c0_24 = arith.constant 0 : index
    %22 = vector.load %arg1[%c0_21, %c1_22, %c0_23, %c0_24] : memref<1x18x18x8xf32, #tpu.memory_space<vmem>>, vector<1x16x16x8xf32>
    %23 = vector.shape_cast %22 : vector<1x16x16x8xf32> to vector<16x16x8xf32>
    %24 = vector.shape_cast %23 : vector<16x16x8xf32> to vector<256x8xf32>
    %c3 = arith.constant 3 : index
    %c0_25 = arith.constant 0 : index
    %c0_26 = arith.constant 0 : index
    %25 = vector.load %arg2[%c3, %c0_25, %c0_26] : memref<9x8x8xf32, #tpu.memory_space<vmem>>, vector<1x8x8xf32>
    %26 = vector.shape_cast %25 : vector<1x8x8xf32> to vector<8x8xf32>
    %cst_27 = arith.constant dense<0.000000e+00> : vector<256x8xf32>
    %27 = tpu.matmul %24, %26, %cst_27 {dimension_numbers = #tpu.dot_dimension_numbers<[1], [0], [0], [1], [0, 0, 1, 1], [], []>} : vector<256x8xf32>, vector<8x8xf32>, vector<256x8xf32> -> vector<256x8xf32>
    %28 = arith.addf %21, %27 : vector<256x8xf32>
    %c0_28 = arith.constant 0 : index
    %c1_29 = arith.constant 1 : index
    %c1_30 = arith.constant 1 : index
    %c0_31 = arith.constant 0 : index
    %29 = vector.load %arg1[%c0_28, %c1_29, %c1_30, %c0_31] : memref<1x18x18x8xf32, #tpu.memory_space<vmem>>, vector<1x16x16x8xf32>
    %30 = vector.shape_cast %29 : vector<1x16x16x8xf32> to vector<16x16x8xf32>
    %31 = vector.shape_cast %30 : vector<16x16x8xf32> to vector<256x8xf32>
    %c4 = arith.constant 4 : index
    %c0_32 = arith.constant 0 : index
    %c0_33 = arith.constant 0 : index
    %32 = vector.load %arg2[%c4, %c0_32, %c0_33] : memref<9x8x8xf32, #tpu.memory_space<vmem>>, vector<1x8x8xf32>
    %33 = vector.shape_cast %32 : vector<1x8x8xf32> to vector<8x8xf32>
    %cst_34 = arith.constant dense<0.000000e+00> : vector<256x8xf32>
    %34 = tpu.matmul %31, %33, %cst_34 {dimension_numbers = #tpu.dot_dimension_numbers<[1], [0], [0], [1], [0, 0, 1, 1], [], []>} : vector<256x8xf32>, vector<8x8xf32>, vector<256x8xf32> -> vector<256x8xf32>
    %35 = arith.addf %28, %34 : vector<256x8xf32>
    %c0_35 = arith.constant 0 : index
    %c1_36 = arith.constant 1 : index
    %c2_37 = arith.constant 2 : index
    %c0_38 = arith.constant 0 : index
    %36 = vector.load %arg1[%c0_35, %c1_36, %c2_37, %c0_38] : memref<1x18x18x8xf32, #tpu.memory_space<vmem>>, vector<1x16x16x8xf32>
    %37 = vector.shape_cast %36 : vector<1x16x16x8xf32> to vector<16x16x8xf32>
    %38 = vector.shape_cast %37 : vector<16x16x8xf32> to vector<256x8xf32>
    %c5 = arith.constant 5 : index
    %c0_39 = arith.constant 0 : index
    %c0_40 = arith.constant 0 : index
    %39 = vector.load %arg2[%c5, %c0_39, %c0_40] : memref<9x8x8xf32, #tpu.memory_space<vmem>>, vector<1x8x8xf32>
    %40 = vector.shape_cast %39 : vector<1x8x8xf32> to vector<8x8xf32>
    %cst_41 = arith.constant dense<0.000000e+00> : vector<256x8xf32>
    %41 = tpu.matmul %38, %40, %cst_41 {dimension_numbers = #tpu.dot_dimension_numbers<[1], [0], [0], [1], [0, 0, 1, 1], [], []>} : vector<256x8xf32>, vector<8x8xf32>, vector<256x8xf32> -> vector<256x8xf32>
    %42 = arith.addf %35, %41 : vector<256x8xf32>
    %c0_42 = arith.constant 0 : index
    %c2_43 = arith.constant 2 : index
    %c0_44 = arith.constant 0 : index
    %c0_45 = arith.constant 0 : index
    %43 = vector.load %arg1[%c0_42, %c2_43, %c0_44, %c0_45] : memref<1x18x18x8xf32, #tpu.memory_space<vmem>>, vector<1x16x16x8xf32>
    %44 = vector.shape_cast %43 : vector<1x16x16x8xf32> to vector<16x16x8xf32>
    %45 = vector.shape_cast %44 : vector<16x16x8xf32> to vector<256x8xf32>
    %c6 = arith.constant 6 : index
    %c0_46 = arith.constant 0 : index
    %c0_47 = arith.constant 0 : index
    %46 = vector.load %arg2[%c6, %c0_46, %c0_47] : memref<9x8x8xf32, #tpu.memory_space<vmem>>, vector<1x8x8xf32>
    %47 = vector.shape_cast %46 : vector<1x8x8xf32> to vector<8x8xf32>
    %cst_48 = arith.constant dense<0.000000e+00> : vector<256x8xf32>
    %48 = tpu.matmul %45, %47, %cst_48 {dimension_numbers = #tpu.dot_dimension_numbers<[1], [0], [0], [1], [0, 0, 1, 1], [], []>} : vector<256x8xf32>, vector<8x8xf32>, vector<256x8xf32> -> vector<256x8xf32>
    %49 = arith.addf %42, %48 : vector<256x8xf32>
    %c0_49 = arith.constant 0 : index
    %c2_50 = arith.constant 2 : index
    %c1_51 = arith.constant 1 : index
    %c0_52 = arith.constant 0 : index
    %50 = vector.load %arg1[%c0_49, %c2_50, %c1_51, %c0_52] : memref<1x18x18x8xf32, #tpu.memory_space<vmem>>, vector<1x16x16x8xf32>
    %51 = vector.shape_cast %50 : vector<1x16x16x8xf32> to vector<16x16x8xf32>
    %52 = vector.shape_cast %51 : vector<16x16x8xf32> to vector<256x8xf32>
    %c7 = arith.constant 7 : index
    %c0_53 = arith.constant 0 : index
    %c0_54 = arith.constant 0 : index
    %53 = vector.load %arg2[%c7, %c0_53, %c0_54] : memref<9x8x8xf32, #tpu.memory_space<vmem>>, vector<1x8x8xf32>
    %54 = vector.shape_cast %53 : vector<1x8x8xf32> to vector<8x8xf32>
    %cst_55 = arith.constant dense<0.000000e+00> : vector<256x8xf32>
    %55 = tpu.matmul %52, %54, %cst_55 {dimension_numbers = #tpu.dot_dimension_numbers<[1], [0], [0], [1], [0, 0, 1, 1], [], []>} : vector<256x8xf32>, vector<8x8xf32>, vector<256x8xf32> -> vector<256x8xf32>
    %56 = arith.addf %49, %55 : vector<256x8xf32>
    %c0_56 = arith.constant 0 : index
    %c2_57 = arith.constant 2 : index
    %c2_58 = arith.constant 2 : index
    %c0_59 = arith.constant 0 : index
    %57 = vector.load %arg1[%c0_56, %c2_57, %c2_58, %c0_59] : memref<1x18x18x8xf32, #tpu.memory_space<vmem>>, vector<1x16x16x8xf32>
    %58 = vector.shape_cast %57 : vector<1x16x16x8xf32> to vector<16x16x8xf32>
    %59 = vector.shape_cast %58 : vector<16x16x8xf32> to vector<256x8xf32>
    %c8 = arith.constant 8 : index
    %c0_60 = arith.constant 0 : index
    %c0_61 = arith.constant 0 : index
    %60 = vector.load %arg2[%c8, %c0_60, %c0_61] : memref<9x8x8xf32, #tpu.memory_space<vmem>>, vector<1x8x8xf32>
    %61 = vector.shape_cast %60 : vector<1x8x8xf32> to vector<8x8xf32>
    %cst_62 = arith.constant dense<0.000000e+00> : vector<256x8xf32>
    %62 = tpu.matmul %59, %61, %cst_62 {dimension_numbers = #tpu.dot_dimension_numbers<[1], [0], [0], [1], [0, 0, 1, 1], [], []>} : vector<256x8xf32>, vector<8x8xf32>, vector<256x8xf32> -> vector<256x8xf32>
    %63 = arith.addf %56, %62 : vector<256x8xf32>
    %c0_63 = arith.constant 0 : index
    %c0_64 = arith.constant 0 : index
    %64 = vector.load %arg3[%c0_63, %c0_64] : memref<256x8xf32, #tpu.memory_space<vmem>>, vector<256x8xf32>
    tpu.vector_store %arg3[%c0_63, %c0_64], %63 {strides = array<i32>} : memref<256x8xf32, #tpu.memory_space<vmem>>, vector<256x8xf32>,
    %cst_65 = arith.constant dense<0.000000e+00> : vector<8xf32>
    %65 = vector.multi_reduction <add>, %63, %cst_65 [0] : vector<256x8xf32> to vector<8xf32>
    %66 = vector.shape_cast %65 : vector<8xf32> to vector<1x8xf32>
    %67 = arith.mulf %63, %63 : vector<256x8xf32>
    %cst_66 = arith.constant dense<0.000000e+00> : vector<8xf32>
    %68 = vector.multi_reduction <add>, %67, %cst_66 [0] : vector<256x8xf32> to vector<8xf32>
    %69 = vector.shape_cast %68 : vector<8xf32> to vector<1x8xf32>
    %70 = vector.shape_cast %66 : vector<1x8xf32> to vector<1x8xf32>
    %71 = vector.broadcast %70 : vector<1x8xf32> to vector<8x8xf32>
    %c0_67 = arith.constant 0 : index
    %c0_68 = arith.constant 0 : index
    %c0_69 = arith.constant 0 : index
    %72 = vector.load %arg4[%c0_67, %c0_68, %c0_69] : memref<1x8x8xf32, #tpu.memory_space<vmem>>, vector<1x8x8xf32>
    %73 = vector.shape_cast %72 : vector<1x8x8xf32> to vector<8x8xf32>
    %74 = vector.shape_cast %71 : vector<8x8xf32> to vector<1x8x8xf32>
    tpu.vector_store %arg4[%c0_67, %c0_68, %c0_69], %74 {strides = array<i32>} : memref<1x8x8xf32, #tpu.memory_space<vmem>>, vector<1x8x8xf32>,
    %75 = vector.shape_cast %69 : vector<1x8xf32> to vector<1x8xf32>
    %76 = vector.broadcast %75 : vector<1x8xf32> to vector<8x8xf32>
    %c0_70 = arith.constant 0 : index
    %c0_71 = arith.constant 0 : index
    %c0_72 = arith.constant 0 : index
    %77 = vector.load %arg5[%c0_70, %c0_71, %c0_72] : memref<1x8x8xf32, #tpu.memory_space<vmem>>, vector<1x8x8xf32>
    %78 = vector.shape_cast %77 : vector<1x8x8xf32> to vector<8x8xf32>
    %79 = vector.shape_cast %76 : vector<8x8xf32> to vector<1x8x8xf32>
    tpu.vector_store %arg5[%c0_70, %c0_71, %c0_72], %79 {strides = array<i32>} : memref<1x8x8xf32, #tpu.memory_space<vmem>>, vector<1x8x8xf32>,
    return
  }
  func.func @transform_0(%arg0: i32) -> (i32, i32, i32, i32) {
    %c0_i32 = arith.constant 0 : i32
    %c0_i32_0 = arith.constant 0 : i32
    %c0_i32_1 = arith.constant 0 : i32
    %c0_i32_2 = arith.constant 0 : i32
    return %arg0, %c0_i32, %c0_i32_0, %c0_i32_1 : i32, i32, i32, i32
  }
  func.func @transform_1(%arg0: i32) -> (i32, i32, i32) {
    %c0_i32 = arith.constant 0 : i32
    %c0_i32_0 = arith.constant 0 : i32
    %c0_i32_1 = arith.constant 0 : i32
    %c0_i32_2 = arith.constant 0 : i32
    return %c0_i32, %c0_i32_0, %c0_i32_1 : i32, i32, i32
  }
  func.func @transform_2(%arg0: i32) -> (i32, i32) {
    %c0_i32 = arith.constant 0 : i32
    %c0_i32_0 = arith.constant 0 : i32
    return %arg0, %c0_i32 : i32, i32
  }
  func.func @transform_3(%arg0: i32) -> (i32, i32, i32) {
    %c0_i32 = arith.constant 0 : i32
    %c0_i32_0 = arith.constant 0 : i32
    %c0_i32_1 = arith.constant 0 : i32
    return %arg0, %c0_i32, %c0_i32_0 : i32, i32, i32
  }
  func.func @transform_4(%arg0: i32) -> (i32, i32, i32) {
    %c0_i32 = arith.constant 0 : i32
    %c0_i32_0 = arith.constant 0 : i32
    %c0_i32_1 = arith.constant 0 : i32
    return %arg0, %c0_i32, %c0_i32_0 : i32, i32, i32
  }
}

</mosaic_0001>

<llo_original>
// kernel: conv_block_forward.1
$region0: #{conv_block_forward.1}
  #allocation0 [shape = 'u32[]', space=smem, size = 0x4, offset = 0x4, fixed_abs, tag = 'smem constant byte address 0x4 - core index']
  #allocation1 [shape = 'u32[144,128]{1,0:T(1,128)}', space=vmem, size = 0x12000, scoped, tag = 'internal scratch']
  %s0 = inlined_call_operand.vmem [shape: f32[2,18,18,8], index: 0, kind: input, shape index: {}]
  %s1 = inlined_call_operand.vmem [shape: f32[9,8,8], index: 1, kind: input, shape index: {}]
  %s2 = inlined_call_operand.vmem [shape: f32[512,8], index: 2, kind: output, shape index: {0}]
  %s3 = inlined_call_operand.vmem [shape: f32[2,8,8], index: 3, kind: output, shape index: {1}]
  %s4 = inlined_call_operand.vmem [shape: f32[2,8,8], index: 4, kind: output, shape index: {2}]
  %5 = xla_tuple %s2, %s3, %s4
  %s6 = sld [smem:[#allocation0]]
  $region57: #{conv_block_forward.1} parent=0
    _
  %s8 = ssub.s32 1, %s6
  %s9 = scalar_select 0, %s8, %s6
  loop: start=0, step=1, limit=4
  $region2: #{conv_block_forward.1} parent=0 // loop_pre_header
    _
  $region3: #{conv_block_forward.1} parent=0 // loop_header
    %s11 = sphi 0, %s15
    %p12 = scmp.ge.s32.totalorder %s11, 4
    %s21 = sphi 0, %s23
    %s24 = sphi 0, %s21
    %s25 = sphi 0, %s24
    %s41 = sphi 0, %s25
    %s45 = sphi 0, %s45
    %s47 = sphi 0, %s45
    %s48 = sphi 0, %s47
    %s62 = sphi 0, %s48
    %s68 = sphi 0, %s70
    %s71 = sphi 0, %s68
    %s72 = sphi 0, %s71
    %s88 = sphi 0, %s72
    %s94 = sphi 0, %s96
    %s97 = sphi 0, %s94
    %s98 = sphi 0, %s97
    %s114 = sphi 0, %s98
    %s120 = sphi 0, %s122
    %s123 = sphi 0, %s120
    %s124 = sphi 0, %s123
    %s140 = sphi 0, %s124
  $region4: #{conv_block_forward.1} parent=0 // loop_header_branch
    %14 = sbr.rel (%p12) target = $region8
  $region5: #{conv_block_forward.1} parent=0 // loop_body
    %s16 = ssub.s32 %s11, 1
    %s17 = ssub.s32 %s11, 2
    %s18 = sadd.s32 %s11, 1
    %s19 = ssub.s32 %s11, %s18
    %p20 = scmp.eq.s32.totalorder %s19, 0
    %s22 = sadd.s32 %s21, 1
    %s23 = scalar_select %p20, %s21, %s22
    %p26 = pneg %p20
    %p27 = scmp.eq.s32.totalorder %s11, 1
    %p28 = por %p26, %p27
    %p29 = scmp.ne.s32.totalorder %s21, %s24
    %p30 = scmp.eq.s32.totalorder %s11, 0
    %p31 = por %p29, %p30
    %p32 = scmp.ne.s32.totalorder %s21, %s24
    %p33 = scmp.eq.s32.totalorder %s16, 1
    %p34 = por %p32, %p33
    %p35 = scmp.ne.s32.totalorder %s24, %s25
    %p36 = scmp.eq.s32.totalorder %s16, 0
    %p37 = por %p35, %p36
    %p38 = scmp.ne.s32.totalorder %s24, %s25
    %p39 = scmp.eq.s32.totalorder %s17, 1
    %p40 = por %p38, %p39
    %p42 = scmp.ne.s32.totalorder %s25, %s41
    %p43 = scmp.eq.s32.totalorder %s17, 0
    %p44 = por %p42, %p43
    %s46 = sadd.s32 %s45, 1
    %p49 = scmp.eq.s32.totalorder %s11, 1
    %p50 = scmp.ne.s32.totalorder %s45, %s47
    %p51 = scmp.eq.s32.totalorder %s11, 0
    %p52 = por %p50, %p51
    %p53 = scmp.ne.s32.totalorder %s45, %s47
    %p54 = scmp.eq.s32.totalorder %s16, 1
    %p55 = por %p53, %p54
    %p56 = scmp.ne.s32.totalorder %s47, %s48
    %p57 = scmp.eq.s32.totalorder %s16, 0
    %p58 = por %p56, %p57
    %p59 = scmp.ne.s32.totalorder %s47, %s48
    %p60 = scmp.eq.s32.totalorder %s17, 1
    %p61 = por %p59, %p60
    %p63 = scmp.ne.s32.totalorder %s48, %s62
    %p64 = scmp.eq.s32.totalorder %s17, 0
    %p65 = por %p63, %p64
    %s66 = ssub.s32 %s11, %s18
    %p67 = scmp.eq.s32.totalorder %s66, 0
    %s69 = sadd.s32 %s68, 1
    %s70 = scalar_select %p67, %s68, %s69
    %p73 = pneg %p67
    %p74 = scmp.eq.s32.totalorder %s11, 1
    %p75 = por %p73, %p74
    %p76 = scmp.ne.s32.totalorder %s68, %s71
    %p77 = scmp.eq.s32.totalorder %s11, 0
    %p78 = por %p76, %p77
    %p79 = scmp.ne.s32.totalorder %s68, %s71
    %p80 = scmp.eq.s32.totalorder %s16, 1
    %p81 = por %p79, %p80
    %p82 = scmp.ne.s32.totalorder %s71, %s72
    %p83 = scmp.eq.s32.totalorder %s16, 0
    %p84 = por %p82, %p83
    %p85 = scmp.ne.s32.totalorder %s71, %s72
    %p86 = scmp.eq.s32.totalorder %s17, 1
    %p87 = por %p85, %p86
    %p89 = scmp.ne.s32.totalorder %s72, %s88
    %p90 = scmp.eq.s32.totalorder %s17, 0
    %p91 = por %p89, %p90
    %s92 = ssub.s32 %s11, %s18
    %p93 = scmp.eq.s32.totalorder %s92, 0
    %s95 = sadd.s32 %s94, 1
    %s96 = scalar_select %p93, %s94, %s95
    %p99 = pneg %p93
    %p100 = scmp.eq.s32.totalorder %s11, 1
    %p101 = por %p99, %p100
    %p102 = scmp.ne.s32.totalorder %s94, %s97
    %p103 = scmp.eq.s32.totalorder %s11, 0
    %p104 = por %p102, %p103
    %p105 = scmp.ne.s32.totalorder %s94, %s97
    %p106 = scmp.eq.s32.totalorder %s16, 1
    %p107 = por %p105, %p106
    %p108 = scmp.ne.s32.totalorder %s97, %s98
    %p109 = scmp.eq.s32.totalorder %s16, 0
    %p110 = por %p108, %p109
    %p111 = scmp.ne.s32.totalorder %s97, %s98
    %p112 = scmp.eq.s32.totalorder %s17, 1
    %p113 = por %p111, %p112
    %p115 = scmp.ne.s32.totalorder %s98, %s114
    %p116 = scmp.eq.s32.totalorder %s17, 0
    %p117 = por %p115, %p116
    %s118 = ssub.s32 %s11, %s18
    %p119 = scmp.eq.s32.totalorder %s118, 0
    %s121 = sadd.s32 %s120, 1
    %s122 = scalar_select %p119, %s120, %s121
    %p125 = pneg %p119
    %p126 = scmp.eq.s32.totalorder %s11, 1
    %p127 = por %p125, %p126
    %p128 = scmp.ne.s32.totalorder %s120, %s123
    %p129 = scmp.eq.s32.totalorder %s11, 0
    %p130 = por %p128, %p129
    %p131 = scmp.ne.s32.totalorder %s120, %s123
    %p132 = scmp.eq.s32.totalorder %s16, 1
    %p133 = por %p131, %p132
    %p134 = scmp.ne.s32.totalorder %s123, %s124
    %p135 = scmp.eq.s32.totalorder %s16, 0
    %p136 = por %p134, %p135
    %p137 = scmp.ne.s32.totalorder %s123, %s124
    %p138 = scmp.eq.s32.totalorder %s17, 1
    %p139 = por %p137, %p138
    %p141 = scmp.ne.s32.totalorder %s124, %s140
    %p142 = scmp.eq.s32.totalorder %s17, 0
    %p143 = por %p141, %p142
    %p144 = scmp.le.s32.totalorder 1, %s11
    %p145 = scmp.lt.s32.totalorder %s11, 3
    %p146 = pnand %p144, %p145
    %p147 = pneg %p146
    // Predicated region
    $region9: #{conv_block_forward.1} parent=5 // pred_check
      _
    $region10: #{conv_block_forward.1} parent=5 // pred_check_branch
      %149 = sbr.rel (%p146) target = $region12
    $region11: #{conv_block_forward.1} parent=5 // pred_region
      %s150 = ssub.s32 %s11, 1
      // Predicated region
      $region13: #{conv_block_forward.1} parent=11 // pred_check
        %p151 = pneg %p58
      $region14: #{conv_block_forward.1} parent=11 // pred_check_branch
        %153 = sbr.rel (%p151) target = $region16
      $region15: #{conv_block_forward.1} parent=11 // pred_region
        _
      $region16: #{conv_block_forward.1} parent=11 // pred_fallthru
        _
    $region12: #{conv_block_forward.1} parent=5 // pred_fallthru
      _
    %p154 = scmp.lt.s32.totalorder %s11, 2
    // Predicated region
    $region17: #{conv_block_forward.1} parent=5 // pred_check
      %p155 = pneg %p154
    $region18: #{conv_block_forward.1} parent=5 // pred_check_branch
      %157 = sbr.rel (%p155) target = $region20
    $region19: #{conv_block_forward.1} parent=5 // pred_region
      // Predicated region
      $region21: #{conv_block_forward.1} parent=19 // pred_check
        %p158 = pneg %p31
      $region22: #{conv_block_forward.1} parent=19 // pred_check_branch
        %160 = sbr.rel (%p158) target = $region24
      $region23: #{conv_block_forward.1} parent=19 // pred_region
        %p161 = scmp.lt.s32.totalorder %s11, 1
        %s162 = scalar_select %p161, %s11, 1
        %s163 = smul.addr %s162, 54
        %s164 = smul.addr %s163, 8
        %s165 = scalar_lea.vmem %s0, %s164
      $region24: #{conv_block_forward.1} parent=19 // pred_fallthru
        _
    $region20: #{conv_block_forward.1} parent=5 // pred_fallthru
      _
    %p166 = scmp.le.s32.totalorder 1, %s11
    %p167 = scmp.lt.s32.totalorder %s11, 3
    %p168 = pnand %p166, %p167
    %p169 = pneg %p168
    // Predicated region
    $region25: #{conv_block_forward.1} parent=5 // pred_check
      _
    $region26: #{conv_block_forward.1} parent=5 // pred_check_branch
      %171 = sbr.rel (%p168) target = $region28
    $region27: #{conv_block_forward.1} parent=5 // pred_region
      %s172 = ssub.s32 %s11, 1
      %p173 = scmp.lt.s32.totalorder %s16, 1
      %s174 = scalar_select %p173, %s16, 1
      %s175 = smul.addr %s174, 54
      %s176 = smul.addr %s175, 8
      %s177 = scalar_lea.vmem %s0, %s176
      %p178 = pneg %p37
      %p179 = pneg %p34
      %p180 = pneg %p58
      %p181 = pneg %p55
      %p182 = pneg %p84
      %p183 = pneg %p81
      %s184 = smul.u32 32, %s16
      %p185 = scmp.lt.s32.totalorder %s184, 63
      %s186 = scalar_select %p185, %s184, 63
      %s187 = smul.addr %s186, 8
      %s188 = scalar_lea.vmem %s2, %s187
      %p189 = pneg %p110
      %p190 = pneg %p107
      %p191 = scmp.lt.s32.totalorder %s16, 1
      %s192 = scalar_select %p191, %s16, 1
      %s193 = smul.addr %s192, 8
      %s194 = scalar_lea.vmem %s3, %s193
      %p195 = pneg %p136
      %p196 = pneg %p133
      %p197 = scmp.lt.s32.totalorder %s16, 1
      %s198 = scalar_select %p197, %s16, 1
      %s199 = smul.addr %s198, 8
      %s200 = scalar_lea.vmem %s4, %s199
      %p201 = scmp.lt.s32.totalorder %s16, 1
      %s202 = scalar_select %p201, %s16, 1
      %s203 = smul.addr %s202, 54
      %s204 = smul.addr %s203, 8
      %s205 = scalar_lea.vmem %s0, %s204
      %s206 = smul.u32 32, %s16
      %p207 = scmp.lt.s32.totalorder %s206, 63
      %s208 = scalar_select %p207, %s206, 63
      %s209 = smul.addr %s208, 8
      %s210 = scalar_lea.vmem %s2, %s209
      %s211 = smul.u32 32, %s16
      %p212 = scmp.lt.s32.totalorder %s16, 1
      %s213 = scalar_select %p212, %s16, 1
      %s214 = smul.addr %s213, 8
      %s215 = scalar_lea.vmem %s3, %s214
      %p216 = scmp.lt.s32.totalorder %s16, 1
      %s217 = scalar_select %p216, %s16, 1
      %s218 = smul.addr %s217, 8
      %s219 = scalar_lea.vmem %s4, %s218
      %v220 = vld [vmem:[%s205] sm:$0xff]
      %v221 = vld [vmem:[%s205 + $0x8] sm:$0xff]
      %v222 = vld [vmem:[%s205 + $0x18] sm:$0xff]
      %v223 = vld [vmem:[%s205 + $0x20] sm:$0xff]
      %v224 = vld [vmem:[%s205 + $0x30] sm:$0xff]
      %v225 = vld [vmem:[%s205 + $0x38] sm:$0xff]
      %v226 = vld [vmem:[%s205 + $0x48] sm:$0xff]
      %v227 = vld [vmem:[%s205 + $0x50] sm:$0xff]
      %v228 = vld [vmem:[%s205 + $0x60] sm:$0xff]
      %v229 = vld [vmem:[%s205 + $0x68] sm:$0xff]
      %v230 = vld [vmem:[%s205 + $0x78] sm:$0xff]
      %v231 = vld [vmem:[%s205 + $0x80] sm:$0xff]
      %v232 = vld [vmem:[%s205 + $0x90] sm:$0xff]
      %v233 = vld [vmem:[%s205 + $0x98] sm:$0xff]
      %v234 = vld [vmem:[%s205 + $0xa8] sm:$0xff]
      %v235 = vld [vmem:[%s205 + $0xb0] sm:$0xff]
      %v236 = vld [vmem:[%s205 + $0xc0] sm:$0xff]
      %v237 = vld [vmem:[%s205 + $0xc8] sm:$0xff]
      %v238 = vld [vmem:[%s205 + $0xd8] sm:$0xff]
      %v239 = vld [vmem:[%s205 + $0xe0] sm:$0xff]
      %v240 = vld [vmem:[%s205 + $0xf0] sm:$0xff]
      %v241 = vld [vmem:[%s205 + $0xf8] sm:$0xff]
      %v242 = vld [vmem:[%s205 + $0x108] sm:$0xff]
      %v243 = vld [vmem:[%s205 + $0x110] sm:$0xff]
      %v244 = vld [vmem:[%s205 + $0x120] sm:$0xff]
      %v245 = vld [vmem:[%s205 + $0x128] sm:$0xff]
      %v246 = vld [vmem:[%s205 + $0x138] sm:$0xff]
      %v247 = vld [vmem:[%s205 + $0x140] sm:$0xff]
      %v248 = vld [vmem:[%s205 + $0x150] sm:$0xff]
      %v249 = vld [vmem:[%s205 + $0x158] sm:$0xff]
      %v250 = vld [vmem:[%s205 + $0x168] sm:$0xff]
      %v251 = vld [vmem:[%s205 + $0x170] sm:$0xff]
      %v252 = vld [vmem:[%s1] sm:$0xff]
      %v253 = vld [vmem:[%s205 + $0x1] sm:$0xff]
      %v254 = vld [vmem:[%s205 + $0x9] sm:$0xff]
      %v255 = vld [vmem:[%s205 + $0x19] sm:$0xff]
      %v256 = vld [vmem:[%s205 + $0x21] sm:$0xff]
      %v257 = vld [vmem:[%s205 + $0x31] sm:$0xff]
      %v258 = vld [vmem:[%s205 + $0x39] sm:$0xff]
      %v259 = vld [vmem:[%s205 + $0x49] sm:$0xff]
      %v260 = vld [vmem:[%s205 + $0x51] sm:$0xff]
      %v261 = vld [vmem:[%s205 + $0x61] sm:$0xff]
      %v262 = vld [vmem:[%s205 + $0x69] sm:$0xff]
      %v263 = vld [vmem:[%s205 + $0x79] sm:$0xff]
      %v264 = vld [vmem:[%s205 + $0x81] sm:$0xff]
      %v265 = vld [vmem:[%s205 + $0x91] sm:$0xff]
      %v266 = vld [vmem:[%s205 + $0x99] sm:$0xff]
      %v267 = vld [vmem:[%s205 + $0xa9] sm:$0xff]
      %v268 = vld [vmem:[%s205 + $0xb1] sm:$0xff]
      %v269 = vld [vmem:[%s205 + $0xc1] sm:$0xff]
      %v270 = vld [vmem:[%s205 + $0xc9] sm:$0xff]
      %v271 = vld [vmem:[%s205 + $0xd9] sm:$0xff]
      %v272 = vld [vmem:[%s205 + $0xe1] sm:$0xff]
      %v273 = vld [vmem:[%s205 + $0xf1] sm:$0xff]
      %v274 = vld [vmem:[%s205 + $0xf9] sm:$0xff]
      %v275 = vld [vmem:[%s205 + $0x109] sm:$0xff]
      %v276 = vld [vmem:[%s205 + $0x111] sm:$0xff]
      %v277 = vld [vmem:[%s205 + $0x121] sm:$0xff]
      %v278 = vld [vmem:[%s205 + $0x129] sm:$0xff]
      %v279 = vld [vmem:[%s205 + $0x139] sm:$0xff]
      %v280 = vld [vmem:[%s205 + $0x141] sm:$0xff]
      %v281 = vld [vmem:[%s205 + $0x151] sm:$0xff]
      %v282 = vld [vmem:[%s205 + $0x159] sm:$0xff]
      %v283 = vld [vmem:[%s205 + $0x169] sm:$0xff]
      %v284 = vld [vmem:[%s205 + $0x171] sm:$0xff]
      %s285 = scalar_lea.vmem %s1, 8
      %v286 = vld [vmem:[%s285] sm:$0xff]
      %vm287 = vcmask 64512
      %v289 = vsel %vm287, %v253, 0
      %v292 = vsel %vm287, %v254, 0
      %v295 = vsel %vm287, %v255, 0
      %v298 = vsel %vm287, %v256, 0
      %v301 = vsel %vm287, %v257, 0
      %v304 = vsel %vm287, %v258, 0
      %v307 = vsel %vm287, %v259, 0
      %v310 = vsel %vm287, %v260, 0
      %v313 = vsel %vm287, %v261, 0
      %v316 = vsel %vm287, %v262, 0
      %v319 = vsel %vm287, %v263, 0
      %v322 = vsel %vm287, %v264, 0
      %v325 = vsel %vm287, %v265, 0
      %v328 = vsel %vm287, %v266, 0
      %v331 = vsel %vm287, %v267, 0
      %v334 = vsel %vm287, %v268, 0
      %v337 = vsel %vm287, %v269, 0
      %v340 = vsel %vm287, %v270, 0
      %v343 = vsel %vm287, %v271, 0
      %v346 = vsel %vm287, %v272, 0
      %v349 = vsel %vm287, %v273, 0
      %v352 = vsel %vm287, %v274, 0
      %v355 = vsel %vm287, %v275, 0
      %v358 = vsel %vm287, %v276, 0
      %v361 = vsel %vm287, %v277, 0
      %v364 = vsel %vm287, %v278, 0
      %v367 = vsel %vm287, %v279, 0
      %v370 = vsel %vm287, %v280, 0
      %v373 = vsel %vm287, %v281, 0
      %v376 = vsel %vm287, %v282, 0
      %v379 = vsel %vm287, %v283, 0
      %v382 = vsel %vm287, %v284, 0
      %384 = vmatprep.subr.mxu0 0.0
      %385 = vmatpush1.msra.mxu0 %v286
      %386 = vmatprep.subr.mxu0 0.0
      %387 = vmatpush1.msra.mxu0 0.0
      %388 = vmatprep.subr.mxu0 0.0
      %389 = vmatpush1.msra.mxu0 0.0
      %390 = vmatprep.subr.mxu0 0.0
      %391 = vmatpush1.msra.mxu0 0.0
      %392 = vmatprep.subr.mxu0 0.0
      %393 = vmatpush1.msra.mxu0 0.0
      %394 = vmatprep.subr.mxu0 0.0
      %395 = vmatpush1.msra.mxu0 0.0
      %396 = vmatprep.subr.mxu0 0.0
      %397 = vmatpush1.msra.mxu0 0.0
      %398 = vmatprep.subr.mxu0 0.0
      %399 = vmatpush1.msra.mxu0 0.0
      %400 = vmatprep.subr.mxu0 0.0
      %401 = vmatpush1.msra.mxu0 0.0
      %402 = vmatprep.subr.mxu0 0.0
      %403 = vmatpush1.msra.mxu0 0.0
      %404 = vmatprep.subr.mxu0 0.0
      %405 = vmatpush1.msra.mxu0 0.0
      %406 = vmatprep.subr.mxu0 0.0
      %407 = vmatpush1.msra.mxu0 0.0
      %408 = vmatprep.subr.mxu0 0.0
      %409 = vmatpush1.msra.mxu0 0.0
      %410 = vmatprep.subr.mxu0 0.0
      %411 = vmatpush1.msra.mxu0 0.0
      %412 = vmatprep.subr.mxu0 0.0
      %413 = vmatpush1.msra.mxu0 0.0
      %414 = vmatprep.subr.mxu0 0.0
      %415 = vmatpush1.msra.mxu0 0.0
      %416 = vmatprep.subr.mxu0 0.0
      %417 = vmatpush1.msra.mxu0 0.0
      %418 = vmatprep.subr.mxu0 0.0
      %419 = vmatpush1.msra.mxu0 0.0
      %420 = vmatprep.subr.mxu0 0.0
      %421 = vmatpush1.msra.mxu0 0.0
      %422 = vmatprep.subr.mxu0 0.0
      %423 = vmatpush1.msra.mxu0 0.0
      %424 = vmatprep.subr.mxu0 0.0
      %425 = vmatpush1.msra.mxu0 0.0
      %426 = vmatprep.subr.mxu0 0.0
      %427 = vmatpush1.msra.mxu0 0.0
      %428 = vmatprep.subr.mxu0 0.0
      %429 = vmatpush1.msra.mxu0 0.0
      %430 = vmatprep.subr.mxu0 0.0
      %431 = vmatpush1.msra.mxu0 0.0
      %432 = vmatprep.subr.mxu0 0.0
      %433 = vmatpush1.msra.mxu0 0.0
      %434 = vmatprep.subr.mxu0 0.0
      %435 = vmatpush1.msra.mxu0 0.0
      %436 = vmatprep.subr.mxu0 0.0
      %437 = vmatpush1.msra.mxu0 0.0
      %438 = vmatprep.subr.mxu0 0.0
      %439 = vmatpush1.msra.mxu0 0.0
      %440 = vmatprep.subr.mxu0 0.0
      %441 = vmatpush1.msra.mxu0 0.0
      %442 = vmatprep.subr.mxu0 0.0
      %443 = vmatpush1.msra.mxu0 0.0
      %444 = vmatprep.subr.mxu0 0.0
      %445 = vmatpush1.msra.mxu0 0.0
      %446 = vmatprep.subr.mxu0 0.0
      %447 = vmatpush1.msra.mxu0 0.0
      %448 = vmatprep.mubr.f32.mxu0 0.0
      %449 = vmatmul.mubr.f32.gmra.mrb[0].mxu0 %v289
      %v450 = vpop.f32.mrb[0].mxu0
      %v451 = vadd.f32 0.0, %v450
      %v452 = vpop.f32.mrb[0].mxu0
      %453 = vmatprep.mubr.f32.mxu0 0.0
      %454 = vmatmul.mubr.f32.gmra.mrb[0].mxu0 %v292
      %v455 = vpop.f32.mrb[0].mxu0
      %v456 = vadd.f32 0.0, %v455
      %v457 = vpop.f32.mrb[0].mxu0
      %458 = vmatprep.mubr.f32.mxu0 0.0
      %459 = vmatmul.mubr.f32.gmra.mrb[0].mxu0 %v295
      %v460 = vpop.f32.mrb[0].mxu0
      %v461 = vadd.f32 0.0, %v460
      %v462 = vpop.f32.mrb[0].mxu0
      %463 = vmatprep.mubr.f32.mxu0 0.0
      %464 = vmatmul.mubr.f32.gmra.mrb[0].mxu0 %v298
      %v465 = vpop.f32.mrb[0].mxu0
      %v466 = vadd.f32 0.0, %v465
      %v467 = vpop.f32.mrb[0].mxu0
      %468 = vmatprep.mubr.f32.mxu0 0.0
      %469 = vmatmul.mubr.f32.gmra.mrb[0].mxu0 %v301
      %v470 = vpop.f32.mrb[0].mxu0
      %v471 = vadd.f32 0.0, %v470
      %v472 = vpop.f32.mrb[0].mxu0
      %473 = vmatprep.mubr.f32.mxu0 0.0
      %474 = vmatmul.mubr.f32.gmra.mrb[0].mxu0 %v304
      %v475 = vpop.f32.mrb[0].mxu0
      %v476 = vadd.f32 0.0, %v475
      %v477 = vpop.f32.mrb[0].mxu0
      %478 = vmatprep.mubr.f32.mxu0 0.0
      %479 = vmatmul.mubr.f32.gmra.mrb[0].mxu0 %v307
      %v480 = vpop.f32.mrb[0].mxu0
      %v481 = vadd.f32 0.0, %v480
      %v482 = vpop.f32.mrb[0].mxu0
      %483 = vmatprep.mubr.f32.mxu0 0.0
      %484 = vmatmul.mubr.f32.gmra.mrb[0].mxu0 %v310
      %v485 = vpop.f32.mrb[0].mxu0
      %v486 = vadd.f32 0.0, %v485
      %v487 = vpop.f32.mrb[0].mxu0
      %488 = vmatprep.mubr.f32.mxu0 0.0
      %489 = vmatmul.mubr.f32.gmra.mrb[0].mxu0 %v313
      %v490 = vpop.f32.mrb[0].mxu0
      %v491 = vadd.f32 0.0, %v490
      %v492 = vpop.f32.mrb[0].mxu0
      %493 = vmatprep.mubr.f32.mxu0 0.0
      %494 = vmatmul.mubr.f32.gmra.mrb[0].mxu0 %v316
      %v495 = vpop.f32.mrb[0].mxu0
      %v496 = vadd.f32 0.0, %v495
      %v497 = vpop.f32.mrb[0].mxu0
      %498 = vmatprep.mubr.f32.mxu0 0.0
      %499 = vmatmul.mubr.f32.gmra.mrb[0].mxu0 %v319
      %v500 = vpop.f32.mrb[0].mxu0
      %v501 = vadd.f32 0.0, %v500
      %v502 = vpop.f32.mrb[0].mxu0
      %503 = vmatprep.mubr.f32.mxu0 0.0
      %504 = vmatmul.mubr.f32.gmra.mrb[0].mxu0 %v322
      %v505 = vpop.f32.mrb[0].mxu0
      %v506 = vadd.f32 0.0, %v505
      %v507 = vpop.f32.mrb[0].mxu0
      %508 = vmatprep.mubr.f32.mxu0 0.0
      %509 = vmatmul.mubr.f32.gmra.mrb[0].mxu0 %v325
      %v510 = vpop.f32.mrb[0].mxu0
      %v511 = vadd.f32 0.0, %v510
      %v512 = vpop.f32.mrb[0].mxu0
      %513 = vmatprep.mubr.f32.mxu0 0.0
      %514 = vmatmul.mubr.f32.gmra.mrb[0].mxu0 %v328
      %v515 = vpop.f32.mrb[0].mxu0
      %v516 = vadd.f32 0.0, %v515
      %v517 = vpop.f32.mrb[0].mxu0
      %518 = vmatprep.mubr.f32.mxu0 0.0
      %519 = vmatmul.mubr.f32.gmra.mrb[0].mxu0 %v331
      %v520 = vpop.f32.mrb[0].mxu0
      %v521 = vadd.f32 0.0, %v520
      %v522 = vpop.f32.mrb[0].mxu0
      %523 = vmatprep.mubr.f32.mxu0 0.0
      %524 = vmatmul.mubr.f32.gmra.mrb[0].mxu0 %v334
      %v525 = vpop.f32.mrb[0].mxu0
      %v526 = vadd.f32 0.0, %v525
      %v527 = vpop.f32.mrb[0].mxu0
      %528 = vmatprep.mubr.f32.mxu0 0.0
      %529 = vmatmul.mubr.f32.gmra.mrb[0].mxu0 %v337
      %v530 = vpop.f32.mrb[0].mxu0
      %v531 = vadd.f32 0.0, %v530
      %v532 = vpop.f32.mrb[0].mxu0
      %533 = vmatprep.mubr.f32.mxu0 0.0
      %534 = vmatmul.mubr.f32.gmra.mrb[0].mxu0 %v340
      %v535 = vpop.f32.mrb[0].mxu0
      %v536 = vadd.f32 0.0, %v535
      %v537 = vpop.f32.mrb[0].mxu0
      %538 = vmatprep.mubr.f32.mxu0 0.0
      %539 = vmatmul.mubr.f32.gmra.mrb[0].mxu0 %v343
      %v540 = vpop.f32.mrb[0].mxu0
      %v541 = vadd.f32 0.0, %v540
      %v542 = vpop.f32.mrb[0].mxu0
      %543 = vmatprep.mubr.f32.mxu0 0.0
      %544 = vmatmul.mubr.f32.gmra.mrb[0].mxu0 %v346
      %v545 = vpop.f32.mrb[0].mxu0
      %v546 = vadd.f32 0.0, %v545
      %v547 = vpop.f32.mrb[0].mxu0
      %548 = vmatprep.mubr.f32.mxu0 0.0
      %549 = vmatmul.mubr.f32.gmra.mrb[0].mxu0 %v349
      %v550 = vpop.f32.mrb[0].mxu0
      %v551 = vadd.f32 0.0, %v550
      %v552 = vpop.f32.mrb[0].mxu0
      %553 = vmatprep.mubr.f32.mxu0 0.0
      %554 = vmatmul.mubr.f32.gmra.mrb[0].mxu0 %v352
      %v555 = vpop.f32.mrb[0].mxu0
      %v556 = vadd.f32 0.0, %v555
      %v557 = vpop.f32.mrb[0].mxu0
      %558 = vmatprep.mubr.f32.mxu0 0.0
      %559 = vmatmul.mubr.f32.gmra.mrb[0].mxu0 %v355
      %v560 = vpop.f32.mrb[0].mxu0
      %v561 = vadd.f32 0.0, %v560
      %v562 = vpop.f32.mrb[0].mxu0
      %563 = vmatprep.mubr.f32.mxu0 0.0
      %564 = vmatmul.mubr.f32.gmra.mrb[0].mxu0 %v358
      %v565 = vpop.f32.mrb[0].mxu0
      %v566 = vadd.f32 0.0, %v565
      %v567 = vpop.f32.mrb[0].mxu0
      %568 = vmatprep.mubr.f32.mxu0 0.0
      %569 = vmatmul.mubr.f32.gmra.mrb[0].mxu0 %v361
      %v570 = vpop.f32.mrb[0].mxu0
      %v571 = vadd.f32 0.0, %v570
      %v572 = vpop.f32.mrb[0].mxu0
      %573 = vmatprep.mubr.f32.mxu0 0.0
      %574 = vmatmul.mubr.f32.gmra.mrb[0].mxu0 %v364
      %v575 = vpop.f32.mrb[0].mxu0
      %v576 = vadd.f32 0.0, %v575
      %v577 = vpop.f32.mrb[0].mxu0
      %578 = vmatprep.mubr.f32.mxu0 0.0
      %579 = vmatmul.mubr.f32.gmra.mrb[0].mxu0 %v367
      %v580 = vpop.f32.mrb[0].mxu0
      %v581 = vadd.f32 0.0, %v580
      %v582 = vpop.f32.mrb[0].mxu0
      %583 = vmatprep.mubr.f32.mxu0 0.0
      %584 = vmatmul.mubr.f32.gmra.mrb[0].mxu0 %v370
      %v585 = vpop.f32.mrb[0].mxu0
      %v586 = vadd.f32 0.0, %v585
      %v587 = vpop.f32.mrb[0].mxu0
      %588 = vmatprep.mubr.f32.mxu0 0.0
      %589 = vmatmul.mubr.f32.gmra.mrb[0].mxu0 %v373
      %v590 = vpop.f32.mrb[0].mxu0
      %v591 = vadd.f32 0.0, %v590
      %v592 = vpop.f32.mrb[0].mxu0
      %593 = vmatprep.mubr.f32.mxu0 0.0
      %594 = vmatmul.mubr.f32.gmra.mrb[0].mxu0 %v376
      %v595 = vpop.f32.mrb[0].mxu0
      %v596 = vadd.f32 0.0, %v595
      %v597 = vpop.f32.mrb[0].mxu0
      %598 = vmatprep.mubr.f32.mxu0 0.0
      %599 = vmatmul.mubr.f32.gmra.mrb[0].mxu0 %v379
      %v600 = vpop.f32.mrb[0].mxu0
      %v601 = vadd.f32 0.0, %v600
      %v602 = vpop.f32.mrb[0].mxu0
      %603 = vmatprep.mubr.f32.mxu0 0.0
      %604 = vmatmul.mubr.f32.gmra.mrb[0].mxu0 %v382
      %v605 = vpop.f32.mrb[0].mxu0
      %v606 = vadd.f32 0.0, %v605
      %v607 = vpop.f32.mrb[0].mxu0
      %608 = vdwg.mxu0
      %v610 = vsel %vm287, %v220, 0
      %v613 = vsel %vm287, %v221, 0
      %v616 = vsel %vm287, %v222, 0
      %v619 = vsel %vm287, %v223, 0
      %v622 = vsel %vm287, %v224, 0
      %v625 = vsel %vm287, %v225, 0
      %v628 = vsel %vm287, %v226, 0
      %v631 = vsel %vm287, %v227, 0
      %v634 = vsel %vm287, %v228, 0
      %v637 = vsel %vm287, %v229, 0
      %v640 = vsel %vm287, %v230, 0
      %v643 = vsel %vm287, %v231, 0
      %v646 = vsel %vm287, %v232, 0
      %v649 = vsel %vm287, %v233, 0
      %v652 = vsel %vm287, %v234, 0
      %v655 = vsel %vm287, %v235, 0
      %v658 = vsel %vm287, %v236, 0
      %v661 = vsel %vm287, %v237, 0
      %v664 = vsel %vm287, %v238, 0
      %v667 = vsel %vm287, %v239, 0
      %v670 = vsel %vm287, %v240, 0
      %v673 = vsel %vm287, %v241, 0
      %v676 = vsel %vm287, %v242, 0
      %v679 = vsel %vm287, %v243, 0
      %v682 = vsel %vm287, %v244, 0
      %v685 = vsel %vm287, %v245, 0
      %v688 = vsel %vm287, %v246, 0
      %v691 = vsel %vm287, %v247, 0
      %v694 = vsel %vm287, %v248, 0
      %v697 = vsel %vm287, %v249, 0
      %v700 = vsel %vm287, %v250, 0
      %v703 = vsel %vm287, %v251, 0
      %705 = vmatprep.subr.mxu0 0.0
      %706 = vmatpush1.msra.mxu0 %v252
      %707 = vmatprep.subr.mxu0 0.0
      %708 = vmatpush1.msra.mxu0 0.0
      %709 = vmatprep.subr.mxu0 0.0
      %710 = vmatpush1.msra.mxu0 0.0
      %711 = vmatprep.subr.mxu0 0.0
      %712 = vmatpush1.msra.mxu0 0.0
      %713 = vmatprep.subr.mxu0 0.0
      %714 = vmatpush1.msra.mxu0 0.0
      %715 = vmatprep.subr.mxu0 0.0
      %716 = vmatpush1.msra.mxu0 0.0
      %717 = vmatprep.subr.mxu0 0.0
      %718 = vmatpush1.msra.mxu0 0.0
      %719 = vmatprep.subr.mxu0 0.0
      %720 = vmatpush1.msra.mxu0 0.0
      %721 = vmatprep.subr.mxu0 0.0
      %722 = vmatpush1.msra.mxu0 0.0
      %723 = vmatprep.subr.mxu0 0.0
      %724 = vmatpush1.msra.mxu0 0.0
      %725 = vmatprep.subr.mxu0 0.0
      %726 = vmatpush1.msra.mxu0 0.0
      %727 = vmatprep.subr.mxu0 0.0
      %728 = vmatpush1.msra.mxu0 0.0
      %729 = vmatprep.subr.mxu0 0.0
      %730 = vmatpush1.msra.mxu0 0.0
      %731 = vmatprep.subr.mxu0 0.0
      %732 = vmatpush1.msra.mxu0 0.0
      %733 = vmatprep.subr.mxu0 0.0
      %734 = vmatpush1.msra.mxu0 0.0
      %735 = vmatprep.subr.mxu0 0.0
      %736 = vmatpush1.msra.mxu0 0.0
      %737 = vmatprep.subr.mxu0 0.0
      %738 = vmatpush1.msra.mxu0 0.0
      %739 = vmatprep.subr.mxu0 0.0
      %740 = vmatpush1.msra.mxu0 0.0
      %741 = vmatprep.subr.mxu0 0.0
      %742 = vmatpush1.msra.mxu0 0.0
      %743 = vmatprep.subr.mxu0 0.0
      %744 = vmatpush1.msra.mxu0 0.0
      %745 = vmatprep.subr.mxu0 0.0
      %746 = vmatpush1.msra.mxu0 0.0
      %747 = vmatprep.subr.mxu0 0.0
      %748 = vmatpush1.msra.mxu0 0.0
      %749 = vmatprep.subr.mxu0 0.0
      %750 = vmatpush1.msra.mxu0 0.0
      %751 = vmatprep.subr.mxu0 0.0
      %752 = vmatpush1.msra.mxu0 0.0
      %753 = vmatprep.subr.mxu0 0.0
      %754 = vmatpush1.msra.mxu0 0.0
      %755 = vmatprep.subr.mxu0 0.0
      %756 = vmatpush1.msra.mxu0 0.0
      %757 = vmatprep.subr.mxu0 0.0
      %758 = vmatpush1.msra.mxu0 0.0
      %759 = vmatprep.subr.mxu0 0.0
      %760 = vmatpush1.msra.mxu0 0.0
      %761 = vmatprep.subr.mxu0 0.0
      %762 = vmatpush1.msra.mxu0 0.0
      %763 = vmatprep.subr.mxu0 0.0
      %764 = vmatpush1.msra.mxu0 0.0
      %765 = vmatprep.subr.mxu0 0.0
      %766 = vmatpush1.msra.mxu0 0.0
      %767 = vmatprep.subr.mxu0 0.0
      %768 = vmatpush1.msra.mxu0 0.0
      %769 = vmatprep.mubr.f32.mxu0 0.0
      %770 = vmatmul.mubr.f32.gmra.mrb[0].mxu0 %v610
      %v771 = vpop.f32.mrb[0].mxu0
      %v772 = vadd.f32 %v451, %v771
      %v773 = vpop.f32.mrb[0].mxu0
      %774 = vmatprep.mubr.f32.mxu0 0.0
      %775 = vmatmul.mubr.f32.gmra.mrb[0].mxu0 %v613
      %v776 = vpop.f32.mrb[0].mxu0
      %v777 = vadd.f32 %v456, %v776
      %v778 = vpop.f32.mrb[0].mxu0
      %779 = vmatprep.mubr.f32.mxu0 0.0
      %780 = vmatmul.mubr.f32.gmra.mrb[0].mxu0 %v616
      %v781 = vpop.f32.mrb[0].mxu0
      %v782 = vadd.f32 %v461, %v781
      %v783 = vpop.f32.mrb[0].mxu0
      %784 = vmatprep.mubr.f32.mxu0 0.0
      %785 = vmatmul.mubr.f32.gmra.mrb[0].mxu0 %v619
      %v786 = vpop.f32.mrb[0].mxu0
      %v787 = vadd.f32 %v466, %v786
      %v788 = vpop.f32.mrb[0].mxu0
      %789 = vmatprep.mubr.f32.mxu0 0.0
      %790 = vmatmul.mubr.f32.gmra.mrb[0].mxu0 %v622
      %v791 = vpop.f32.mrb[0].mxu0
      %v792 = vadd.f32 %v471, %v791
      %v793 = vpop.f32.mrb[0].mxu0
      %794 = vmatprep.mubr.f32.mxu0 0.0
      %795 = vmatmul.mubr.f32.gmra.mrb[0].mxu0 %v625
      %v796 = vpop.f32.mrb[0].mxu0
      %v797 = vadd.f32 %v476, %v796
      %v798 = vpop.f32.mrb[0].mxu0
      %799 = vmatprep.mubr.f32.mxu0 0.0
      %800 = vmatmul.mubr.f32.gmra.mrb[0].mxu0 %v628
      %v801 = vpop.f32.mrb[0].mxu0
      %v802 = vadd.f32 %v481, %v801
      %v803 = vpop.f32.mrb[0].mxu0
      %804 = vmatprep.mubr.f32.mxu0 0.0
      %805 = vmatmul.mubr.f32.gmra.mrb[0].mxu0 %v631
      %v806 = vpop.f32.mrb[0].mxu0
      %v807 = vadd.f32 %v486, %v806
      %v808 = vpop.f32.mrb[0].mxu0
      %809 = vmatprep.mubr.f32.mxu0 0.0
      %810 = vmatmul.mubr.f32.gmra.mrb[0].mxu0 %v634
      %v811 = vpop.f32.mrb[0].mxu0
      %v812 = vadd.f32 %v491, %v811
      %v813 = vpop.f32.mrb[0].mxu0
      %814 = vmatprep.mubr.f32.mxu0 0.0
      %815 = vmatmul.mubr.f32.gmra.mrb[0].mxu0 %v637
      %v816 = vpop.f32.mrb[0].mxu0
      %v817 = vadd.f32 %v496, %v816
      %v818 = vpop.f32.mrb[0].mxu0
      %819 = vmatprep.mubr.f32.mxu0 0.0
      %820 = vmatmul.mubr.f32.gmra.mrb[0].mxu0 %v640
      %v821 = vpop.f32.mrb[0].mxu0
      %v822 = vadd.f32 %v501, %v821
      %v823 = vpop.f32.mrb[0].mxu0
      %824 = vmatprep.mubr.f32.mxu0 0.0
      %825 = vmatmul.mubr.f32.gmra.mrb[0].mxu0 %v643
      %v826 = vpop.f32.mrb[0].mxu0
      %v827 = vadd.f32 %v506, %v826
      %v828 = vpop.f32.mrb[0].mxu0
      %829 = vmatprep.mubr.f32.mxu0 0.0
      %830 = vmatmul.mubr.f32.gmra.mrb[0].mxu0 %v646
      %v831 = vpop.f32.mrb[0].mxu0
      %v832 = vadd.f32 %v511, %v831
      %v833 = vpop.f32.mrb[0].mxu0
      %834 = vmatprep.mubr.f32.mxu0 0.0
      %835 = vmatmul.mubr.f32.gmra.mrb[0].mxu0 %v649
      %v836 = vpop.f32.mrb[0].mxu0
      %v837 = vadd.f32 %v516, %v836
      %v838 = vpop.f32.mrb[0].mxu0
      %839 = vmatprep.mubr.f32.mxu0 0.0
      %840 = vmatmul.mubr.f32.gmra.mrb[0].mxu0 %v652
      %v841 = vpop.f32.mrb[0].mxu0
      %v842 = vadd.f32 %v521, %v841
      %v843 = vpop.f32.mrb[0].mxu0
      %844 = vmatprep.mubr.f32.mxu0 0.0
      %845 = vmatmul.mubr.f32.gmra.mrb[0].mxu0 %v655
      %v846 = vpop.f32.mrb[0].mxu0
      %v847 = vadd.f32 %v526, %v846
      %v848 = vpop.f32.mrb[0].mxu0
      %849 = vmatprep.mubr.f32.mxu0 0.0
      %850 = vmatmul.mubr.f32.gmra.mrb[0].mxu0 %v658
      %v851 = vpop.f32.mrb[0].mxu0
      %v852 = vadd.f32 %v531, %v851
      %v853 = vpop.f32.mrb[0].mxu0
      %854 = vmatprep.mubr.f32.mxu0 0.0
      %855 = vmatmul.mubr.f32.gmra.mrb[0].mxu0 %v661
      %v856 = vpop.f32.mrb[0].mxu0
      %v857 = vadd.f32 %v536, %v856
      %v858 = vpop.f32.mrb[0].mxu0
      %859 = vmatprep.mubr.f32.mxu0 0.0
      %860 = vmatmul.mubr.f32.gmra.mrb[0].mxu0 %v664
      %v861 = vpop.f32.mrb[0].mxu0
      %v862 = vadd.f32 %v541, %v861
      %v863 = vpop.f32.mrb[0].mxu0
      %864 = vmatprep.mubr.f32.mxu0 0.0
      %865 = vmatmul.mubr.f32.gmra.mrb[0].mxu0 %v667
      %v866 = vpop.f32.mrb[0].mxu0
      %v867 = vadd.f32 %v546, %v866
      %v868 = vpop.f32.mrb[0].mxu0
      %869 = vmatprep.mubr.f32.mxu0 0.0
      %870 = vmatmul.mubr.f32.gmra.mrb[0].mxu0 %v670
      %v871 = vpop.f32.mrb[0].mxu0
      %v872 = vadd.f32 %v551, %v871
      %v873 = vpop.f32.mrb[0].mxu0
      %874 = vmatprep.mubr.f32.mxu0 0.0
      %875 = vmatmul.mubr.f32.gmra.mrb[0].mxu0 %v673
      %v876 = vpop.f32.mrb[0].mxu0
      %v877 = vadd.f32 %v556, %v876
      %v878 = vpop.f32.mrb[0].mxu0
      %879 = vmatprep.mubr.f32.mxu0 0.0
      %880 = vmatmul.mubr.f32.gmra.mrb[0].mxu0 %v676
      %v881 = vpop.f32.mrb[0].mxu0
      %v882 = vadd.f32 %v561, %v881
      %v883 = vpop.f32.mrb[0].mxu0
      %884 = vmatprep.mubr.f32.mxu0 0.0
      %885 = vmatmul.mubr.f32.gmra.mrb[0].mxu0 %v679
      %v886 = vpop.f32.mrb[0].mxu0
      %v887 = vadd.f32 %v566, %v886
      %v888 = vpop.f32.mrb[0].mxu0
      %889 = vmatprep.mubr.f32.mxu0 0.0
      %890 = vmatmul.mubr.f32.gmra.mrb[0].mxu0 %v682
      %v891 = vpop.f32.mrb[0].mxu0
      %v892 = vadd.f32 %v571, %v891
      %v893 = vpop.f32.mrb[0].mxu0
      %894 = vmatprep.mubr.f32.mxu0 0.0
      %895 = vmatmul.mubr.f32.gmra.mrb[0].mxu0 %v685
      %v896 = vpop.f32.mrb[0].mxu0
      %v897 = vadd.f32 %v576, %v896
      %v898 = vpop.f32.mrb[0].mxu0
      %899 = vmatprep.mubr.f32.mxu0 0.0
      %900 = vmatmul.mubr.f32.gmra.mrb[0].mxu0 %v688
      %v901 = vpop.f32.mrb[0].mxu0
      %v902 = vadd.f32 %v581, %v901
      %v903 = vpop.f32.mrb[0].mxu0
      %904 = vmatprep.mubr.f32.mxu0 0.0
      %905 = vmatmul.mubr.f32.gmra.mrb[0].mxu0 %v691
      %v906 = vpop.f32.mrb[0].mxu0
      %v907 = vadd.f32 %v586, %v906
      %v908 = vpop.f32.mrb[0].mxu0
      %909 = vmatprep.mubr.f32.mxu0 0.0
      %910 = vmatmul.mubr.f32.gmra.mrb[0].mxu0 %v694
      %v911 = vpop.f32.mrb[0].mxu0
      %v912 = vadd.f32 %v591, %v911
      %v913 = vpop.f32.mrb[0].mxu0
      %914 = vmatprep.mubr.f32.mxu0 0.0
      %915 = vmatmul.mubr.f32.gmra.mrb[0].mxu0 %v697
      %v916 = vpop.f32.mrb[0].mxu0
      %v917 = vadd.f32 %v596, %v916
      %v918 = vpop.f32.mrb[0].mxu0
      %919 = vmatprep.mubr.f32.mxu0 0.0
      %920 = vmatmul.mubr.f32.gmra.mrb[0].mxu0 %v700
      %v921 = vpop.f32.mrb[0].mxu0
      %v922 = vadd.f32 %v601, %v921
      %v923 = vpop.f32.mrb[0].mxu0
      %924 = vmatprep.mubr.f32.mxu0 0.0
      %925 = vmatmul.mubr.f32.gmra.mrb[0].mxu0 %v703
      %v926 = vpop.f32.mrb[0].mxu0
      %v927 = vadd.f32 %v606, %v926
      %v928 = vpop.f32.mrb[0].mxu0
      %929 = vdwg.mxu0
      %v930 = vld [vmem:[%s205 + $0x2] sm:$0xff]
      %v931 = vld [vmem:[%s205 + $0xa] sm:$0xff]
      %v932 = vld [vmem:[%s205 + $0x1a] sm:$0xff]
      %v933 = vld [vmem:[%s205 + $0x22] sm:$0xff]
      %v934 = vld [vmem:[%s205 + $0x32] sm:$0xff]
      %v935 = vld [vmem:[%s205 + $0x3a] sm:$0xff]
      %v936 = vld [vmem:[%s205 + $0x4a] sm:$0xff]
      %v937 = vld [vmem:[%s205 + $0x52] sm:$0xff]
      %v938 = vld [vmem:[%s205 + $0x62] sm:$0xff]
      %v939 = vld [vmem:[%s205 + $0x6a] sm:$0xff]
      %v940 = vld [vmem:[%s205 + $0x7a] sm:$0xff]
      %v941 = vld [vmem:[%s205 + $0x82] sm:$0xff]
      %v942 = vld [vmem:[%s205 + $0x92] sm:$0xff]
      %v943 = vld [vmem:[%s205 + $0x9a] sm:$0xff]
      %v944 = vld [vmem:[%s205 + $0xaa] sm:$0xff]
      %v945 = vld [vmem:[%s205 + $0xb2] sm:$0xff]
      %v946 = vld [vmem:[%s205 + $0xc2] sm:$0xff]
      %v947 = vld [vmem:[%s205 + $0xca] sm:$0xff]
      %v948 = vld [vmem:[%s205 + $0xda] sm:$0xff]
      %v949 = vld [vmem:[%s205 + $0xe2] sm:$0xff]
      %v950 = vld [vmem:[%s205 + $0xf2] sm:$0xff]
      %v951 = vld [vmem:[%s205 + $0xfa] sm:$0xff]
      %v952 = vld [vmem:[%s205 + $0x10a] sm:$0xff]
      %v953 = vld [vmem:[%s205 + $0x112] sm:$0xff]
      %v954 = vld [vmem:[%s205 + $0x122] sm:$0xff]
      %v955 = vld [vmem:[%s205 + $0x12a] sm:$0xff]
      %v956 = vld [vmem:[%s205 + $0x13a] sm:$0xff]
      %v957 = vld [vmem:[%s205 + $0x142] sm:$0xff]
      %v958 = vld [vmem:[%s205 + $0x152] sm:$0xff]
      %v959 = vld [vmem:[%s205 + $0x15a] sm:$0xff]
      %v960 = vld [vmem:[%s205 + $0x16a] sm:$0xff]
      %v961 = vld [vmem:[%s205 + $0x172] sm:$0xff]
      %s962 = scalar_lea.vmem %s1, 16
      %v963 = vld [vmem:[%s962] sm:$0xff]
      %v965 = vsel %vm287, %v930, 0
      %v968 = vsel %vm287, %v931, 0
      %v971 = vsel %vm287, %v932, 0
      %v974 = vsel %vm287, %v933, 0
      %v977 = vsel %vm287, %v934, 0
      %v980 = vsel %vm287, %v935, 0
      %v983 = vsel %vm287, %v936, 0
      %v986 = vsel %vm287, %v937, 0
      %v989 = vsel %vm287, %v938, 0
      %v992 = vsel %vm287, %v939, 0
      %v995 = vsel %vm287, %v940, 0
      %v998 = vsel %vm287, %v941, 0
      %v1001 = vsel %vm287, %v942, 0
      %v1004 = vsel %vm287, %v943, 0
      %v1007 = vsel %vm287, %v944, 0
      %v1010 = vsel %vm287, %v945, 0
      %v1013 = vsel %vm287, %v946, 0
      %v1016 = vsel %vm287, %v947, 0
      %v1019 = vsel %vm287, %v948, 0
      %v1022 = vsel %vm287, %v949, 0
      %v1025 = vsel %vm287, %v950, 0
      %v1028 = vsel %vm287, %v951, 0
      %v1031 = vsel %vm287, %v952, 0
      %v1034 = vsel %vm287, %v953, 0
      %v1037 = vsel %vm287, %v954, 0
      %v1040 = vsel %vm287, %v955, 0
      %v1043 = vsel %vm287, %v956, 0
      %v1046 = vsel %vm287, %v957, 0
      %v1049 = vsel %vm287, %v958, 0
      %v1052 = vsel %vm287, %v959, 0
      %v1055 = vsel %vm287, %v960, 0
      %v1058 = vsel %vm287, %v961, 0
      %1060 = vmatprep.subr.mxu0 0.0
      %1061 = vmatpush1.msra.mxu0 %v963
      %1062 = vmatprep.subr.mxu0 0.0
      %1063 = vmatpush1.msra.mxu0 0.0
      %1064 = vmatprep.subr.mxu0 0.0
      %1065 = vmatpush1.msra.mxu0 0.0
      %1066 = vmatprep.subr.mxu0 0.0
      %1067 = vmatpush1.msra.mxu0 0.0
      %1068 = vmatprep.subr.mxu0 0.0
      %1069 = vmatpush1.msra.mxu0 0.0
      %1070 = vmatprep.subr.mxu0 0.0
      %1071 = vmatpush1.msra.mxu0 0.0
      %1072 = vmatprep.subr.mxu0 0.0
      %1073 = vmatpush1.msra.mxu0 0.0
      %1074 = vmatprep.subr.mxu0 0.0
      %1075 = vmatpush1.msra.mxu0 0.0
      %1076 = vmatprep.subr.mxu0 0.0
      %1077 = vmatpush1.msra.mxu0 0.0
      %1078 = vmatprep.subr.mxu0 0.0
      %1079 = vmatpush1.msra.mxu0 0.0
      %1080 = vmatprep.subr.mxu0 0.0
      %1081 = vmatpush1.msra.mxu0 0.0
      %1082 = vmatprep.subr.mxu0 0.0
      %1083 = vmatpush1.msra.mxu0 0.0
      %1084 = vmatprep.subr.mxu0 0.0
      %1085 = vmatpush1.msra.mxu0 0.0
      %1086 = vmatprep.subr.mxu0 0.0
      %1087 = vmatpush1.msra.mxu0 0.0
      %1088 = vmatprep.subr.mxu0 0.0
      %1089 = vmatpush1.msra.mxu0 0.0
      %1090 = vmatprep.subr.mxu0 0.0
      %1091 = vmatpush1.msra.mxu0 0.0
      %1092 = vmatprep.subr.mxu0 0.0
      %1093 = vmatpush1.msra.mxu0 0.0
      %1094 = vmatprep.subr.mxu0 0.0
      %1095 = vmatpush1.msra.mxu0 0.0
      %1096 = vmatprep.subr.mxu0 0.0
      %1097 = vmatpush1.msra.mxu0 0.0
      %1098 = vmatprep.subr.mxu0 0.0
      %1099 = vmatpush1.msra.mxu0 0.0
      %1100 = vmatprep.subr.mxu0 0.0
      %1101 = vmatpush1.msra.mxu0 0.0
      %1102 = vmatprep.subr.mxu0 0.0
      %1103 = vmatpush1.msra.mxu0 0.0
      %1104 = vmatprep.subr.mxu0 0.0
      %1105 = vmatpush1.msra.mxu0 0.0
      %1106 = vmatprep.subr.mxu0 0.0
      %1107 = vmatpush1.msra.mxu0 0.0
      %1108 = vmatprep.subr.mxu0 0.0
      %1109 = vmatpush1.msra.mxu0 0.0
      %1110 = vmatprep.subr.mxu0 0.0
      %1111 = vmatpush1.msra.mxu0 0.0
      %1112 = vmatprep.subr.mxu0 0.0
      %1113 = vmatpush1.msra.mxu0 0.0
      %1114 = vmatprep.subr.mxu0 0.0
      %1115 = vmatpush1.msra.mxu0 0.0
      %1116 = vmatprep.subr.mxu0 0.0
      %1117 = vmatpush1.msra.mxu0 0.0
      %1118 = vmatprep.subr.mxu0 0.0
      %1119 = vmatpush1.msra.mxu0 0.0
      %1120 = vmatprep.subr.mxu0 0.0
      %1121 = vmatpush1.msra.mxu0 0.0
      %1122 = vmatprep.subr.mxu0 0.0
      %1123 = vmatpush1.msra.mxu0 0.0
      %1124 = vmatprep.mubr.f32.mxu0 0.0
      %1125 = vmatmul.mubr.f32.gmra.mrb[0].mxu0 %v965
      %v1126 = vpop.f32.mrb[0].mxu0
      %v1127 = vadd.f32 0.0, %v1126
      %v1128 = vpop.f32.mrb[0].mxu0
      %1129 = vmatprep.mubr.f32.mxu0 0.0
      %1130 = vmatmul.mubr.f32.gmra.mrb[0].mxu0 %v968
      %v1131 = vpop.f32.mrb[0].mxu0
      %v1132 = vadd.f32 0.0, %v1131
      %v1133 = vpop.f32.mrb[0].mxu0
      %1134 = vmatprep.mubr.f32.mxu0 0.0
      %1135 = vmatmul.mubr.f32.gmra.mrb[0].mxu0 %v971
      %v1136 = vpop.f32.mrb[0].mxu0
      %v1137 = vadd.f32 0.0, %v1136
      %v1138 = vpop.f32.mrb[0].mxu0
      %1139 = vmatprep.mubr.f32.mxu0 0.0
      %1140 = vmatmul.mubr.f32.gmra.mrb[0].mxu0 %v974
      %v1141 = vpop.f32.mrb[0].mxu0
      %v1142 = vadd.f32 0.0, %v1141
      %v1143 = vpop.f32.mrb[0].mxu0
      %1144 = vmatprep.mubr.f32.mxu0 0.0
      %1145 = vmatmul.mubr.f32.gmra.mrb[0].mxu0 %v977
      %v1146 = vpop.f32.mrb[0].mxu0
      %v1147 = vadd.f32 0.0, %v1146
      %v1148 = vpop.f32.mrb[0].mxu0
      %1149 = vmatprep.mubr.f32.mxu0 0.0
      %1150 = vmatmul.mubr.f32.gmra.mrb[0].mxu0 %v980
      %v1151 = vpop.f32.mrb[0].mxu0
      %v1152 = vadd.f32 0.0, %v1151
      %v1153 = vpop.f32.mrb[0].mxu0
      %1154 = vmatprep.mubr.f32.mxu0 0.0
      %1155 = vmatmul.mubr.f32.gmra.mrb[0].mxu0 %v983
      %v1156 = vpop.f32.mrb[0].mxu0
      %v1157 = vadd.f32 0.0, %v1156
      %v1158 = vpop.f32.mrb[0].mxu0
      %1159 = vmatprep.mubr.f32.mxu0 0.0
      %1160 = vmatmul.mubr.f32.gmra.mrb[0].mxu0 %v986
      %v1161 = vpop.f32.mrb[0].mxu0
      %v1162 = vadd.f32 0.0, %v1161
      %v1163 = vpop.f32.mrb[0].mxu0
      %1164 = vmatprep.mubr.f32.mxu0 0.0
      %1165 = vmatmul.mubr.f32.gmra.mrb[0].mxu0 %v989
      %v1166 = vpop.f32.mrb[0].mxu0
      %v1167 = vadd.f32 0.0, %v1166
      %v1168 = vpop.f32.mrb[0].mxu0
      %1169 = vmatprep.mubr.f32.mxu0 0.0
      %1170 = vmatmul.mubr.f32.gmra.mrb[0].mxu0 %v992
      %v1171 = vpop.f32.mrb[0].mxu0
      %v1172 = vadd.f32 0.0, %v1171
      %v1173 = vpop.f32.mrb[0].mxu0
      %1174 = vmatprep.mubr.f32.mxu0 0.0
      %1175 = vmatmul.mubr.f32.gmra.mrb[0].mxu0 %v995
      %v1176 = vpop.f32.mrb[0].mxu0
      %v1177 = vadd.f32 0.0, %v1176
      %v1178 = vpop.f32.mrb[0].mxu0
      %1179 = vmatprep.mubr.f32.mxu0 0.0
      %1180 = vmatmul.mubr.f32.gmra.mrb[0].mxu0 %v998
      %v1181 = vpop.f32.mrb[0].mxu0
      %v1182 = vadd.f32 0.0, %v1181
      %v1183 = vpop.f32.mrb[0].mxu0
      %1184 = vmatprep.mubr.f32.mxu0 0.0
      %1185 = vmatmul.mubr.f32.gmra.mrb[0].mxu0 %v1001
      %v1186 = vpop.f32.mrb[0].mxu0
      %v1187 = vadd.f32 0.0, %v1186
      %v1188 = vpop.f32.mrb[0].mxu0
      %1189 = vmatprep.mubr.f32.mxu0 0.0
      %1190 = vmatmul.mubr.f32.gmra.mrb[0].mxu0 %v1004
      %v1191 = vpop.f32.mrb[0].mxu0
      %v1192 = vadd.f32 0.0, %v1191
      %v1193 = vpop.f32.mrb[0].mxu0
      %1194 = vmatprep.mubr.f32.mxu0 0.0
      %1195 = vmatmul.mubr.f32.gmra.mrb[0].mxu0 %v1007
      %v1196 = vpop.f32.mrb[0].mxu0
      %v1197 = vadd.f32 0.0, %v1196
      %v1198 = vpop.f32.mrb[0].mxu0
      %1199 = vmatprep.mubr.f32.mxu0 0.0
      %1200 = vmatmul.mubr.f32.gmra.mrb[0].mxu0 %v1010
      %v1201 = vpop.f32.mrb[0].mxu0
      %v1202 = vadd.f32 0.0, %v1201
      %v1203 = vpop.f32.mrb[0].mxu0
      %1204 = vmatprep.mubr.f32.mxu0 0.0
      %1205 = vmatmul.mubr.f32.gmra.mrb[0].mxu0 %v1013
      %v1206 = vpop.f32.mrb[0].mxu0
      %v1207 = vadd.f32 0.0, %v1206
      %v1208 = vpop.f32.mrb[0].mxu0
      %1209 = vmatprep.mubr.f32.mxu0 0.0
      %1210 = vmatmul.mubr.f32.gmra.mrb[0].mxu0 %v1016
      %v1211 = vpop.f32.mrb[0].mxu0
      %v1212 = vadd.f32 0.0, %v1211
      %v1213 = vpop.f32.mrb[0].mxu0
      %1214 = vmatprep.mubr.f32.mxu0 0.0
      %1215 = vmatmul.mubr.f32.gmra.mrb[0].mxu0 %v1019
      %v1216 = vpop.f32.mrb[0].mxu0
      %v1217 = vadd.f32 0.0, %v1216
      %v1218 = vpop.f32.mrb[0].mxu0
      %1219 = vmatprep.mubr.f32.mxu0 0.0
      %1220 = vmatmul.mubr.f32.gmra.mrb[0].mxu0 %v1022
      %v1221 = vpop.f32.mrb[0].mxu0
      %v1222 = vadd.f32 0.0, %v1221
      %v1223 = vpop.f32.mrb[0].mxu0
      %1224 = vmatprep.mubr.f32.mxu0 0.0
      %1225 = vmatmul.mubr.f32.gmra.mrb[0].mxu0 %v1025
      %v1226 = vpop.f32.mrb[0].mxu0
      %v1227 = vadd.f32 0.0, %v1226
      %v1228 = vpop.f32.mrb[0].mxu0
      %1229 = vmatprep.mubr.f32.mxu0 0.0
      %1230 = vmatmul.mubr.f32.gmra.mrb[0].mxu0 %v1028
      %v1231 = vpop.f32.mrb[0].mxu0
      %v1232 = vadd.f32 0.0, %v1231
      %v1233 = vpop.f32.mrb[0].mxu0
      %1234 = vmatprep.mubr.f32.mxu0 0.0
      %1235 = vmatmul.mubr.f32.gmra.mrb[0].mxu0 %v1031
      %v1236 = vpop.f32.mrb[0].mxu0
      %v1237 = vadd.f32 0.0, %v1236
      %v1238 = vpop.f32.mrb[0].mxu0
      %1239 = vmatprep.mubr.f32.mxu0 0.0
      %1240 = vmatmul.mubr.f32.gmra.mrb[0].mxu0 %v1034
      %v1241 = vpop.f32.mrb[0].mxu0
      %v1242 = vadd.f32 0.0, %v1241
      %v1243 = vpop.f32.mrb[0].mxu0
      %1244 = vmatprep.mubr.f32.mxu0 0.0
      %1245 = vmatmul.mubr.f32.gmra.mrb[0].mxu0 %v1037
      %v1246 = vpop.f32.mrb[0].mxu0
      %v1247 = vadd.f32 0.0, %v1246
      %v1248 = vpop.f32.mrb[0].mxu0
      %1249 = vmatprep.mubr.f32.mxu0 0.0
      %1250 = vmatmul.mubr.f32.gmra.mrb[0].mxu0 %v1040
      %v1251 = vpop.f32.mrb[0].mxu0
      %v1252 = vadd.f32 0.0, %v1251
      %v1253 = vpop.f32.mrb[0].mxu0
      %1254 = vmatprep.mubr.f32.mxu0 0.0
      %1255 = vmatmul.mubr.f32.gmra.mrb[0].mxu0 %v1043
      %v1256 = vpop.f32.mrb[0].mxu0
      %v1257 = vadd.f32 0.0, %v1256
      %v1258 = vpop.f32.mrb[0].mxu0
      %1259 = vmatprep.mubr.f32.mxu0 0.0
      %1260 = vmatmul.mubr.f32.gmra.mrb[0].mxu0 %v1046
      %v1261 = vpop.f32.mrb[0].mxu0
      %v1262 = vadd.f32 0.0, %v1261
      %v1263 = vpop.f32.mrb[0].mxu0
      %1264 = vmatprep.mubr.f32.mxu0 0.0
      %1265 = vmatmul.mubr.f32.gmra.mrb[0].mxu0 %v1049
      %v1266 = vpop.f32.mrb[0].mxu0
      %v1267 = vadd.f32 0.0, %v1266
      %v1268 = vpop.f32.mrb[0].mxu0
      %1269 = vmatprep.mubr.f32.mxu0 0.0
      %1270 = vmatmul.mubr.f32.gmra.mrb[0].mxu0 %v1052
      %v1271 = vpop.f32.mrb[0].mxu0
      %v1272 = vadd.f32 0.0, %v1271
      %v1273 = vpop.f32.mrb[0].mxu0
      %1274 = vmatprep.mubr.f32.mxu0 0.0
      %1275 = vmatmul.mubr.f32.gmra.mrb[0].mxu0 %v1055
      %v1276 = vpop.f32.mrb[0].mxu0
      %v1277 = vadd.f32 0.0, %v1276
      %v1278 = vpop.f32.mrb[0].mxu0
      %1279 = vmatprep.mubr.f32.mxu0 0.0
      %1280 = vmatmul.mubr.f32.gmra.mrb[0].mxu0 %v1058
      %v1281 = vpop.f32.mrb[0].mxu0
      %v1282 = vadd.f32 0.0, %v1281
      %v1283 = vpop.f32.mrb[0].mxu0
      %1284 = vdwg.mxu0
      %v1285 = vadd.f32 %v772, %v1127
      %v1286 = vadd.f32 %v777, %v1132
      %v1287 = vadd.f32 %v782, %v1137
      %v1288 = vadd.f32 %v787, %v1142
      %v1289 = vadd.f32 %v792, %v1147
      %v1290 = vadd.f32 %v797, %v1152
      %v1291 = vadd.f32 %v802, %v1157
      %v1292 = vadd.f32 %v807, %v1162
      %v1293 = vadd.f32 %v812, %v1167
      %v1294 = vadd.f32 %v817, %v1172
      %v1295 = vadd.f32 %v822, %v1177
      %v1296 = vadd.f32 %v827, %v1182
      %v1297 = vadd.f32 %v832, %v1187
      %v1298 = vadd.f32 %v837, %v1192
      %v1299 = vadd.f32 %v842, %v1197
      %v1300 = vadd.f32 %v847, %v1202
      %v1301 = vadd.f32 %v852, %v1207
      %v1302 = vadd.f32 %v857, %v1212
      %v1303 = vadd.f32 %v862, %v1217
      %v1304 = vadd.f32 %v867, %v1222
      %v1305 = vadd.f32 %v872, %v1227
      %v1306 = vadd.f32 %v877, %v1232
      %v1307 = vadd.f32 %v882, %v1237
      %v1308 = vadd.f32 %v887, %v1242
      %v1309 = vadd.f32 %v892, %v1247
      %v1310 = vadd.f32 %v897, %v1252
      %v1311 = vadd.f32 %v902, %v1257
      %v1312 = vadd.f32 %v907, %v1262
      %v1313 = vadd.f32 %v912, %v1267
      %v1314 = vadd.f32 %v917, %v1272
      %v1315 = vadd.f32 %v922, %v1277
      %v1316 = vadd.f32 %v927, %v1282
      %s1317 = scalar_lea.vmem %s205, 24
      %v1318 = vld [vmem:[%s1317] sm:$0xff]
      %v1319 = vld [vmem:[%s1317 + $0x8] sm:$0xff]
      %v1320 = vld [vmem:[%s1317 + $0x18] sm:$0xff]
      %v1321 = vld [vmem:[%s1317 + $0x20] sm:$0xff]
      %v1322 = vld [vmem:[%s1317 + $0x30] sm:$0xff]
      %v1323 = vld [vmem:[%s1317 + $0x38] sm:$0xff]
      %v1324 = vld [vmem:[%s1317 + $0x48] sm:$0xff]
      %v1325 = vld [vmem:[%s1317 + $0x50] sm:$0xff]
      %v1326 = vld [vmem:[%s1317 + $0x60] sm:$0xff]
      %v1327 = vld [vmem:[%s1317 + $0x68] sm:$0xff]
      %v1328 = vld [vmem:[%s1317 + $0x78] sm:$0xff]
      %v1329 = vld [vmem:[%s1317 + $0x80] sm:$0xff]
      %v1330 = vld [vmem:[%s1317 + $0x90] sm:$0xff]
      %v1331 = vld [vmem:[%s1317 + $0x98] sm:$0xff]
      %v1332 = vld [vmem:[%s1317 + $0xa8] sm:$0xff]
      %v1333 = vld [vmem:[%s1317 + $0xb0] sm:$0xff]
      %v1334 = vld [vmem:[%s1317 + $0xc0] sm:$0xff]
      %v1335 = vld [vmem:[%s1317 + $0xc8] sm:$0xff]
      %v1336 = vld [vmem:[%s1317 + $0xd8] sm:$0xff]
      %v1337 = vld [vmem:[%s1317 + $0xe0] sm:$0xff]
      %v1338 = vld [vmem:[%s1317 + $0xf0] sm:$0xff]
      %v1339 = vld [vmem:[%s1317 + $0xf8] sm:$0xff]
      %v1340 = vld [vmem:[%s1317 + $0x108] sm:$0xff]
      %v1341 = vld [vmem:[%s1317 + $0x110] sm:$0xff]
      %v1342 = vld [vmem:[%s1317 + $0x120] sm:$0xff]
      %v1343 = vld [vmem:[%s1317 + $0x128] sm:$0xff]
      %v1344 = vld [vmem:[%s1317 + $0x138] sm:$0xff]
      %v1345 = vld [vmem:[%s1317 + $0x140] sm:$0xff]
      %v1346 = vld [vmem:[%s1317 + $0x150] sm:$0xff]
      %v1347 = vld [vmem:[%s1317 + $0x158] sm:$0xff]
      %v1348 = vld [vmem:[%s1317 + $0x168] sm:$0xff]
      %v1349 = vld [vmem:[%s1317 + $0x170] sm:$0xff]
      %s1350 = scalar_lea.vmem %s1, 24
      %v1351 = vld [vmem:[%s1350] sm:$0xff]
      %v1353 = vsel %vm287, %v1318, 0
      %v1356 = vsel %vm287, %v1319, 0
      %v1359 = vsel %vm287, %v1320, 0
      %v1362 = vsel %vm287, %v1321, 0
      %v1365 = vsel %vm287, %v1322, 0
      %v1368 = vsel %vm287, %v1323, 0
      %v1371 = vsel %vm287, %v1324, 0
      %v1374 = vsel %vm287, %v1325, 0
      %v1377 = vsel %vm287, %v1326, 0
      %v1380 = vsel %vm287, %v1327, 0
      %v1383 = vsel %vm287, %v1328, 0
      %v1386 = vsel %vm287, %v1329, 0
      %v1389 = vsel %vm287, %v1330, 0
      %v1392 = vsel %vm287, %v1331, 0
      %v1395 = vsel %vm287, %v1332, 0
      %v1398 = vsel %vm287, %v1333, 0
      %v1401 = vsel %vm287, %v1334, 0
      %v1404 = vsel %vm287, %v1335, 0
      %v1407 = vsel %vm287, %v1336, 0
      %v1410 = vsel %vm287, %v1337, 0
      %v1413 = vsel %vm287, %v1338, 0
      %v1416 = vsel %vm287, %v1339, 0
      %v1419 = vsel %vm287, %v1340, 0
      %v1422 = vsel %vm287, %v1341, 0
      %v1425 = vsel %vm287, %v1342, 0
      %v1428 = vsel %vm287, %v1343, 0
      %v1431 = vsel %vm287, %v1344, 0
      %v1434 = vsel %vm287, %v1345, 0
      %v1437 = vsel %vm287, %v1346, 0
      %v1440 = vsel %vm287, %v1347, 0
      %v1443 = vsel %vm287, %v1348, 0
      %v1446 = vsel %vm287, %v1349, 0
      %1448 = vmatprep.subr.mxu0 0.0
      %1449 = vmatpush1.msra.mxu0 %v1351
      %1450 = vmatprep.subr.mxu0 0.0
      %1451 = vmatpush1.msra.mxu0 0.0
      %1452 = vmatprep.subr.mxu0 0.0
      %1453 = vmatpush1.msra.mxu0 0.0
      %1454 = vmatprep.subr.mxu0 0.0
      %1455 = vmatpush1.msra.mxu0 0.0
      %1456 = vmatprep.subr.mxu0 0.0
      %1457 = vmatpush1.msra.mxu0 0.0
      %1458 = vmatprep.subr.mxu0 0.0
      %1459 = vmatpush1.msra.mxu0 0.0
      %1460 = vmatprep.subr.mxu0 0.0
      %1461 = vmatpush1.msra.mxu0 0.0
      %1462 = vmatprep.subr.mxu0 0.0
      %1463 = vmatpush1.msra.mxu0 0.0
      %1464 = vmatprep.subr.mxu0 0.0
      %1465 = vmatpush1.msra.mxu0 0.0
      %1466 = vmatprep.subr.mxu0 0.0
      %1467 = vmatpush1.msra.mxu0 0.0
      %1468 = vmatprep.subr.mxu0 0.0
      %1469 = vmatpush1.msra.mxu0 0.0
      %1470 = vmatprep.subr.mxu0 0.0
      %1471 = vmatpush1.msra.mxu0 0.0
      %1472 = vmatprep.subr.mxu0 0.0
      %1473 = vmatpush1.msra.mxu0 0.0
      %1474 = vmatprep.subr.mxu0 0.0
      %1475 = vmatpush1.msra.mxu0 0.0
      %1476 = vmatprep.subr.mxu0 0.0
      %1477 = vmatpush1.msra.mxu0 0.0
      %1478 = vmatprep.subr.mxu0 0.0
      %1479 = vmatpush1.msra.mxu0 0.0
      %1480 = vmatprep.subr.mxu0 0.0
      %1481 = vmatpush1.msra.mxu0 0.0
      %1482 = vmatprep.subr.mxu0 0.0
      %1483 = vmatpush1.msra.mxu0 0.0
      %1484 = vmatprep.subr.mxu0 0.0
      %1485 = vmatpush1.msra.mxu0 0.0
      %1486 = vmatprep.subr.mxu0 0.0
      %1487 = vmatpush1.msra.mxu0 0.0
      %1488 = vmatprep.subr.mxu0 0.0
      %1489 = vmatpush1.msra.mxu0 0.0
      %1490 = vmatprep.subr.mxu0 0.0
      %1491 = vmatpush1.msra.mxu0 0.0
      %1492 = vmatprep.subr.mxu0 0.0
      %1493 = vmatpush1.msra.mxu0 0.0
      %1494 = vmatprep.subr.mxu0 0.0
      %1495 = vmatpush1.msra.mxu0 0.0
      %1496 = vmatprep.subr.mxu0 0.0
      %1497 = vmatpush1.msra.mxu0 0.0
      %1498 = vmatprep.subr.mxu0 0.0
      %1499 = vmatpush1.msra.mxu0 0.0
      %1500 = vmatprep.subr.mxu0 0.0
      %1501 = vmatpush1.msra.mxu0 0.0
      %1502 = vmatprep.subr.mxu0 0.0
      %1503 = vmatpush1.msra.mxu0 0.0
      %1504 = vmatprep.subr.mxu0 0.0
      %1505 = vmatpush1.msra.mxu0 0.0
      %1506 = vmatprep.subr.mxu0 0.0
      %1507 = vmatpush1.msra.mxu0 0.0
      %1508 = vmatprep.subr.mxu0 0.0
      %1509 = vmatpush1.msra.mxu0 0.0
      %1510 = vmatprep.subr.mxu0 0.0
      %1511 = vmatpush1.msra.mxu0 0.0
      %1512 = vmatprep.mubr.f32.mxu0 0.0
      %1513 = vmatmul.mubr.f32.gmra.mrb[0].mxu0 %v1353
      %v1514 = vpop.f32.mrb[0].mxu0
      %v1515 = vadd.f32 0.0, %v1514
      %v1516 = vpop.f32.mrb[0].mxu0
      %1517 = vmatprep.mubr.f32.mxu0 0.0
      %1518 = vmatmul.mubr.f32.gmra.mrb[0].mxu0 %v1356
      %v1519 = vpop.f32.mrb[0].mxu0
      %v1520 = vadd.f32 0.0, %v1519
      %v1521 = vpop.f32.mrb[0].mxu0
      %1522 = vmatprep.mubr.f32.mxu0 0.0
      %1523 = vmatmul.mubr.f32.gmra.mrb[0].mxu0 %v1359
      %v1524 = vpop.f32.mrb[0].mxu0
      %v1525 = vadd.f32 0.0, %v1524
      %v1526 = vpop.f32.mrb[0].mxu0
      %1527 = vmatprep.mubr.f32.mxu0 0.0
      %1528 = vmatmul.mubr.f32.gmra.mrb[0].mxu0 %v1362
      %v1529 = vpop.f32.mrb[0].mxu0
      %v1530 = vadd.f32 0.0, %v1529
      %v1531 = vpop.f32.mrb[0].mxu0
      %1532 = vmatprep.mubr.f32.mxu0 0.0
      %1533 = vmatmul.mubr.f32.gmra.mrb[0].mxu0 %v1365
      %v1534 = vpop.f32.mrb[0].mxu0
      %v1535 = vadd.f32 0.0, %v1534
      %v1536 = vpop.f32.mrb[0].mxu0
      %1537 = vmatprep.mubr.f32.mxu0 0.0
      %1538 = vmatmul.mubr.f32.gmra.mrb[0].mxu0 %v1368
      %v1539 = vpop.f32.mrb[0].mxu0
      %v1540 = vadd.f32 0.0, %v1539
      %v1541 = vpop.f32.mrb[0].mxu0
      %1542 = vmatprep.mubr.f32.mxu0 0.0
      %1543 = vmatmul.mubr.f32.gmra.mrb[0].mxu0 %v1371
      %v1544 = vpop.f32.mrb[0].mxu0
      %v1545 = vadd.f32 0.0, %v1544
      %v1546 = vpop.f32.mrb[0].mxu0
      %1547 = vmatprep.mubr.f32.mxu0 0.0
      %1548 = vmatmul.mubr.f32.gmra.mrb[0].mxu0 %v1374
      %v1549 = vpop.f32.mrb[0].mxu0
      %v1550 = vadd.f32 0.0, %v1549
      %v1551 = vpop.f32.mrb[0].mxu0
      %1552 = vmatprep.mubr.f32.mxu0 0.0
      %1553 = vmatmul.mubr.f32.gmra.mrb[0].mxu0 %v1377
      %v1554 = vpop.f32.mrb[0].mxu0
      %v1555 = vadd.f32 0.0, %v1554
      %v1556 = vpop.f32.mrb[0].mxu0
      %1557 = vmatprep.mubr.f32.mxu0 0.0
      %1558 = vmatmul.mubr.f32.gmra.mrb[0].mxu0 %v1380
      %v1559 = vpop.f32.mrb[0].mxu0
      %v1560 = vadd.f32 0.0, %v1559
      %v1561 = vpop.f32.mrb[0].mxu0
      %1562 = vmatprep.mubr.f32.mxu0 0.0
      %1563 = vmatmul.mubr.f32.gmra.mrb[0].mxu0 %v1383
      %v1564 = vpop.f32.mrb[0].mxu0
      %v1565 = vadd.f32 0.0, %v1564
      %v1566 = vpop.f32.mrb[0].mxu0
      %1567 = vmatprep.mubr.f32.mxu0 0.0
      %1568 = vmatmul.mubr.f32.gmra.mrb[0].mxu0 %v1386
      %v1569 = vpop.f32.mrb[0].mxu0
      %v1570 = vadd.f32 0.0, %v1569
      %v1571 = vpop.f32.mrb[0].mxu0
      %1572 = vmatprep.mubr.f32.mxu0 0.0
      %1573 = vmatmul.mubr.f32.gmra.mrb[0].mxu0 %v1389
      %v1574 = vpop.f32.mrb[0].mxu0
      %v1575 = vadd.f32 0.0, %v1574
      %v1576 = vpop.f32.mrb[0].mxu0
      %1577 = vmatprep.mubr.f32.mxu0 0.0
      %1578 = vmatmul.mubr.f32.gmra.mrb[0].mxu0 %v1392
      %v1579 = vpop.f32.mrb[0].mxu0
      %v1580 = vadd.f32 0.0, %v1579
      %v1581 = vpop.f32.mrb[0].mxu0
      %1582 = vmatprep.mubr.f32.mxu0 0.0
      %1583 = vmatmul.mubr.f32.gmra.mrb[0].mxu0 %v1395
      %v1584 = vpop.f32.mrb[0].mxu0
      %v1585 = vadd.f32 0.0, %v1584
      %v1586 = vpop.f32.mrb[0].mxu0
      %1587 = vmatprep.mubr.f32.mxu0 0.0
      %1588 = vmatmul.mubr.f32.gmra.mrb[0].mxu0 %v1398
      %v1589 = vpop.f32.mrb[0].mxu0
      %v1590 = vadd.f32 0.0, %v1589
      %v1591 = vpop.f32.mrb[0].mxu0
      %1592 = vmatprep.mubr.f32.mxu0 0.0
      %1593 = vmatmul.mubr.f32.gmra.mrb[0].mxu0 %v1401
      %v1594 = vpop.f32.mrb[0].mxu0
      %v1595 = vadd.f32 0.0, %v1594
      %v1596 = vpop.f32.mrb[0].mxu0
      %1597 = vmatprep.mubr.f32.mxu0 0.0
      %1598 = vmatmul.mubr.f32.gmra.mrb[0].mxu0 %v1404
      %v1599 = vpop.f32.mrb[0].mxu0
      %v1600 = vadd.f32 0.0, %v1599
      %v1601 = vpop.f32.mrb[0].mxu0
      %1602 = vmatprep.mubr.f32.mxu0 0.0
      %1603 = vmatmul.mubr.f32.gmra.mrb[0].mxu0 %v1407
      %v1604 = vpop.f32.mrb[0].mxu0
      %v1605 = vadd.f32 0.0, %v1604
      %v1606 = vpop.f32.mrb[0].mxu0
      %1607 = vmatprep.mubr.f32.mxu0 0.0
      %1608 = vmatmul.mubr.f32.gmra.mrb[0].mxu0 %v1410
      %v1609 = vpop.f32.mrb[0].mxu0
      %v1610 = vadd.f32 0.0, %v1609
      %v1611 = vpop.f32.mrb[0].mxu0
      %1612 = vmatprep.mubr.f32.mxu0 0.0
      %1613 = vmatmul.mubr.f32.gmra.mrb[0].mxu0 %v1413
      %v1614 = vpop.f32.mrb[0].mxu0
      %v1615 = vadd.f32 0.0, %v1614
      %v1616 = vpop.f32.mrb[0].mxu0
      %1617 = vmatprep.mubr.f32.mxu0 0.0
      %1618 = vmatmul.mubr.f32.gmra.mrb[0].mxu0 %v1416
      %v1619 = vpop.f32.mrb[0].mxu0
      %v1620 = vadd.f32 0.0, %v1619
      %v1621 = vpop.f32.mrb[0].mxu0
      %1622 = vmatprep.mubr.f32.mxu0 0.0
      %1623 = vmatmul.mubr.f32.gmra.mrb[0].mxu0 %v1419
      %v1624 = vpop.f32.mrb[0].mxu0
      %v1625 = vadd.f32 0.0, %v1624
      %v1626 = vpop.f32.mrb[0].mxu0
      %1627 = vmatprep.mubr.f32.mxu0 0.0
      %1628 = vmatmul.mubr.f32.gmra.mrb[0].mxu0 %v1422
      %v1629 = vpop.f32.mrb[0].mxu0
      %v1630 = vadd.f32 0.0, %v1629
      %v1631 = vpop.f32.mrb[0].mxu0
      %1632 = vmatprep.mubr.f32.mxu0 0.0
      %1633 = vmatmul.mubr.f32.gmra.mrb[0].mxu0 %v1425
      %v1634 = vpop.f32.mrb[0].mxu0
      %v1635 = vadd.f32 0.0, %v1634
      %v1636 = vpop.f32.mrb[0].mxu0
      %1637 = vmatprep.mubr.f32.mxu0 0.0
      %1638 = vmatmul.mubr.f32.gmra.mrb[0].mxu0 %v1428
      %v1639 = vpop.f32.mrb[0].mxu0
      %v1640 = vadd.f32 0.0, %v1639
      %v1641 = vpop.f32.mrb[0].mxu0
      %1642 = vmatprep.mubr.f32.mxu0 0.0
      %1643 = vmatmul.mubr.f32.gmra.mrb[0].mxu0 %v1431
      %v1644 = vpop.f32.mrb[0].mxu0
      %v1645 = vadd.f32 0.0, %v1644
      %v1646 = vpop.f32.mrb[0].mxu0
      %1647 = vmatprep.mubr.f32.mxu0 0.0
      %1648 = vmatmul.mubr.f32.gmra.mrb[0].mxu0 %v1434
      %v1649 = vpop.f32.mrb[0].mxu0
      %v1650 = vadd.f32 0.0, %v1649
      %v1651 = vpop.f32.mrb[0].mxu0
      %1652 = vmatprep.mubr.f32.mxu0 0.0
      %1653 = vmatmul.mubr.f32.gmra.mrb[0].mxu0 %v1437
      %v1654 = vpop.f32.mrb[0].mxu0
      %v1655 = vadd.f32 0.0, %v1654
      %v1656 = vpop.f32.mrb[0].mxu0
      %1657 = vmatprep.mubr.f32.mxu0 0.0
      %1658 = vmatmul.mubr.f32.gmra.mrb[0].mxu0 %v1440
      %v1659 = vpop.f32.mrb[0].mxu0
      %v1660 = vadd.f32 0.0, %v1659
      %v1661 = vpop.f32.mrb[0].mxu0
      %1662 = vmatprep.mubr.f32.mxu0 0.0
      %1663 = vmatmul.mubr.f32.gmra.mrb[0].mxu0 %v1443
      %v1664 = vpop.f32.mrb[0].mxu0
      %v1665 = vadd.f32 0.0, %v1664
      %v1666 = vpop.f32.mrb[0].mxu0
      %1667 = vmatprep.mubr.f32.mxu0 0.0
      %1668 = vmatmul.mubr.f32.gmra.mrb[0].mxu0 %v1446
      %v1669 = vpop.f32.mrb[0].mxu0
      %v1670 = vadd.f32 0.0, %v1669
      %v1671 = vpop.f32.mrb[0].mxu0
      %1672 = vdwg.mxu0
      %v1673 = vadd.f32 %v1285, %v1515
      %v1674 = vadd.f32 %v1286, %v1520
      %v1675 = vadd.f32 %v1287, %v1525
      %v1676 = vadd.f32 %v1288, %v1530
      %v1677 = vadd.f32 %v1289, %v1535
      %v1678 = vadd.f32 %v1290, %v1540
      %v1679 = vadd.f32 %v1291, %v1545
      %v1680 = vadd.f32 %v1292, %v1550
      %v1681 = vadd.f32 %v1293, %v1555
      %v1682 = vadd.f32 %v1294, %v1560
      %v1683 = vadd.f32 %v1295, %v1565
      %v1684 = vadd.f32 %v1296, %v1570
      %v1685 = vadd.f32 %v1297, %v1575
      %v1686 = vadd.f32 %v1298, %v1580
      %v1687 = vadd.f32 %v1299, %v1585
      %v1688 = vadd.f32 %v1300, %v1590
      %v1689 = vadd.f32 %v1301, %v1595
      %v1690 = vadd.f32 %v1302, %v1600
      %v1691 = vadd.f32 %v1303, %v1605
      %v1692 = vadd.f32 %v1304, %v1610
      %v1693 = vadd.f32 %v1305, %v1615
      %v1694 = vadd.f32 %v1306, %v1620
      %v1695 = vadd.f32 %v1307, %v1625
      %v1696 = vadd.f32 %v1308, %v1630
      %v1697 = vadd.f32 %v1309, %v1635
      %v1698 = vadd.f32 %v1310, %v1640
      %v1699 = vadd.f32 %v1311, %v1645
      %v1700 = vadd.f32 %v1312, %v1650
      %v1701 = vadd.f32 %v1313, %v1655
      %v1702 = vadd.f32 %v1314, %v1660
      %v1703 = vadd.f32 %v1315, %v1665
      %v1704 = vadd.f32 %v1316, %v1670
      %v1705 = vld [vmem:[%s1317 + $0x1] sm:$0xff]
      %v1706 = vld [vmem:[%s1317 + $0x9] sm:$0xff]
      %v1707 = vld [vmem:[%s1317 + $0x19] sm:$0xff]
      %v1708 = vld [vmem:[%s1317 + $0x21] sm:$0xff]
      %v1709 = vld [vmem:[%s1317 + $0x31] sm:$0xff]
      %v1710 = vld [vmem:[%s1317 + $0x39] sm:$0xff]
      %v1711 = vld [vmem:[%s1317 + $0x49] sm:$0xff]
      %v1712 = vld [vmem:[%s1317 + $0x51] sm:$0xff]
      %v1713 = vld [vmem:[%s1317 + $0x61] sm:$0xff]
      %v1714 = vld [vmem:[%s1317 + $0x69] sm:$0xff]
      %v1715 = vld [vmem:[%s1317 + $0x79] sm:$0xff]
      %v1716 = vld [vmem:[%s1317 + $0x81] sm:$0xff]
      %v1717 = vld [vmem:[%s1317 + $0x91] sm:$0xff]
      %v1718 = vld [vmem:[%s1317 + $0x99] sm:$0xff]
      %v1719 = vld [vmem:[%s1317 + $0xa9] sm:$0xff]
      %v1720 = vld [vmem:[%s1317 + $0xb1] sm:$0xff]
      %v1721 = vld [vmem:[%s1317 + $0xc1] sm:$0xff]
      %v1722 = vld [vmem:[%s1317 + $0xc9] sm:$0xff]
      %v1723 = vld [vmem:[%s1317 + $0xd9] sm:$0xff]
      %v1724 = vld [vmem:[%s1317 + $0xe1] sm:$0xff]
      %v1725 = vld [vmem:[%s1317 + $0xf1] sm:$0xff]
      %v1726 = vld [vmem:[%s1317 + $0xf9] sm:$0xff]
      %v1727 = vld [vmem:[%s1317 + $0x109] sm:$0xff]
      %v1728 = vld [vmem:[%s1317 + $0x111] sm:$0xff]
      %v1729 = vld [vmem:[%s1317 + $0x121] sm:$0xff]
      %v1730 = vld [vmem:[%s1317 + $0x129] sm:$0xff]
      %v1731 = vld [vmem:[%s1317 + $0x139] sm:$0xff]
      %v1732 = vld [vmem:[%s1317 + $0x141] sm:$0xff]
      %v1733 = vld [vmem:[%s1317 + $0x151] sm:$0xff]
      %v1734 = vld [vmem:[%s1317 + $0x159] sm:$0xff]
      %v1735 = vld [vmem:[%s1317 + $0x169] sm:$0xff]
      %v1736 = vld [vmem:[%s1317 + $0x171] sm:$0xff]
      %s1737 = scalar_lea.vmem %s1, 32
      %v1738 = vld [vmem:[%s1737] sm:$0xff]
      %v1740 = vsel %vm287, %v1705, 0
      %v1743 = vsel %vm287, %v1706, 0
      %v1746 = vsel %vm287, %v1707, 0
      %v1749 = vsel %vm287, %v1708, 0
      %v1752 = vsel %vm287, %v1709, 0
      %v1755 = vsel %vm287, %v1710, 0
      %v1758 = vsel %vm287, %v1711, 0
      %v1761 = vsel %vm287, %v1712, 0
      %v1764 = vsel %vm287, %v1713, 0
      %v1767 = vsel %vm287, %v1714, 0
      %v1770 = vsel %vm287, %v1715, 0
      %v1773 = vsel %vm287, %v1716, 0
      %v1776 = vsel %vm287, %v1717, 0
      %v1779 = vsel %vm287, %v1718, 0
      %v1782 = vsel %vm287, %v1719, 0
      %v1785 = vsel %vm287, %v1720, 0
      %v1788 = vsel %vm287, %v1721, 0
      %v1791 = vsel %vm287, %v1722, 0
      %v1794 = vsel %vm287, %v1723, 0
      %v1797 = vsel %vm287, %v1724, 0
      %v1800 = vsel %vm287, %v1725, 0
      %v1803 = vsel %vm287, %v1726, 0
      %v1806 = vsel %vm287, %v1727, 0
      %v1809 = vsel %vm287, %v1728, 0
      %v1812 = vsel %vm287, %v1729, 0
      %v1815 = vsel %vm287, %v1730, 0
      %v1818 = vsel %vm287, %v1731, 0
      %v1821 = vsel %vm287, %v1732, 0
      %v1824 = vsel %vm287, %v1733, 0
      %v1827 = vsel %vm287, %v1734, 0
      %v1830 = vsel %vm287, %v1735, 0
      %v1833 = vsel %vm287, %v1736, 0
      %1835 = vmatprep.subr.mxu0 0.0
      %1836 = vmatpush1.msra.mxu0 %v1738
      %1837 = vmatprep.subr.mxu0 0.0
      %1838 = vmatpush1.msra.mxu0 0.0
      %1839 = vmatprep.subr.mxu0 0.0
      %1840 = vmatpush1.msra.mxu0 0.0
      %1841 = vmatprep.subr.mxu0 0.0
      %1842 = vmatpush1.msra.mxu0 0.0
      %1843 = vmatprep.subr.mxu0 0.0
      %1844 = vmatpush1.msra.mxu0 0.0
      %1845 = vmatprep.subr.mxu0 0.0
      %1846 = vmatpush1.msra.mxu0 0.0
      %1847 = vmatprep.subr.mxu0 0.0
      %1848 = vmatpush1.msra.mxu0 0.0
      %1849 = vmatprep.subr.mxu0 0.0
      %1850 = vmatpush1.msra.mxu0 0.0
      %1851 = vmatprep.subr.mxu0 0.0
      %1852 = vmatpush1.msra.mxu0 0.0
      %1853 = vmatprep.subr.mxu0 0.0
      %1854 = vmatpush1.msra.mxu0 0.0
      %1855 = vmatprep.subr.mxu0 0.0
      %1856 = vmatpush1.msra.mxu0 0.0
      %1857 = vmatprep.subr.mxu0 0.0
      %1858 = vmatpush1.msra.mxu0 0.0
      %1859 = vmatprep.subr.mxu0 0.0
      %1860 = vmatpush1.msra.mxu0 0.0
      %1861 = vmatprep.subr.mxu0 0.0
      %1862 = vmatpush1.msra.mxu0 0.0
      %1863 = vmatprep.subr.mxu0 0.0
      %1864 = vmatpush1.msra.mxu0 0.0
      %1865 = vmatprep.subr.mxu0 0.0
      %1866 = vmatpush1.msra.mxu0 0.0
      %1867 = vmatprep.subr.mxu0 0.0
      %1868 = vmatpush1.msra.mxu0 0.0
      %1869 = vmatprep.subr.mxu0 0.0
      %1870 = vmatpush1.msra.mxu0 0.0
      %1871 = vmatprep.subr.mxu0 0.0
      %1872 = vmatpush1.msra.mxu0 0.0
      %1873 = vmatprep.subr.mxu0 0.0
      %1874 = vmatpush1.msra.mxu0 0.0
      %1875 = vmatprep.subr.mxu0 0.0
      %1876 = vmatpush1.msra.mxu0 0.0
      %1877 = vmatprep.subr.mxu0 0.0
      %1878 = vmatpush1.msra.mxu0 0.0
      %1879 = vmatprep.subr.mxu0 0.0
      %1880 = vmatpush1.msra.mxu0 0.0
      %1881 = vmatprep.subr.mxu0 0.0
      %1882 = vmatpush1.msra.mxu0 0.0
      %1883 = vmatprep.subr.mxu0 0.0
      %1884 = vmatpush1.msra.mxu0 0.0
      %1885 = vmatprep.subr.mxu0 0.0
      %1886 = vmatpush1.msra.mxu0 0.0
      %1887 = vmatprep.subr.mxu0 0.0
      %1888 = vmatpush1.msra.mxu0 0.0
      %1889 = vmatprep.subr.mxu0 0.0
      %1890 = vmatpush1.msra.mxu0 0.0
      %1891 = vmatprep.subr.mxu0 0.0
      %1892 = vmatpush1.msra.mxu0 0.0
      %1893 = vmatprep.subr.mxu0 0.0
      %1894 = vmatpush1.msra.mxu0 0.0
      %1895 = vmatprep.subr.mxu0 0.0
      %1896 = vmatpush1.msra.mxu0 0.0
      %1897 = vmatprep.subr.mxu0 0.0
      %1898 = vmatpush1.msra.mxu0 0.0
      %1899 = vmatprep.mubr.f32.mxu0 0.0
      %1900 = vmatmul.mubr.f32.gmra.mrb[0].mxu0 %v1740
      %v1901 = vpop.f32.mrb[0].mxu0
      %v1902 = vadd.f32 0.0, %v1901
      %v1903 = vpop.f32.mrb[0].mxu0
      %1904 = vmatprep.mubr.f32.mxu0 0.0
      %1905 = vmatmul.mubr.f32.gmra.mrb[0].mxu0 %v1743
      %v1906 = vpop.f32.mrb[0].mxu0
      %v1907 = vadd.f32 0.0, %v1906
      %v1908 = vpop.f32.mrb[0].mxu0
      %1909 = vmatprep.mubr.f32.mxu0 0.0
      %1910 = vmatmul.mubr.f32.gmra.mrb[0].mxu0 %v1746
      %v1911 = vpop.f32.mrb[0].mxu0
      %v1912 = vadd.f32 0.0, %v1911
      %v1913 = vpop.f32.mrb[0].mxu0
      %1914 = vmatprep.mubr.f32.mxu0 0.0
      %1915 = vmatmul.mubr.f32.gmra.mrb[0].mxu0 %v1749
      %v1916 = vpop.f32.mrb[0].mxu0
      %v1917 = vadd.f32 0.0, %v1916
      %v1918 = vpop.f32.mrb[0].mxu0
      %1919 = vmatprep.mubr.f32.mxu0 0.0
      %1920 = vmatmul.mubr.f32.gmra.mrb[0].mxu0 %v1752
      %v1921 = vpop.f32.mrb[0].mxu0
      %v1922 = vadd.f32 0.0, %v1921
      %v1923 = vpop.f32.mrb[0].mxu0
      %1924 = vmatprep.mubr.f32.mxu0 0.0
      %1925 = vmatmul.mubr.f32.gmra.mrb[0].mxu0 %v1755
      %v1926 = vpop.f32.mrb[0].mxu0
      %v1927 = vadd.f32 0.0, %v1926
      %v1928 = vpop.f32.mrb[0].mxu0
      %1929 = vmatprep.mubr.f32.mxu0 0.0
      %1930 = vmatmul.mubr.f32.gmra.mrb[0].mxu0 %v1758
      %v1931 = vpop.f32.mrb[0].mxu0
      %v1932 = vadd.f32 0.0, %v1931
      %v1933 = vpop.f32.mrb[0].mxu0
      %1934 = vmatprep.mubr.f32.mxu0 0.0
      %1935 = vmatmul.mubr.f32.gmra.mrb[0].mxu0 %v1761
      %v1936 = vpop.f32.mrb[0].mxu0
      %v1937 = vadd.f32 0.0, %v1936
      %v1938 = vpop.f32.mrb[0].mxu0
      %1939 = vmatprep.mubr.f32.mxu0 0.0
      %1940 = vmatmul.mubr.f32.gmra.mrb[0].mxu0 %v1764
      %v1941 = vpop.f32.mrb[0].mxu0
      %v1942 = vadd.f32 0.0, %v1941
      %v1943 = vpop.f32.mrb[0].mxu0
      %1944 = vmatprep.mubr.f32.mxu0 0.0
      %1945 = vmatmul.mubr.f32.gmra.mrb[0].mxu0 %v1767
      %v1946 = vpop.f32.mrb[0].mxu0
      %v1947 = vadd.f32 0.0, %v1946
      %v1948 = vpop.f32.mrb[0].mxu0
      %1949 = vmatprep.mubr.f32.mxu0 0.0
      %1950 = vmatmul.mubr.f32.gmra.mrb[0].mxu0 %v1770
      %v1951 = vpop.f32.mrb[0].mxu0
      %v1952 = vadd.f32 0.0, %v1951
      %v1953 = vpop.f32.mrb[0].mxu0
      %1954 = vmatprep.mubr.f32.mxu0 0.0
      %1955 = vmatmul.mubr.f32.gmra.mrb[0].mxu0 %v1773
      %v1956 = vpop.f32.mrb[0].mxu0
      %v1957 = vadd.f32 0.0, %v1956
      %v1958 = vpop.f32.mrb[0].mxu0
      %1959 = vmatprep.mubr.f32.mxu0 0.0
      %1960 = vmatmul.mubr.f32.gmra.mrb[0].mxu0 %v1776
      %v1961 = vpop.f32.mrb[0].mxu0
      %v1962 = vadd.f32 0.0, %v1961
      %v1963 = vpop.f32.mrb[0].mxu0
      %1964 = vmatprep.mubr.f32.mxu0 0.0
      %1965 = vmatmul.mubr.f32.gmra.mrb[0].mxu0 %v1779
      %v1966 = vpop.f32.mrb[0].mxu0
      %v1967 = vadd.f32 0.0, %v1966
      %v1968 = vpop.f32.mrb[0].mxu0
      %1969 = vmatprep.mubr.f32.mxu0 0.0
      %1970 = vmatmul.mubr.f32.gmra.mrb[0].mxu0 %v1782
      %v1971 = vpop.f32.mrb[0].mxu0
      %v1972 = vadd.f32 0.0, %v1971
      %v1973 = vpop.f32.mrb[0].mxu0
      %1974 = vmatprep.mubr.f32.mxu0 0.0
      %1975 = vmatmul.mubr.f32.gmra.mrb[0].mxu0 %v1785
      %v1976 = vpop.f32.mrb[0].mxu0
      %v1977 = vadd.f32 0.0, %v1976
      %v1978 = vpop.f32.mrb[0].mxu0
      %1979 = vmatprep.mubr.f32.mxu0 0.0
      %1980 = vmatmul.mubr.f32.gmra.mrb[0].mxu0 %v1788
      %v1981 = vpop.f32.mrb[0].mxu0
      %v1982 = vadd.f32 0.0, %v1981
      %v1983 = vpop.f32.mrb[0].mxu0
      %1984 = vmatprep.mubr.f32.mxu0 0.0
      %1985 = vmatmul.mubr.f32.gmra.mrb[0].mxu0 %v1791
      %v1986 = vpop.f32.mrb[0].mxu0
      %v1987 = vadd.f32 0.0, %v1986
      %v1988 = vpop.f32.mrb[0].mxu0
      %1989 = vmatprep.mubr.f32.mxu0 0.0
      %1990 = vmatmul.mubr.f32.gmra.mrb[0].mxu0 %v1794
      %v1991 = vpop.f32.mrb[0].mxu0
      %v1992 = vadd.f32 0.0, %v1991
      %v1993 = vpop.f32.mrb[0].mxu0
      %1994 = vmatprep.mubr.f32.mxu0 0.0
      %1995 = vmatmul.mubr.f32.gmra.mrb[0].mxu0 %v1797
      %v1996 = vpop.f32.mrb[0].mxu0
      %v1997 = vadd.f32 0.0, %v1996
      %v1998 = vpop.f32.mrb[0].mxu0
      %1999 = vmatprep.mubr.f32.mxu0 0.0
      %2000 = vmatmul.mubr.f32.gmra.mrb[0].mxu0 %v1800
      %v2001 = vpop.f32.mrb[0].mxu0
      %v2002 = vadd.f32 0.0, %v2001
      %v2003 = vpop.f32.mrb[0].mxu0
      %2004 = vmatprep.mubr.f32.mxu0 0.0
      %2005 = vmatmul.mubr.f32.gmra.mrb[0].mxu0 %v1803
      %v2006 = vpop.f32.mrb[0].mxu0
      %v2007 = vadd.f32 0.0, %v2006
      %v2008 = vpop.f32.mrb[0].mxu0
      %2009 = vmatprep.mubr.f32.mxu0 0.0
      %2010 = vmatmul.mubr.f32.gmra.mrb[0].mxu0 %v1806
      %v2011 = vpop.f32.mrb[0].mxu0
      %v2012 = vadd.f32 0.0, %v2011
      %v2013 = vpop.f32.mrb[0].mxu0
      %2014 = vmatprep.mubr.f32.mxu0 0.0
      %2015 = vmatmul.mubr.f32.gmra.mrb[0].mxu0 %v1809
      %v2016 = vpop.f32.mrb[0].mxu0
      %v2017 = vadd.f32 0.0, %v2016
      %v2018 = vpop.f32.mrb[0].mxu0
      %2019 = vmatprep.mubr.f32.mxu0 0.0
      %2020 = vmatmul.mubr.f32.gmra.mrb[0].mxu0 %v1812
      %v2021 = vpop.f32.mrb[0].mxu0
      %v2022 = vadd.f32 0.0, %v2021
      %v2023 = vpop.f32.mrb[0].mxu0
      %2024 = vmatprep.mubr.f32.mxu0 0.0
      %2025 = vmatmul.mubr.f32.gmra.mrb[0].mxu0 %v1815
      %v2026 = vpop.f32.mrb[0].mxu0
      %v2027 = vadd.f32 0.0, %v2026
      %v2028 = vpop.f32.mrb[0].mxu0
      %2029 = vmatprep.mubr.f32.mxu0 0.0
      %2030 = vmatmul.mubr.f32.gmra.mrb[0].mxu0 %v1818
      %v2031 = vpop.f32.mrb[0].mxu0
      %v2032 = vadd.f32 0.0, %v2031
      %v2033 = vpop.f32.mrb[0].mxu0
      %2034 = vmatprep.mubr.f32.mxu0 0.0
      %2035 = vmatmul.mubr.f32.gmra.mrb[0].mxu0 %v1821
      %v2036 = vpop.f32.mrb[0].mxu0
      %v2037 = vadd.f32 0.0, %v2036
      %v2038 = vpop.f32.mrb[0].mxu0
      %2039 = vmatprep.mubr.f32.mxu0 0.0
      %2040 = vmatmul.mubr.f32.gmra.mrb[0].mxu0 %v1824
      %v2041 = vpop.f32.mrb[0].mxu0
      %v2042 = vadd.f32 0.0, %v2041
      %v2043 = vpop.f32.mrb[0].mxu0
      %2044 = vmatprep.mubr.f32.mxu0 0.0
      %2045 = vmatmul.mubr.f32.gmra.mrb[0].mxu0 %v1827
      %v2046 = vpop.f32.mrb[0].mxu0
      %v2047 = vadd.f32 0.0, %v2046
      %v2048 = vpop.f32.mrb[0].mxu0
      %2049 = vmatprep.mubr.f32.mxu0 0.0
      %2050 = vmatmul.mubr.f32.gmra.mrb[0].mxu0 %v1830
      %v2051 = vpop.f32.mrb[0].mxu0
      %v2052 = vadd.f32 0.0, %v2051
      %v2053 = vpop.f32.mrb[0].mxu0
      %2054 = vmatprep.mubr.f32.mxu0 0.0
      %2055 = vmatmul.mubr.f32.gmra.mrb[0].mxu0 %v1833
      %v2056 = vpop.f32.mrb[0].mxu0
      %v2057 = vadd.f32 0.0, %v2056
      %v2058 = vpop.f32.mrb[0].mxu0
      %2059 = vdwg.mxu0
      %v2060 = vadd.f32 %v1673, %v1902
      %v2061 = vadd.f32 %v1674, %v1907
      %v2062 = vadd.f32 %v1675, %v1912
      %v2063 = vadd.f32 %v1676, %v1917
      %v2064 = vadd.f32 %v1677, %v1922
      %v2065 = vadd.f32 %v1678, %v1927
      %v2066 = vadd.f32 %v1679, %v1932
      %v2067 = vadd.f32 %v1680, %v1937
      %v2068 = vadd.f32 %v1681, %v1942
      %v2069 = vadd.f32 %v1682, %v1947
      %v2070 = vadd.f32 %v1683, %v1952
      %v2071 = vadd.f32 %v1684, %v1957
      %v2072 = vadd.f32 %v1685, %v1962
      %v2073 = vadd.f32 %v1686, %v1967
      %v2074 = vadd.f32 %v1687, %v1972
      %v2075 = vadd.f32 %v1688, %v1977
      %v2076 = vadd.f32 %v1689, %v1982
      %v2077 = vadd.f32 %v1690, %v1987
      %v2078 = vadd.f32 %v1691, %v1992
      %v2079 = vadd.f32 %v1692, %v1997
      %v2080 = vadd.f32 %v1693, %v2002
      %v2081 = vadd.f32 %v1694, %v2007
      %v2082 = vadd.f32 %v1695, %v2012
      %v2083 = vadd.f32 %v1696, %v2017
      %v2084 = vadd.f32 %v1697, %v2022
      %v2085 = vadd.f32 %v1698, %v2027
      %v2086 = vadd.f32 %v1699, %v2032
      %v2087 = vadd.f32 %v1700, %v2037
      %v2088 = vadd.f32 %v1701, %v2042
      %v2089 = vadd.f32 %v1702, %v2047
      %v2090 = vadd.f32 %v1703, %v2052
      %v2091 = vadd.f32 %v1704, %v2057
      %v2092 = vld [vmem:[%s1317 + $0x2] sm:$0xff]
      %v2093 = vld [vmem:[%s1317 + $0xa] sm:$0xff]
      %v2094 = vld [vmem:[%s1317 + $0x1a] sm:$0xff]
      %v2095 = vld [vmem:[%s1317 + $0x22] sm:$0xff]
      %v2096 = vld [vmem:[%s1317 + $0x32] sm:$0xff]
      %v2097 = vld [vmem:[%s1317 + $0x3a] sm:$0xff]
      %v2098 = vld [vmem:[%s1317 + $0x4a] sm:$0xff]
      %v2099 = vld [vmem:[%s1317 + $0x52] sm:$0xff]
      %v2100 = vld [vmem:[%s1317 + $0x62] sm:$0xff]
      %v2101 = vld [vmem:[%s1317 + $0x6a] sm:$0xff]
      %v2102 = vld [vmem:[%s1317 + $0x7a] sm:$0xff]
      %v2103 = vld [vmem:[%s1317 + $0x82] sm:$0xff]
      %v2104 = vld [vmem:[%s1317 + $0x92] sm:$0xff]
      %v2105 = vld [vmem:[%s1317 + $0x9a] sm:$0xff]
      %v2106 = vld [vmem:[%s1317 + $0xaa] sm:$0xff]
      %v2107 = vld [vmem:[%s1317 + $0xb2] sm:$0xff]
      %v2108 = vld [vmem:[%s1317 + $0xc2] sm:$0xff]
      %v2109 = vld [vmem:[%s1317 + $0xca] sm:$0xff]
      %v2110 = vld [vmem:[%s1317 + $0xda] sm:$0xff]
      %v2111 = vld [vmem:[%s1317 + $0xe2] sm:$0xff]
      %v2112 = vld [vmem:[%s1317 + $0xf2] sm:$0xff]
      %v2113 = vld [vmem:[%s1317 + $0xfa] sm:$0xff]
      %v2114 = vld [vmem:[%s1317 + $0x10a] sm:$0xff]
      %v2115 = vld [vmem:[%s1317 + $0x112] sm:$0xff]
      %v2116 = vld [vmem:[%s1317 + $0x122] sm:$0xff]
      %v2117 = vld [vmem:[%s1317 + $0x12a] sm:$0xff]
      %v2118 = vld [vmem:[%s1317 + $0x13a] sm:$0xff]
      %v2119 = vld [vmem:[%s1317 + $0x142] sm:$0xff]
      %v2120 = vld [vmem:[%s1317 + $0x152] sm:$0xff]
      %v2121 = vld [vmem:[%s1317 + $0x15a] sm:$0xff]
      %v2122 = vld [vmem:[%s1317 + $0x16a] sm:$0xff]
      %v2123 = vld [vmem:[%s1317 + $0x172] sm:$0xff]
      %s2124 = scalar_lea.vmem %s1, 40
      %v2125 = vld [vmem:[%s2124] sm:$0xff]
      %v2127 = vsel %vm287, %v2092, 0
      %v2130 = vsel %vm287, %v2093, 0
      %v2133 = vsel %vm287, %v2094, 0
      %v2136 = vsel %vm287, %v2095, 0
      %v2139 = vsel %vm287, %v2096, 0
      %v2142 = vsel %vm287, %v2097, 0
      %v2145 = vsel %vm287, %v2098, 0
      %v2148 = vsel %vm287, %v2099, 0
      %v2151 = vsel %vm287, %v2100, 0
      %v2154 = vsel %vm287, %v2101, 0
      %v2157 = vsel %vm287, %v2102, 0
      %v2160 = vsel %vm287, %v2103, 0
      %v2163 = vsel %vm287, %v2104, 0
      %v2166 = vsel %vm287, %v2105, 0
      %v2169 = vsel %vm287, %v2106, 0
      %v2172 = vsel %vm287, %v2107, 0
      %v2175 = vsel %vm287, %v2108, 0
      %v2178 = vsel %vm287, %v2109, 0
      %v2181 = vsel %vm287, %v2110, 0
      %v2184 = vsel %vm287, %v2111, 0
      %v2187 = vsel %vm287, %v2112, 0
      %v2190 = vsel %vm287, %v2113, 0
      %v2193 = vsel %vm287, %v2114, 0
      %v2196 = vsel %vm287, %v2115, 0
      %v2199 = vsel %vm287, %v2116, 0
      %v2202 = vsel %vm287, %v2117, 0
      %v2205 = vsel %vm287, %v2118, 0
      %v2208 = vsel %vm287, %v2119, 0
      %v2211 = vsel %vm287, %v2120, 0
      %v2214 = vsel %vm287, %v2121, 0
      %v2217 = vsel %vm287, %v2122, 0
      %v2220 = vsel %vm287, %v2123, 0
      %2222 = vmatprep.subr.mxu0 0.0
      %2223 = vmatpush1.msra.mxu0 %v2125
      %2224 = vmatprep.subr.mxu0 0.0
      %2225 = vmatpush1.msra.mxu0 0.0
      %2226 = vmatprep.subr.mxu0 0.0
      %2227 = vmatpush1.msra.mxu0 0.0
      %2228 = vmatprep.subr.mxu0 0.0
      %2229 = vmatpush1.msra.mxu0 0.0
      %2230 = vmatprep.subr.mxu0 0.0
      %2231 = vmatpush1.msra.mxu0 0.0
      %2232 = vmatprep.subr.mxu0 0.0
      %2233 = vmatpush1.msra.mxu0 0.0
      %2234 = vmatprep.subr.mxu0 0.0
      %2235 = vmatpush1.msra.mxu0 0.0
      %2236 = vmatprep.subr.mxu0 0.0
      %2237 = vmatpush1.msra.mxu0 0.0
      %2238 = vmatprep.subr.mxu0 0.0
      %2239 = vmatpush1.msra.mxu0 0.0
      %2240 = vmatprep.subr.mxu0 0.0
      %2241 = vmatpush1.msra.mxu0 0.0
      %2242 = vmatprep.subr.mxu0 0.0
      %2243 = vmatpush1.msra.mxu0 0.0
      %2244 = vmatprep.subr.mxu0 0.0
      %2245 = vmatpush1.msra.mxu0 0.0
      %2246 = vmatprep.subr.mxu0 0.0
      %2247 = vmatpush1.msra.mxu0 0.0
      %2248 = vmatprep.subr.mxu0 0.0
      %2249 = vmatpush1.msra.mxu0 0.0
      %2250 = vmatprep.subr.mxu0 0.0
      %2251 = vmatpush1.msra.mxu0 0.0
      %2252 = vmatprep.subr.mxu0 0.0
      %2253 = vmatpush1.msra.mxu0 0.0
      %2254 = vmatprep.subr.mxu0 0.0
      %2255 = vmatpush1.msra.mxu0 0.0
      %2256 = vmatprep.subr.mxu0 0.0
      %2257 = vmatpush1.msra.mxu0 0.0
      %2258 = vmatprep.subr.mxu0 0.0
      %2259 = vmatpush1.msra.mxu0 0.0
      %2260 = vmatprep.subr.mxu0 0.0
      %2261 = vmatpush1.msra.mxu0 0.0
      %2262 = vmatprep.subr.mxu0 0.0
      %2263 = vmatpush1.msra.mxu0 0.0
      %2264 = vmatprep.subr.mxu0 0.0
      %2265 = vmatpush1.msra.mxu0 0.0
      %2266 = vmatprep.subr.mxu0 0.0
      %2267 = vmatpush1.msra.mxu0 0.0
      %2268 = vmatprep.subr.mxu0 0.0
      %2269 = vmatpush1.msra.mxu0 0.0
      %2270 = vmatprep.subr.mxu0 0.0
      %2271 = vmatpush1.msra.mxu0 0.0
      %2272 = vmatprep.subr.mxu0 0.0
      %2273 = vmatpush1.msra.mxu0 0.0
      %2274 = vmatprep.subr.mxu0 0.0
      %2275 = vmatpush1.msra.mxu0 0.0
      %2276 = vmatprep.subr.mxu0 0.0
      %2277 = vmatpush1.msra.mxu0 0.0
      %2278 = vmatprep.subr.mxu0 0.0
      %2279 = vmatpush1.msra.mxu0 0.0
      %2280 = vmatprep.subr.mxu0 0.0
      %2281 = vmatpush1.msra.mxu0 0.0
      %2282 = vmatprep.subr.mxu0 0.0
      %2283 = vmatpush1.msra.mxu0 0.0
      %2284 = vmatprep.subr.mxu0 0.0
      %2285 = vmatpush1.msra.mxu0 0.0
      %2286 = vmatprep.mubr.f32.mxu0 0.0
      %2287 = vmatmul.mubr.f32.gmra.mrb[0].mxu0 %v2127
      %v2288 = vpop.f32.mrb[0].mxu0
      %v2289 = vadd.f32 0.0, %v2288
      %v2290 = vpop.f32.mrb[0].mxu0
      %2291 = vmatprep.mubr.f32.mxu0 0.0
      %2292 = vmatmul.mubr.f32.gmra.mrb[0].mxu0 %v2130
      %v2293 = vpop.f32.mrb[0].mxu0
      %v2294 = vadd.f32 0.0, %v2293
      %v2295 = vpop.f32.mrb[0].mxu0
      %2296 = vmatprep.mubr.f32.mxu0 0.0
      %2297 = vmatmul.mubr.f32.gmra.mrb[0].mxu0 %v2133
      %v2298 = vpop.f32.mrb[0].mxu0
      %v2299 = vadd.f32 0.0, %v2298
      %v2300 = vpop.f32.mrb[0].mxu0
      %2301 = vmatprep.mubr.f32.mxu0 0.0
      %2302 = vmatmul.mubr.f32.gmra.mrb[0].mxu0 %v2136
      %v2303 = vpop.f32.mrb[0].mxu0
      %v2304 = vadd.f32 0.0, %v2303
      %v2305 = vpop.f32.mrb[0].mxu0
      %2306 = vmatprep.mubr.f32.mxu0 0.0
      %2307 = vmatmul.mubr.f32.gmra.mrb[0].mxu0 %v2139
      %v2308 = vpop.f32.mrb[0].mxu0
      %v2309 = vadd.f32 0.0, %v2308
      %v2310 = vpop.f32.mrb[0].mxu0
      %2311 = vmatprep.mubr.f32.mxu0 0.0
      %2312 = vmatmul.mubr.f32.gmra.mrb[0].mxu0 %v2142
      %v2313 = vpop.f32.mrb[0].mxu0
      %v2314 = vadd.f32 0.0, %v2313
      %v2315 = vpop.f32.mrb[0].mxu0
      %2316 = vmatprep.mubr.f32.mxu0 0.0
      %2317 = vmatmul.mubr.f32.gmra.mrb[0].mxu0 %v2145
      %v2318 = vpop.f32.mrb[0].mxu0
      %v2319 = vadd.f32 0.0, %v2318
      %v2320 = vpop.f32.mrb[0].mxu0
      %2321 = vmatprep.mubr.f32.mxu0 0.0
      %2322 = vmatmul.mubr.f32.gmra.mrb[0].mxu0 %v2148
      %v2323 = vpop.f32.mrb[0].mxu0
      %v2324 = vadd.f32 0.0, %v2323
      %v2325 = vpop.f32.mrb[0].mxu0
      %2326 = vmatprep.mubr.f32.mxu0 0.0
      %2327 = vmatmul.mubr.f32.gmra.mrb[0].mxu0 %v2151
      %v2328 = vpop.f32.mrb[0].mxu0
      %v2329 = vadd.f32 0.0, %v2328
      %v2330 = vpop.f32.mrb[0].mxu0
      %2331 = vmatprep.mubr.f32.mxu0 0.0
      %2332 = vmatmul.mubr.f32.gmra.mrb[0].mxu0 %v2154
      %v2333 = vpop.f32.mrb[0].mxu0
      %v2334 = vadd.f32 0.0, %v2333
      %v2335 = vpop.f32.mrb[0].mxu0
      %2336 = vmatprep.mubr.f32.mxu0 0.0
      %2337 = vmatmul.mubr.f32.gmra.mrb[0].mxu0 %v2157
      %v2338 = vpop.f32.mrb[0].mxu0
      %v2339 = vadd.f32 0.0, %v2338
      %v2340 = vpop.f32.mrb[0].mxu0
      %2341 = vmatprep.mubr.f32.mxu0 0.0
      %2342 = vmatmul.mubr.f32.gmra.mrb[0].mxu0 %v2160
      %v2343 = vpop.f32.mrb[0].mxu0
      %v2344 = vadd.f32 0.0, %v2343
      %v2345 = vpop.f32.mrb[0].mxu0
      %2346 = vmatprep.mubr.f32.mxu0 0.0
      %2347 = vmatmul.mubr.f32.gmra.mrb[0].mxu0 %v2163
      %v2348 = vpop.f32.mrb[0].mxu0
      %v2349 = vadd.f32 0.0, %v2348
      %v2350 = vpop.f32.mrb[0].mxu0
      %2351 = vmatprep.mubr.f32.mxu0 0.0
      %2352 = vmatmul.mubr.f32.gmra.mrb[0].mxu0 %v2166
      %v2353 = vpop.f32.mrb[0].mxu0
      %v2354 = vadd.f32 0.0, %v2353
      %v2355 = vpop.f32.mrb[0].mxu0
      %2356 = vmatprep.mubr.f32.mxu0 0.0
      %2357 = vmatmul.mubr.f32.gmra.mrb[0].mxu0 %v2169
      %v2358 = vpop.f32.mrb[0].mxu0
      %v2359 = vadd.f32 0.0, %v2358
      %v2360 = vpop.f32.mrb[0].mxu0
      %2361 = vmatprep.mubr.f32.mxu0 0.0
      %2362 = vmatmul.mubr.f32.gmra.mrb[0].mxu0 %v2172
      %v2363 = vpop.f32.mrb[0].mxu0
      %v2364 = vadd.f32 0.0, %v2363
      %v2365 = vpop.f32.mrb[0].mxu0
      %2366 = vmatprep.mubr.f32.mxu0 0.0
      %2367 = vmatmul.mubr.f32.gmra.mrb[0].mxu0 %v2175
      %v2368 = vpop.f32.mrb[0].mxu0
      %v2369 = vadd.f32 0.0, %v2368
      %v2370 = vpop.f32.mrb[0].mxu0
      %2371 = vmatprep.mubr.f32.mxu0 0.0
      %2372 = vmatmul.mubr.f32.gmra.mrb[0].mxu0 %v2178
      %v2373 = vpop.f32.mrb[0].mxu0
      %v2374 = vadd.f32 0.0, %v2373
      %v2375 = vpop.f32.mrb[0].mxu0
      %2376 = vmatprep.mubr.f32.mxu0 0.0
      %2377 = vmatmul.mubr.f32.gmra.mrb[0].mxu0 %v2181
      %v2378 = vpop.f32.mrb[0].mxu0
      %v2379 = vadd.f32 0.0, %v2378
      %v2380 = vpop.f32.mrb[0].mxu0
      %2381 = vmatprep.mubr.f32.mxu0 0.0
      %2382 = vmatmul.mubr.f32.gmra.mrb[0].mxu0 %v2184
      %v2383 = vpop.f32.mrb[0].mxu0
      %v2384 = vadd.f32 0.0, %v2383
      %v2385 = vpop.f32.mrb[0].mxu0
      %2386 = vmatprep.mubr.f32.mxu0 0.0
      %2387 = vmatmul.mubr.f32.gmra.mrb[0].mxu0 %v2187
      %v2388 = vpop.f32.mrb[0].mxu0
      %v2389 = vadd.f32 0.0, %v2388
      %v2390 = vpop.f32.mrb[0].mxu0
      %2391 = vmatprep.mubr.f32.mxu0 0.0
      %2392 = vmatmul.mubr.f32.gmra.mrb[0].mxu0 %v2190
      %v2393 = vpop.f32.mrb[0].mxu0
      %v2394 = vadd.f32 0.0, %v2393
      %v2395 = vpop.f32.mrb[0].mxu0
      %2396 = vmatprep.mubr.f32.mxu0 0.0
      %2397 = vmatmul.mubr.f32.gmra.mrb[0].mxu0 %v2193
      %v2398 = vpop.f32.mrb[0].mxu0
      %v2399 = vadd.f32 0.0, %v2398
      %v2400 = vpop.f32.mrb[0].mxu0
      %2401 = vmatprep.mubr.f32.mxu0 0.0
      %2402 = vmatmul.mubr.f32.gmra.mrb[0].mxu0 %v2196
      %v2403 = vpop.f32.mrb[0].mxu0
      %v2404 = vadd.f32 0.0, %v2403
      %v2405 = vpop.f32.mrb[0].mxu0
      %2406 = vmatprep.mubr.f32.mxu0 0.0
      %2407 = vmatmul.mubr.f32.gmra.mrb[0].mxu0 %v2199
      %v2408 = vpop.f32.mrb[0].mxu0
      %v2409 = vadd.f32 0.0, %v2408
      %v2410 = vpop.f32.mrb[0].mxu0
      %2411 = vmatprep.mubr.f32.mxu0 0.0
      %2412 = vmatmul.mubr.f32.gmra.mrb[0].mxu0 %v2202
      %v2413 = vpop.f32.mrb[0].mxu0
      %v2414 = vadd.f32 0.0, %v2413
      %v2415 = vpop.f32.mrb[0].mxu0
      %2416 = vmatprep.mubr.f32.mxu0 0.0
      %2417 = vmatmul.mubr.f32.gmra.mrb[0].mxu0 %v2205
      %v2418 = vpop.f32.mrb[0].mxu0
      %v2419 = vadd.f32 0.0, %v2418
      %v2420 = vpop.f32.mrb[0].mxu0
      %2421 = vmatprep.mubr.f32.mxu0 0.0
      %2422 = vmatmul.mubr.f32.gmra.mrb[0].mxu0 %v2208
      %v2423 = vpop.f32.mrb[0].mxu0
      %v2424 = vadd.f32 0.0, %v2423
      %v2425 = vpop.f32.mrb[0].mxu0
      %2426 = vmatprep.mubr.f32.mxu0 0.0
      %2427 = vmatmul.mubr.f32.gmra.mrb[0].mxu0 %v2211
      %v2428 = vpop.f32.mrb[0].mxu0
      %v2429 = vadd.f32 0.0, %v2428
      %v2430 = vpop.f32.mrb[0].mxu0
      %2431 = vmatprep.mubr.f32.mxu0 0.0
      %2432 = vmatmul.mubr.f32.gmra.mrb[0].mxu0 %v2214
      %v2433 = vpop.f32.mrb[0].mxu0
      %v2434 = vadd.f32 0.0, %v2433
      %v2435 = vpop.f32.mrb[0].mxu0
      %2436 = vmatprep.mubr.f32.mxu0 0.0
      %2437 = vmatmul.mubr.f32.gmra.mrb[0].mxu0 %v2217
      %v2438 = vpop.f32.mrb[0].mxu0
      %v2439 = vadd.f32 0.0, %v2438
      %v2440 = vpop.f32.mrb[0].mxu0
      %2441 = vmatprep.mubr.f32.mxu0 0.0
      %2442 = vmatmul.mubr.f32.gmra.mrb[0].mxu0 %v2220
      %v2443 = vpop.f32.mrb[0].mxu0
      %v2444 = vadd.f32 0.0, %v2443
      %v2445 = vpop.f32.mrb[0].mxu0
      %2446 = vdwg.mxu0
      %v2447 = vadd.f32 %v2060, %v2289
      %v2448 = vadd.f32 %v2061, %v2294
      %v2449 = vadd.f32 %v2062, %v2299
      %v2450 = vadd.f32 %v2063, %v2304
      %v2451 = vadd.f32 %v2064, %v2309
      %v2452 = vadd.f32 %v2065, %v2314
      %v2453 = vadd.f32 %v2066, %v2319
      %v2454 = vadd.f32 %v2067, %v2324
      %v2455 = vadd.f32 %v2068, %v2329
      %v2456 = vadd.f32 %v2069, %v2334
      %v2457 = vadd.f32 %v2070, %v2339
      %v2458 = vadd.f32 %v2071, %v2344
      %v2459 = vadd.f32 %v2072, %v2349
      %v2460 = vadd.f32 %v2073, %v2354
      %v2461 = vadd.f32 %v2074, %v2359
      %v2462 = vadd.f32 %v2075, %v2364
      %v2463 = vadd.f32 %v2076, %v2369
      %v2464 = vadd.f32 %v2077, %v2374
      %v2465 = vadd.f32 %v2078, %v2379
      %v2466 = vadd.f32 %v2079, %v2384
      %v2467 = vadd.f32 %v2080, %v2389
      %v2468 = vadd.f32 %v2081, %v2394
      %v2469 = vadd.f32 %v2082, %v2399
      %v2470 = vadd.f32 %v2083, %v2404
      %v2471 = vadd.f32 %v2084, %v2409
      %v2472 = vadd.f32 %v2085, %v2414
      %v2473 = vadd.f32 %v2086, %v2419
      %v2474 = vadd.f32 %v2087, %v2424
      %v2475 = vadd.f32 %v2088, %v2429
      %v2476 = vadd.f32 %v2089, %v2434
      %v2477 = vadd.f32 %v2090, %v2439
      %v2478 = vadd.f32 %v2091, %v2444
      %s2479 = scalar_lea.vmem %s205, 48
      %v2480 = vld [vmem:[%s2479] sm:$0xff]
      %v2481 = vld [vmem:[%s2479 + $0x8] sm:$0xff]
      %v2482 = vld [vmem:[%s2479 + $0x18] sm:$0xff]
      %v2483 = vld [vmem:[%s2479 + $0x20] sm:$0xff]
      %v2484 = vld [vmem:[%s2479 + $0x30] sm:$0xff]
      %v2485 = vld [vmem:[%s2479 + $0x38] sm:$0xff]
      %v2486 = vld [vmem:[%s2479 + $0x48] sm:$0xff]
      %v2487 = vld [vmem:[%s2479 + $0x50] sm:$0xff]
      %v2488 = vld [vmem:[%s2479 + $0x60] sm:$0xff]
      %v2489 = vld [vmem:[%s2479 + $0x68] sm:$0xff]
      %v2490 = vld [vmem:[%s2479 + $0x78] sm:$0xff]
      %v2491 = vld [vmem:[%s2479 + $0x80] sm:$0xff]
      %v2492 = vld [vmem:[%s2479 + $0x90] sm:$0xff]
      %v2493 = vld [vmem:[%s2479 + $0x98] sm:$0xff]
      %v2494 = vld [vmem:[%s2479 + $0xa8] sm:$0xff]
      %v2495 = vld [vmem:[%s2479 + $0xb0] sm:$0xff]
      %v2496 = vld [vmem:[%s2479 + $0xc0] sm:$0xff]
      %v2497 = vld [vmem:[%s2479 + $0xc8] sm:$0xff]
      %v2498 = vld [vmem:[%s2479 + $0xd8] sm:$0xff]
      %v2499 = vld [vmem:[%s2479 + $0xe0] sm:$0xff]
      %v2500 = vld [vmem:[%s2479 + $0xf0] sm:$0xff]
      %v2501 = vld [vmem:[%s2479 + $0xf8] sm:$0xff]
      %v2502 = vld [vmem:[%s2479 + $0x108] sm:$0xff]
      %v2503 = vld [vmem:[%s2479 + $0x110] sm:$0xff]
      %v2504 = vld [vmem:[%s2479 + $0x120] sm:$0xff]
      %v2505 = vld [vmem:[%s2479 + $0x128] sm:$0xff]
      %v2506 = vld [vmem:[%s2479 + $0x138] sm:$0xff]
      %v2507 = vld [vmem:[%s2479 + $0x140] sm:$0xff]
      %v2508 = vld [vmem:[%s2479 + $0x150] sm:$0xff]
      %v2509 = vld [vmem:[%s2479 + $0x158] sm:$0xff]
      %v2510 = vld [vmem:[%s2479 + $0x168] sm:$0xff]
      %v2511 = vld [vmem:[%s2479 + $0x170] sm:$0xff]
      %s2512 = scalar_lea.vmem %s1, 48
      %v2513 = vld [vmem:[%s2512] sm:$0xff]
      %v2515 = vsel %vm287, %v2480, 0
      %v2518 = vsel %vm287, %v2481, 0
      %v2521 = vsel %vm287, %v2482, 0
      %v2524 = vsel %vm287, %v2483, 0
      %v2527 = vsel %vm287, %v2484, 0
      %v2530 = vsel %vm287, %v2485, 0
      %v2533 = vsel %vm287, %v2486, 0
      %v2536 = vsel %vm287, %v2487, 0
      %v2539 = vsel %vm287, %v2488, 0
      %v2542 = vsel %vm287, %v2489, 0
      %v2545 = vsel %vm287, %v2490, 0
      %v2548 = vsel %vm287, %v2491, 0
      %v2551 = vsel %vm287, %v2492, 0
      %v2554 = vsel %vm287, %v2493, 0
      %v2557 = vsel %vm287, %v2494, 0
      %v2560 = vsel %vm287, %v2495, 0
      %v2563 = vsel %vm287, %v2496, 0
      %v2566 = vsel %vm287, %v2497, 0
      %v2569 = vsel %vm287, %v2498, 0
      %v2572 = vsel %vm287, %v2499, 0
      %v2575 = vsel %vm287, %v2500, 0
      %v2578 = vsel %vm287, %v2501, 0
      %v2581 = vsel %vm287, %v2502, 0
      %v2584 = vsel %vm287, %v2503, 0
      %v2587 = vsel %vm287, %v2504, 0
      %v2590 = vsel %vm287, %v2505, 0
      %v2593 = vsel %vm287, %v2506, 0
      %v2596 = vsel %vm287, %v2507, 0
      %v2599 = vsel %vm287, %v2508, 0
      %v2602 = vsel %vm287, %v2509, 0
      %v2605 = vsel %vm287, %v2510, 0
      %v2608 = vsel %vm287, %v2511, 0
      %2610 = vmatprep.subr.mxu0 0.0
      %2611 = vmatpush1.msra.mxu0 %v2513
      %2612 = vmatprep.subr.mxu0 0.0
      %2613 = vmatpush1.msra.mxu0 0.0
      %2614 = vmatprep.subr.mxu0 0.0
      %2615 = vmatpush1.msra.mxu0 0.0
      %2616 = vmatprep.subr.mxu0 0.0
      %2617 = vmatpush1.msra.mxu0 0.0
      %2618 = vmatprep.subr.mxu0 0.0
      %2619 = vmatpush1.msra.mxu0 0.0
      %2620 = vmatprep.subr.mxu0 0.0
      %2621 = vmatpush1.msra.mxu0 0.0
      %2622 = vmatprep.subr.mxu0 0.0
      %2623 = vmatpush1.msra.mxu0 0.0
      %2624 = vmatprep.subr.mxu0 0.0
      %2625 = vmatpush1.msra.mxu0 0.0
      %2626 = vmatprep.subr.mxu0 0.0
      %2627 = vmatpush1.msra.mxu0 0.0
      %2628 = vmatprep.subr.mxu0 0.0
      %2629 = vmatpush1.msra.mxu0 0.0
      %2630 = vmatprep.subr.mxu0 0.0
      %2631 = vmatpush1.msra.mxu0 0.0
      %2632 = vmatprep.subr.mxu0 0.0
      %2633 = vmatpush1.msra.mxu0 0.0
      %2634 = vmatprep.subr.mxu0 0.0
      %2635 = vmatpush1.msra.mxu0 0.0
      %2636 = vmatprep.subr.mxu0 0.0
      %2637 = vmatpush1.msra.mxu0 0.0
      %2638 = vmatprep.subr.mxu0 0.0
      %2639 = vmatpush1.msra.mxu0 0.0
      %2640 = vmatprep.subr.mxu0 0.0
      %2641 = vmatpush1.msra.mxu0 0.0
      %2642 = vmatprep.subr.mxu0 0.0
      %2643 = vmatpush1.msra.mxu0 0.0
      %2644 = vmatprep.subr.mxu0 0.0
      %2645 = vmatpush1.msra.mxu0 0.0
      %2646 = vmatprep.subr.mxu0 0.0
      %2647 = vmatpush1.msra.mxu0 0.0
      %2648 = vmatprep.subr.mxu0 0.0
      %2649 = vmatpush1.msra.mxu0 0.0
      %2650 = vmatprep.subr.mxu0 0.0
      %2651 = vmatpush1.msra.mxu0 0.0
      %2652 = vmatprep.subr.mxu0 0.0
      %2653 = vmatpush1.msra.mxu0 0.0
      %2654 = vmatprep.subr.mxu0 0.0
      %2655 = vmatpush1.msra.mxu0 0.0
      %2656 = vmatprep.subr.mxu0 0.0
      %2657 = vmatpush1.msra.mxu0 0.0
      %2658 = vmatprep.subr.mxu0 0.0
      %2659 = vmatpush1.msra.mxu0 0.0
      %2660 = vmatprep.subr.mxu0 0.0
      %2661 = vmatpush1.msra.mxu0 0.0
      %2662 = vmatprep.subr.mxu0 0.0
      %2663 = vmatpush1.msra.mxu0 0.0
      %2664 = vmatprep.subr.mxu0 0.0
      %2665 = vmatpush1.msra.mxu0 0.0
      %2666 = vmatprep.subr.mxu0 0.0
      %2667 = vmatpush1.msra.mxu0 0.0
      %2668 = vmatprep.subr.mxu0 0.0
      %2669 = vmatpush1.msra.mxu0 0.0
      %2670 = vmatprep.subr.mxu0 0.0
      %2671 = vmatpush1.msra.mxu0 0.0
      %2672 = vmatprep.subr.mxu0 0.0
      %2673 = vmatpush1.msra.mxu0 0.0
      %2674 = vmatprep.mubr.f32.mxu0 0.0
      %2675 = vmatmul.mubr.f32.gmra.mrb[0].mxu0 %v2515
      %v2676 = vpop.f32.mrb[0].mxu0
      %v2677 = vadd.f32 0.0, %v2676
      %v2678 = vpop.f32.mrb[0].mxu0
      %2679 = vmatprep.mubr.f32.mxu0 0.0
      %2680 = vmatmul.mubr.f32.gmra.mrb[0].mxu0 %v2518
      %v2681 = vpop.f32.mrb[0].mxu0
      %v2682 = vadd.f32 0.0, %v2681
      %v2683 = vpop.f32.mrb[0].mxu0
      %2684 = vmatprep.mubr.f32.mxu0 0.0
      %2685 = vmatmul.mubr.f32.gmra.mrb[0].mxu0 %v2521
      %v2686 = vpop.f32.mrb[0].mxu0
      %v2687 = vadd.f32 0.0, %v2686
      %v2688 = vpop.f32.mrb[0].mxu0
      %2689 = vmatprep.mubr.f32.mxu0 0.0
      %2690 = vmatmul.mubr.f32.gmra.mrb[0].mxu0 %v2524
      %v2691 = vpop.f32.mrb[0].mxu0
      %v2692 = vadd.f32 0.0, %v2691
      %v2693 = vpop.f32.mrb[0].mxu0
      %2694 = vmatprep.mubr.f32.mxu0 0.0
      %2695 = vmatmul.mubr.f32.gmra.mrb[0].mxu0 %v2527
      %v2696 = vpop.f32.mrb[0].mxu0
      %v2697 = vadd.f32 0.0, %v2696
      %v2698 = vpop.f32.mrb[0].mxu0
      %2699 = vmatprep.mubr.f32.mxu0 0.0
      %2700 = vmatmul.mubr.f32.gmra.mrb[0].mxu0 %v2530
      %v2701 = vpop.f32.mrb[0].mxu0
      %v2702 = vadd.f32 0.0, %v2701
      %v2703 = vpop.f32.mrb[0].mxu0
      %2704 = vmatprep.mubr.f32.mxu0 0.0
      %2705 = vmatmul.mubr.f32.gmra.mrb[0].mxu0 %v2533
      %v2706 = vpop.f32.mrb[0].mxu0
      %v2707 = vadd.f32 0.0, %v2706
      %v2708 = vpop.f32.mrb[0].mxu0
      %2709 = vmatprep.mubr.f32.mxu0 0.0
      %2710 = vmatmul.mubr.f32.gmra.mrb[0].mxu0 %v2536
      %v2711 = vpop.f32.mrb[0].mxu0
      %v2712 = vadd.f32 0.0, %v2711
      %v2713 = vpop.f32.mrb[0].mxu0
      %2714 = vmatprep.mubr.f32.mxu0 0.0
      %2715 = vmatmul.mubr.f32.gmra.mrb[0].mxu0 %v2539
      %v2716 = vpop.f32.mrb[0].mxu0
      %v2717 = vadd.f32 0.0, %v2716
      %v2718 = vpop.f32.mrb[0].mxu0
      %2719 = vmatprep.mubr.f32.mxu0 0.0
      %2720 = vmatmul.mubr.f32.gmra.mrb[0].mxu0 %v2542
      %v2721 = vpop.f32.mrb[0].mxu0
      %v2722 = vadd.f32 0.0, %v2721
      %v2723 = vpop.f32.mrb[0].mxu0
      %2724 = vmatprep.mubr.f32.mxu0 0.0
      %2725 = vmatmul.mubr.f32.gmra.mrb[0].mxu0 %v2545
      %v2726 = vpop.f32.mrb[0].mxu0
      %v2727 = vadd.f32 0.0, %v2726
      %v2728 = vpop.f32.mrb[0].mxu0
      %2729 = vmatprep.mubr.f32.mxu0 0.0
      %2730 = vmatmul.mubr.f32.gmra.mrb[0].mxu0 %v2548
      %v2731 = vpop.f32.mrb[0].mxu0
      %v2732 = vadd.f32 0.0, %v2731
      %v2733 = vpop.f32.mrb[0].mxu0
      %2734 = vmatprep.mubr.f32.mxu0 0.0
      %2735 = vmatmul.mubr.f32.gmra.mrb[0].mxu0 %v2551
      %v2736 = vpop.f32.mrb[0].mxu0
      %v2737 = vadd.f32 0.0, %v2736
      %v2738 = vpop.f32.mrb[0].mxu0
      %2739 = vmatprep.mubr.f32.mxu0 0.0
      %2740 = vmatmul.mubr.f32.gmra.mrb[0].mxu0 %v2554
      %v2741 = vpop.f32.mrb[0].mxu0
      %v2742 = vadd.f32 0.0, %v2741
      %v2743 = vpop.f32.mrb[0].mxu0
      %2744 = vmatprep.mubr.f32.mxu0 0.0
      %2745 = vmatmul.mubr.f32.gmra.mrb[0].mxu0 %v2557
      %v2746 = vpop.f32.mrb[0].mxu0
      %v2747 = vadd.f32 0.0, %v2746
      %v2748 = vpop.f32.mrb[0].mxu0
      %2749 = vmatprep.mubr.f32.mxu0 0.0
      %2750 = vmatmul.mubr.f32.gmra.mrb[0].mxu0 %v2560
      %v2751 = vpop.f32.mrb[0].mxu0
      %v2752 = vadd.f32 0.0, %v2751
      %v2753 = vpop.f32.mrb[0].mxu0
      %2754 = vmatprep.mubr.f32.mxu0 0.0
      %2755 = vmatmul.mubr.f32.gmra.mrb[0].mxu0 %v2563
      %v2756 = vpop.f32.mrb[0].mxu0
      %v2757 = vadd.f32 0.0, %v2756
      %v2758 = vpop.f32.mrb[0].mxu0
      %2759 = vmatprep.mubr.f32.mxu0 0.0
      %2760 = vmatmul.mubr.f32.gmra.mrb[0].mxu0 %v2566
      %v2761 = vpop.f32.mrb[0].mxu0
      %v2762 = vadd.f32 0.0, %v2761
      %v2763 = vpop.f32.mrb[0].mxu0
      %2764 = vmatprep.mubr.f32.mxu0 0.0
      %2765 = vmatmul.mubr.f32.gmra.mrb[0].mxu0 %v2569
      %v2766 = vpop.f32.mrb[0].mxu0
      %v2767 = vadd.f32 0.0, %v2766
      %v2768 = vpop.f32.mrb[0].mxu0
      %2769 = vmatprep.mubr.f32.mxu0 0.0
      %2770 = vmatmul.mubr.f32.gmra.mrb[0].mxu0 %v2572
      %v2771 = vpop.f32.mrb[0].mxu0
      %v2772 = vadd.f32 0.0, %v2771
      %v2773 = vpop.f32.mrb[0].mxu0
      %2774 = vmatprep.mubr.f32.mxu0 0.0
      %2775 = vmatmul.mubr.f32.gmra.mrb[0].mxu0 %v2575
      %v2776 = vpop.f32.mrb[0].mxu0
      %v2777 = vadd.f32 0.0, %v2776
      %v2778 = vpop.f32.mrb[0].mxu0
      %2779 = vmatprep.mubr.f32.mxu0 0.0
      %2780 = vmatmul.mubr.f32.gmra.mrb[0].mxu0 %v2578
      %v2781 = vpop.f32.mrb[0].mxu0
      %v2782 = vadd.f32 0.0, %v2781
      %v2783 = vpop.f32.mrb[0].mxu0
      %2784 = vmatprep.mubr.f32.mxu0 0.0
      %2785 = vmatmul.mubr.f32.gmra.mrb[0].mxu0 %v2581
      %v2786 = vpop.f32.mrb[0].mxu0
      %v2787 = vadd.f32 0.0, %v2786
      %v2788 = vpop.f32.mrb[0].mxu0
      %2789 = vmatprep.mubr.f32.mxu0 0.0
      %2790 = vmatmul.mubr.f32.gmra.mrb[0].mxu0 %v2584
      %v2791 = vpop.f32.mrb[0].mxu0
      %v2792 = vadd.f32 0.0, %v2791
      %v2793 = vpop.f32.mrb[0].mxu0
      %2794 = vmatprep.mubr.f32.mxu0 0.0
      %2795 = vmatmul.mubr.f32.gmra.mrb[0].mxu0 %v2587
      %v2796 = vpop.f32.mrb[0].mxu0
      %v2797 = vadd.f32 0.0, %v2796
      %v2798 = vpop.f32.mrb[0].mxu0
      %2799 = vmatprep.mubr.f32.mxu0 0.0
      %2800 = vmatmul.mubr.f32.gmra.mrb[0].mxu0 %v2590
      %v2801 = vpop.f32.mrb[0].mxu0
      %v2802 = vadd.f32 0.0, %v2801
      %v2803 = vpop.f32.mrb[0].mxu0
      %2804 = vmatprep.mubr.f32.mxu0 0.0
      %2805 = vmatmul.mubr.f32.gmra.mrb[0].mxu0 %v2593
      %v2806 = vpop.f32.mrb[0].mxu0
      %v2807 = vadd.f32 0.0, %v2806
      %v2808 = vpop.f32.mrb[0].mxu0
      %2809 = vmatprep.mubr.f32.mxu0 0.0
      %2810 = vmatmul.mubr.f32.gmra.mrb[0].mxu0 %v2596
      %v2811 = vpop.f32.mrb[0].mxu0
      %v2812 = vadd.f32 0.0, %v2811
      %v2813 = vpop.f32.mrb[0].mxu0
      %2814 = vmatprep.mubr.f32.mxu0 0.0
      %2815 = vmatmul.mubr.f32.gmra.mrb[0].mxu0 %v2599
      %v2816 = vpop.f32.mrb[0].mxu0
      %v2817 = vadd.f32 0.0, %v2816
      %v2818 = vpop.f32.mrb[0].mxu0
      %2819 = vmatprep.mubr.f32.mxu0 0.0
      %2820 = vmatmul.mubr.f32.gmra.mrb[0].mxu0 %v2602
      %v2821 = vpop.f32.mrb[0].mxu0
      %v2822 = vadd.f32 0.0, %v2821
      %v2823 = vpop.f32.mrb[0].mxu0
      %2824 = vmatprep.mubr.f32.mxu0 0.0
      %2825 = vmatmul.mubr.f32.gmra.mrb[0].mxu0 %v2605
      %v2826 = vpop.f32.mrb[0].mxu0
      %v2827 = vadd.f32 0.0, %v2826
      %v2828 = vpop.f32.mrb[0].mxu0
      %2829 = vmatprep.mubr.f32.mxu0 0.0
      %2830 = vmatmul.mubr.f32.gmra.mrb[0].mxu0 %v2608
      %v2831 = vpop.f32.mrb[0].mxu0
      %v2832 = vadd.f32 0.0, %v2831
      %v2833 = vpop.f32.mrb[0].mxu0
      %2834 = vdwg.mxu0
      %v2835 = vadd.f32 %v2447, %v2677
      %v2836 = vadd.f32 %v2448, %v2682
      %v2837 = vadd.f32 %v2449, %v2687
      %v2838 = vadd.f32 %v2450, %v2692
      %v2839 = vadd.f32 %v2451, %v2697
      %v2840 = vadd.f32 %v2452, %v2702
      %v2841 = vadd.f32 %v2453, %v2707
      %v2842 = vadd.f32 %v2454, %v2712
      %v2843 = vadd.f32 %v2455, %v2717
      %v2844 = vadd.f32 %v2456, %v2722
      %v2845 = vadd.f32 %v2457, %v2727
      %v2846 = vadd.f32 %v2458, %v2732
      %v2847 = vadd.f32 %v2459, %v2737
      %v2848 = vadd.f32 %v2460, %v2742
      %v2849 = vadd.f32 %v2461, %v2747
      %v2850 = vadd.f32 %v2462, %v2752
      %v2851 = vadd.f32 %v2463, %v2757
      %v2852 = vadd.f32 %v2464, %v2762
      %v2853 = vadd.f32 %v2465, %v2767
      %v2854 = vadd.f32 %v2466, %v2772
      %v2855 = vadd.f32 %v2467, %v2777
      %v2856 = vadd.f32 %v2468, %v2782
      %v2857 = vadd.f32 %v2469, %v2787
      %v2858 = vadd.f32 %v2470, %v2792
      %v2859 = vadd.f32 %v2471, %v2797
      %v2860 = vadd.f32 %v2472, %v2802
      %v2861 = vadd.f32 %v2473, %v2807
      %v2862 = vadd.f32 %v2474, %v2812
      %v2863 = vadd.f32 %v2475, %v2817
      %v2864 = vadd.f32 %v2476, %v2822
      %v2865 = vadd.f32 %v2477, %v2827
      %v2866 = vadd.f32 %v2478, %v2832
      %v2867 = vld [vmem:[%s2479 + $0x1] sm:$0xff]
      %v2868 = vld [vmem:[%s2479 + $0x9] sm:$0xff]
      %v2869 = vld [vmem:[%s2479 + $0x19] sm:$0xff]
      %v2870 = vld [vmem:[%s2479 + $0x21] sm:$0xff]
      %v2871 = vld [vmem:[%s2479 + $0x31] sm:$0xff]
      %v2872 = vld [vmem:[%s2479 + $0x39] sm:$0xff]
      %v2873 = vld [vmem:[%s2479 + $0x49] sm:$0xff]
      %v2874 = vld [vmem:[%s2479 + $0x51] sm:$0xff]
      %v2875 = vld [vmem:[%s2479 + $0x61] sm:$0xff]
      %v2876 = vld [vmem:[%s2479 + $0x69] sm:$0xff]
      %v2877 = vld [vmem:[%s2479 + $0x79] sm:$0xff]
      %v2878 = vld [vmem:[%s2479 + $0x81] sm:$0xff]
      %v2879 = vld [vmem:[%s2479 + $0x91] sm:$0xff]
      %v2880 = vld [vmem:[%s2479 + $0x99] sm:$0xff]
      %v2881 = vld [vmem:[%s2479 + $0xa9] sm:$0xff]
      %v2882 = vld [vmem:[%s2479 + $0xb1] sm:$0xff]
      %v2883 = vld [vmem:[%s2479 + $0xc1] sm:$0xff]
      %v2884 = vld [vmem:[%s2479 + $0xc9] sm:$0xff]
      %v2885 = vld [vmem:[%s2479 + $0xd9] sm:$0xff]
      %v2886 = vld [vmem:[%s2479 + $0xe1] sm:$0xff]
      %v2887 = vld [vmem:[%s2479 + $0xf1] sm:$0xff]
      %v2888 = vld [vmem:[%s2479 + $0xf9] sm:$0xff]
      %v2889 = vld [vmem:[%s2479 + $0x109] sm:$0xff]
      %v2890 = vld [vmem:[%s2479 + $0x111] sm:$0xff]
      %v2891 = vld [vmem:[%s2479 + $0x121] sm:$0xff]
      %v2892 = vld [vmem:[%s2479 + $0x129] sm:$0xff]
      %v2893 = vld [vmem:[%s2479 + $0x139] sm:$0xff]
      %v2894 = vld [vmem:[%s2479 + $0x141] sm:$0xff]
      %v2895 = vld [vmem:[%s2479 + $0x151] sm:$0xff]
      %v2896 = vld [vmem:[%s2479 + $0x159] sm:$0xff]
      %v2897 = vld [vmem:[%s2479 + $0x169] sm:$0xff]
      %v2898 = vld [vmem:[%s2479 + $0x171] sm:$0xff]
      %s2899 = scalar_lea.vmem %s1, 56
      %v2900 = vld [vmem:[%s2899] sm:$0xff]
      %v2902 = vsel %vm287, %v2867, 0
      %v2905 = vsel %vm287, %v2868, 0
      %v2908 = vsel %vm287, %v2869, 0
      %v2911 = vsel %vm287, %v2870, 0
      %v2914 = vsel %vm287, %v2871, 0
      %v2917 = vsel %vm287, %v2872, 0
      %v2920 = vsel %vm287, %v2873, 0
      %v2923 = vsel %vm287, %v2874, 0
      %v2926 = vsel %vm287, %v2875, 0
      %v2929 = vsel %vm287, %v2876, 0
      %v2932 = vsel %vm287, %v2877, 0
      %v2935 = vsel %vm287, %v2878, 0
      %v2938 = vsel %vm287, %v2879, 0
      %v2941 = vsel %vm287, %v2880, 0
      %v2944 = vsel %vm287, %v2881, 0
      %v2947 = vsel %vm287, %v2882, 0
      %v2950 = vsel %vm287, %v2883, 0
      %v2953 = vsel %vm287, %v2884, 0
      %v2956 = vsel %vm287, %v2885, 0
      %v2959 = vsel %vm287, %v2886, 0
      %v2962 = vsel %vm287, %v2887, 0
      %v2965 = vsel %vm287, %v2888, 0
      %v2968 = vsel %vm287, %v2889, 0
      %v2971 = vsel %vm287, %v2890, 0
      %v2974 = vsel %vm287, %v2891, 0
      %v2977 = vsel %vm287, %v2892, 0
      %v2980 = vsel %vm287, %v2893, 0
      %v2983 = vsel %vm287, %v2894, 0
      %v2986 = vsel %vm287, %v2895, 0
      %v2989 = vsel %vm287, %v2896, 0
      %v2992 = vsel %vm287, %v2897, 0
      %v2995 = vsel %vm287, %v2898, 0
      %2997 = vmatprep.subr.mxu0 0.0
      %2998 = vmatpush1.msra.mxu0 %v2900
      %2999 = vmatprep.subr.mxu0 0.0
      %3000 = vmatpush1.msra.mxu0 0.0
      %3001 = vmatprep.subr.mxu0 0.0
      %3002 = vmatpush1.msra.mxu0 0.0
      %3003 = vmatprep.subr.mxu0 0.0
      %3004 = vmatpush1.msra.mxu0 0.0
      %3005 = vmatprep.subr.mxu0 0.0
      %3006 = vmatpush1.msra.mxu0 0.0
      %3007 = vmatprep.subr.mxu0 0.0
      %3008 = vmatpush1.msra.mxu0 0.0
      %3009 = vmatprep.subr.mxu0 0.0
      %3010 = vmatpush1.msra.mxu0 0.0
      %3011 = vmatprep.subr.mxu0 0.0
      %3012 = vmatpush1.msra.mxu0 0.0
      %3013 = vmatprep.subr.mxu0 0.0
      %3014 = vmatpush1.msra.mxu0 0.0
      %3015 = vmatprep.subr.mxu0 0.0
      %3016 = vmatpush1.msra.mxu0 0.0
      %3017 = vmatprep.subr.mxu0 0.0
      %3018 = vmatpush1.msra.mxu0 0.0
      %3019 = vmatprep.subr.mxu0 0.0
      %3020 = vmatpush1.msra.mxu0 0.0
      %3021 = vmatprep.subr.mxu0 0.0
      %3022 = vmatpush1.msra.mxu0 0.0
      %3023 = vmatprep.subr.mxu0 0.0
      %3024 = vmatpush1.msra.mxu0 0.0
      %3025 = vmatprep.subr.mxu0 0.0
      %3026 = vmatpush1.msra.mxu0 0.0
      %3027 = vmatprep.subr.mxu0 0.0
      %3028 = vmatpush1.msra.mxu0 0.0
      %3029 = vmatprep.subr.mxu0 0.0
      %3030 = vmatpush1.msra.mxu0 0.0
      %3031 = vmatprep.subr.mxu0 0.0
      %3032 = vmatpush1.msra.mxu0 0.0
      %3033 = vmatprep.subr.mxu0 0.0
      %3034 = vmatpush1.msra.mxu0 0.0
      %3035 = vmatprep.subr.mxu0 0.0
      %3036 = vmatpush1.msra.mxu0 0.0
      %3037 = vmatprep.subr.mxu0 0.0
      %3038 = vmatpush1.msra.mxu0 0.0
      %3039 = vmatprep.subr.mxu0 0.0
      %3040 = vmatpush1.msra.mxu0 0.0
      %3041 = vmatprep.subr.mxu0 0.0
      %3042 = vmatpush1.msra.mxu0 0.0
      %3043 = vmatprep.subr.mxu0 0.0
      %3044 = vmatpush1.msra.mxu0 0.0
      %3045 = vmatprep.subr.mxu0 0.0
      %3046 = vmatpush1.msra.mxu0 0.0
      %3047 = vmatprep.subr.mxu0 0.0
      %3048 = vmatpush1.msra.mxu0 0.0
      %3049 = vmatprep.subr.mxu0 0.0
      %3050 = vmatpush1.msra.mxu0 0.0
      %3051 = vmatprep.subr.mxu0 0.0
      %3052 = vmatpush1.msra.mxu0 0.0
      %3053 = vmatprep.subr.mxu0 0.0
      %3054 = vmatpush1.msra.mxu0 0.0
      %3055 = vmatprep.subr.mxu0 0.0
      %3056 = vmatpush1.msra.mxu0 0.0
      %3057 = vmatprep.subr.mxu0 0.0
      %3058 = vmatpush1.msra.mxu0 0.0
      %3059 = vmatprep.subr.mxu0 0.0
      %3060 = vmatpush1.msra.mxu0 0.0
      %3061 = vmatprep.mubr.f32.mxu0 0.0
      %3062 = vmatmul.mubr.f32.gmra.mrb[0].mxu0 %v2902
      %v3063 = vpop.f32.mrb[0].mxu0
      %v3064 = vadd.f32 0.0, %v3063
      %v3065 = vpop.f32.mrb[0].mxu0
      %3066 = vmatprep.mubr.f32.mxu0 0.0
      %3067 = vmatmul.mubr.f32.gmra.mrb[0].mxu0 %v2905
      %v3068 = vpop.f32.mrb[0].mxu0
      %v3069 = vadd.f32 0.0, %v3068
      %v3070 = vpop.f32.mrb[0].mxu0
      %3071 = vmatprep.mubr.f32.mxu0 0.0
      %3072 = vmatmul.mubr.f32.gmra.mrb[0].mxu0 %v2908
      %v3073 = vpop.f32.mrb[0].mxu0
      %v3074 = vadd.f32 0.0, %v3073
      %v3075 = vpop.f32.mrb[0].mxu0
      %3076 = vmatprep.mubr.f32.mxu0 0.0
      %3077 = vmatmul.mubr.f32.gmra.mrb[0].mxu0 %v2911
      %v3078 = vpop.f32.mrb[0].mxu0
      %v3079 = vadd.f32 0.0, %v3078
      %v3080 = vpop.f32.mrb[0].mxu0
      %3081 = vmatprep.mubr.f32.mxu0 0.0
      %3082 = vmatmul.mubr.f32.gmra.mrb[0].mxu0 %v2914
      %v3083 = vpop.f32.mrb[0].mxu0
      %v3084 = vadd.f32 0.0, %v3083
      %v3085 = vpop.f32.mrb[0].mxu0
      %3086 = vmatprep.mubr.f32.mxu0 0.0
      %3087 = vmatmul.mubr.f32.gmra.mrb[0].mxu0 %v2917
      %v3088 = vpop.f32.mrb[0].mxu0
      %v3089 = vadd.f32 0.0, %v3088
      %v3090 = vpop.f32.mrb[0].mxu0
      %3091 = vmatprep.mubr.f32.mxu0 0.0
      %3092 = vmatmul.mubr.f32.gmra.mrb[0].mxu0 %v2920
      %v3093 = vpop.f32.mrb[0].mxu0
      %v3094 = vadd.f32 0.0, %v3093
      %v3095 = vpop.f32.mrb[0].mxu0
      %3096 = vmatprep.mubr.f32.mxu0 0.0
      %3097 = vmatmul.mubr.f32.gmra.mrb[0].mxu0 %v2923
      %v3098 = vpop.f32.mrb[0].mxu0
      %v3099 = vadd.f32 0.0, %v3098
      %v3100 = vpop.f32.mrb[0].mxu0
      %3101 = vmatprep.mubr.f32.mxu0 0.0
      %3102 = vmatmul.mubr.f32.gmra.mrb[0].mxu0 %v2926
      %v3103 = vpop.f32.mrb[0].mxu0
      %v3104 = vadd.f32 0.0, %v3103
      %v3105 = vpop.f32.mrb[0].mxu0
      %3106 = vmatprep.mubr.f32.mxu0 0.0
      %3107 = vmatmul.mubr.f32.gmra.mrb[0].mxu0 %v2929
      %v3108 = vpop.f32.mrb[0].mxu0
      %v3109 = vadd.f32 0.0, %v3108
      %v3110 = vpop.f32.mrb[0].mxu0
      %3111 = vmatprep.mubr.f32.mxu0 0.0
      %3112 = vmatmul.mubr.f32.gmra.mrb[0].mxu0 %v2932
      %v3113 = vpop.f32.mrb[0].mxu0
      %v3114 = vadd.f32 0.0, %v3113
      %v3115 = vpop.f32.mrb[0].mxu0
      %3116 = vmatprep.mubr.f32.mxu0 0.0
      %3117 = vmatmul.mubr.f32.gmra.mrb[0].mxu0 %v2935
      %v3118 = vpop.f32.mrb[0].mxu0
      %v3119 = vadd.f32 0.0, %v3118
      %v3120 = vpop.f32.mrb[0].mxu0
      %3121 = vmatprep.mubr.f32.mxu0 0.0
      %3122 = vmatmul.mubr.f32.gmra.mrb[0].mxu0 %v2938
      %v3123 = vpop.f32.mrb[0].mxu0
      %v3124 = vadd.f32 0.0, %v3123
      %v3125 = vpop.f32.mrb[0].mxu0
      %3126 = vmatprep.mubr.f32.mxu0 0.0
      %3127 = vmatmul.mubr.f32.gmra.mrb[0].mxu0 %v2941
      %v3128 = vpop.f32.mrb[0].mxu0
      %v3129 = vadd.f32 0.0, %v3128
      %v3130 = vpop.f32.mrb[0].mxu0
      %3131 = vmatprep.mubr.f32.mxu0 0.0
      %3132 = vmatmul.mubr.f32.gmra.mrb[0].mxu0 %v2944
      %v3133 = vpop.f32.mrb[0].mxu0
      %v3134 = vadd.f32 0.0, %v3133
      %v3135 = vpop.f32.mrb[0].mxu0
      %3136 = vmatprep.mubr.f32.mxu0 0.0
      %3137 = vmatmul.mubr.f32.gmra.mrb[0].mxu0 %v2947
      %v3138 = vpop.f32.mrb[0].mxu0
      %v3139 = vadd.f32 0.0, %v3138
      %v3140 = vpop.f32.mrb[0].mxu0
      %3141 = vmatprep.mubr.f32.mxu0 0.0
      %3142 = vmatmul.mubr.f32.gmra.mrb[0].mxu0 %v2950
      %v3143 = vpop.f32.mrb[0].mxu0
      %v3144 = vadd.f32 0.0, %v3143
      %v3145 = vpop.f32.mrb[0].mxu0
      %3146 = vmatprep.mubr.f32.mxu0 0.0
      %3147 = vmatmul.mubr.f32.gmra.mrb[0].mxu0 %v2953
      %v3148 = vpop.f32.mrb[0].mxu0
      %v3149 = vadd.f32 0.0, %v3148
      %v3150 = vpop.f32.mrb[0].mxu0
      %3151 = vmatprep.mubr.f32.mxu0 0.0
      %3152 = vmatmul.mubr.f32.gmra.mrb[0].mxu0 %v2956
      %v3153 = vpop.f32.mrb[0].mxu0
      %v3154 = vadd.f32 0.0, %v3153
      %v3155 = vpop.f32.mrb[0].mxu0
      %3156 = vmatprep.mubr.f32.mxu0 0.0
      %3157 = vmatmul.mubr.f32.gmra.mrb[0].mxu0 %v2959
      %v3158 = vpop.f32.mrb[0].mxu0
      %v3159 = vadd.f32 0.0, %v3158
      %v3160 = vpop.f32.mrb[0].mxu0
      %3161 = vmatprep.mubr.f32.mxu0 0.0
      %3162 = vmatmul.mubr.f32.gmra.mrb[0].mxu0 %v2962
      %v3163 = vpop.f32.mrb[0].mxu0
      %v3164 = vadd.f32 0.0, %v3163
      %v3165 = vpop.f32.mrb[0].mxu0
      %3166 = vmatprep.mubr.f32.mxu0 0.0
      %3167 = vmatmul.mubr.f32.gmra.mrb[0].mxu0 %v2965
      %v3168 = vpop.f32.mrb[0].mxu0
      %v3169 = vadd.f32 0.0, %v3168
      %v3170 = vpop.f32.mrb[0].mxu0
      %3171 = vmatprep.mubr.f32.mxu0 0.0
      %3172 = vmatmul.mubr.f32.gmra.mrb[0].mxu0 %v2968
      %v3173 = vpop.f32.mrb[0].mxu0
      %v3174 = vadd.f32 0.0, %v3173
      %v3175 = vpop.f32.mrb[0].mxu0
      %3176 = vmatprep.mubr.f32.mxu0 0.0
      %3177 = vmatmul.mubr.f32.gmra.mrb[0].mxu0 %v2971
      %v3178 = vpop.f32.mrb[0].mxu0
      %v3179 = vadd.f32 0.0, %v3178
      %v3180 = vpop.f32.mrb[0].mxu0
      %3181 = vmatprep.mubr.f32.mxu0 0.0
      %3182 = vmatmul.mubr.f32.gmra.mrb[0].mxu0 %v2974
      %v3183 = vpop.f32.mrb[0].mxu0
      %v3184 = vadd.f32 0.0, %v3183
      %v3185 = vpop.f32.mrb[0].mxu0
      %3186 = vmatprep.mubr.f32.mxu0 0.0
      %3187 = vmatmul.mubr.f32.gmra.mrb[0].mxu0 %v2977
      %v3188 = vpop.f32.mrb[0].mxu0
      %v3189 = vadd.f32 0.0, %v3188
      %v3190 = vpop.f32.mrb[0].mxu0
      %3191 = vmatprep.mubr.f32.mxu0 0.0
      %3192 = vmatmul.mubr.f32.gmra.mrb[0].mxu0 %v2980
      %v3193 = vpop.f32.mrb[0].mxu0
      %v3194 = vadd.f32 0.0, %v3193
      %v3195 = vpop.f32.mrb[0].mxu0
      %3196 = vmatprep.mubr.f32.mxu0 0.0
      %3197 = vmatmul.mubr.f32.gmra.mrb[0].mxu0 %v2983
      %v3198 = vpop.f32.mrb[0].mxu0
      %v3199 = vadd.f32 0.0, %v3198
      %v3200 = vpop.f32.mrb[0].mxu0
      %3201 = vmatprep.mubr.f32.mxu0 0.0
      %3202 = vmatmul.mubr.f32.gmra.mrb[0].mxu0 %v2986
      %v3203 = vpop.f32.mrb[0].mxu0
      %v3204 = vadd.f32 0.0, %v3203
      %v3205 = vpop.f32.mrb[0].mxu0
      %3206 = vmatprep.mubr.f32.mxu0 0.0
      %3207 = vmatmul.mubr.f32.gmra.mrb[0].mxu0 %v2989
      %v3208 = vpop.f32.mrb[0].mxu0
      %v3209 = vadd.f32 0.0, %v3208
      %v3210 = vpop.f32.mrb[0].mxu0
      %3211 = vmatprep.mubr.f32.mxu0 0.0
      %3212 = vmatmul.mubr.f32.gmra.mrb[0].mxu0 %v2992
      %v3213 = vpop.f32.mrb[0].mxu0
      %v3214 = vadd.f32 0.0, %v3213
      %v3215 = vpop.f32.mrb[0].mxu0
      %3216 = vmatprep.mubr.f32.mxu0 0.0
      %3217 = vmatmul.mubr.f32.gmra.mrb[0].mxu0 %v2995
      %v3218 = vpop.f32.mrb[0].mxu0
      %v3219 = vadd.f32 0.0, %v3218
      %v3220 = vpop.f32.mrb[0].mxu0
      %3221 = vdwg.mxu0
      %v3222 = vadd.f32 %v2835, %v3064
      %v3223 = vadd.f32 %v2836, %v3069
      %v3224 = vadd.f32 %v2837, %v3074
      %v3225 = vadd.f32 %v2838, %v3079
      %v3226 = vadd.f32 %v2839, %v3084
      %v3227 = vadd.f32 %v2840, %v3089
      %v3228 = vadd.f32 %v2841, %v3094
      %v3229 = vadd.f32 %v2842, %v3099
      %v3230 = vadd.f32 %v2843, %v3104
      %v3231 = vadd.f32 %v2844, %v3109
      %v3232 = vadd.f32 %v2845, %v3114
      %v3233 = vadd.f32 %v2846, %v3119
      %v3234 = vadd.f32 %v2847, %v3124
      %v3235 = vadd.f32 %v2848, %v3129
      %v3236 = vadd.f32 %v2849, %v3134
      %v3237 = vadd.f32 %v2850, %v3139
      %v3238 = vadd.f32 %v2851, %v3144
      %v3239 = vadd.f32 %v2852, %v3149
      %v3240 = vadd.f32 %v2853, %v3154
      %v3241 = vadd.f32 %v2854, %v3159
      %v3242 = vadd.f32 %v2855, %v3164
      %v3243 = vadd.f32 %v2856, %v3169
      %v3244 = vadd.f32 %v2857, %v3174
      %v3245 = vadd.f32 %v2858, %v3179
      %v3246 = vadd.f32 %v2859, %v3184
      %v3247 = vadd.f32 %v2860, %v3189
      %v3248 = vadd.f32 %v2861, %v3194
      %v3249 = vadd.f32 %v2862, %v3199
      %v3250 = vadd.f32 %v2863, %v3204
      %v3251 = vadd.f32 %v2864, %v3209
      %v3252 = vadd.f32 %v2865, %v3214
      %v3253 = vadd.f32 %v2866, %v3219
      %v3254 = vld [vmem:[%s2479 + $0x2] sm:$0xff]
      %v3255 = vld [vmem:[%s2479 + $0xa] sm:$0xff]
      %v3256 = vld [vmem:[%s2479 + $0x1a] sm:$0xff]
      %v3257 = vld [vmem:[%s2479 + $0x22] sm:$0xff]
      %v3258 = vld [vmem:[%s2479 + $0x32] sm:$0xff]
      %v3259 = vld [vmem:[%s2479 + $0x3a] sm:$0xff]
      %v3260 = vld [vmem:[%s2479 + $0x4a] sm:$0xff]
      %v3261 = vld [vmem:[%s2479 + $0x52] sm:$0xff]
      %v3262 = vld [vmem:[%s2479 + $0x62] sm:$0xff]
      %v3263 = vld [vmem:[%s2479 + $0x6a] sm:$0xff]
      %v3264 = vld [vmem:[%s2479 + $0x7a] sm:$0xff]
      %v3265 = vld [vmem:[%s2479 + $0x82] sm:$0xff]
      %v3266 = vld [vmem:[%s2479 + $0x92] sm:$0xff]
      %v3267 = vld [vmem:[%s2479 + $0x9a] sm:$0xff]
      %v3268 = vld [vmem:[%s2479 + $0xaa] sm:$0xff]
      %v3269 = vld [vmem:[%s2479 + $0xb2] sm:$0xff]
      %v3270 = vld [vmem:[%s2479 + $0xc2] sm:$0xff]
      %v3271 = vld [vmem:[%s2479 + $0xca] sm:$0xff]
      %v3272 = vld [vmem:[%s2479 + $0xda] sm:$0xff]
      %v3273 = vld [vmem:[%s2479 + $0xe2] sm:$0xff]
      %v3274 = vld [vmem:[%s2479 + $0xf2] sm:$0xff]
      %v3275 = vld [vmem:[%s2479 + $0xfa] sm:$0xff]
      %v3276 = vld [vmem:[%s2479 + $0x10a] sm:$0xff]
      %v3277 = vld [vmem:[%s2479 + $0x112] sm:$0xff]
      %v3278 = vld [vmem:[%s2479 + $0x122] sm:$0xff]
      %v3279 = vld [vmem:[%s2479 + $0x12a] sm:$0xff]
      %v3280 = vld [vmem:[%s2479 + $0x13a] sm:$0xff]
      %v3281 = vld [vmem:[%s2479 + $0x142] sm:$0xff]
      %v3282 = vld [vmem:[%s2479 + $0x152] sm:$0xff]
      %v3283 = vld [vmem:[%s2479 + $0x15a] sm:$0xff]
      %v3284 = vld [vmem:[%s2479 + $0x16a] sm:$0xff]
      %v3285 = vld [vmem:[%s2479 + $0x172] sm:$0xff]
      %s3286 = scalar_lea.vmem %s1, 64
      %v3287 = vld [vmem:[%s3286] sm:$0xff]
      %v3289 = vsel %vm287, %v3254, 0
      %v3292 = vsel %vm287, %v3255, 0
      %v3295 = vsel %vm287, %v3256, 0
      %v3298 = vsel %vm287, %v3257, 0
      %v3301 = vsel %vm287, %v3258, 0
      %v3304 = vsel %vm287, %v3259, 0
      %v3307 = vsel %vm287, %v3260, 0
      %v3310 = vsel %vm287, %v3261, 0
      %v3313 = vsel %vm287, %v3262, 0
      %v3316 = vsel %vm287, %v3263, 0
      %v3319 = vsel %vm287, %v3264, 0
      %v3322 = vsel %vm287, %v3265, 0
      %v3325 = vsel %vm287, %v3266, 0
      %v3328 = vsel %vm287, %v3267, 0
      %v3331 = vsel %vm287, %v3268, 0
      %v3334 = vsel %vm287, %v3269, 0
      %v3337 = vsel %vm287, %v3270, 0
      %v3340 = vsel %vm287, %v3271, 0
      %v3343 = vsel %vm287, %v3272, 0
      %v3346 = vsel %vm287, %v3273, 0
      %v3349 = vsel %vm287, %v3274, 0
      %v3352 = vsel %vm287, %v3275, 0
      %v3355 = vsel %vm287, %v3276, 0
      %v3358 = vsel %vm287, %v3277, 0
      %v3361 = vsel %vm287, %v3278, 0
      %v3364 = vsel %vm287, %v3279, 0
      %v3367 = vsel %vm287, %v3280, 0
      %v3370 = vsel %vm287, %v3281, 0
      %v3373 = vsel %vm287, %v3282, 0
      %v3376 = vsel %vm287, %v3283, 0
      %v3379 = vsel %vm287, %v3284, 0
      %v3382 = vsel %vm287, %v3285, 0
      %3384 = vmatprep.subr.mxu0 0.0
      %3385 = vmatpush1.msra.mxu0 %v3287
      %3386 = vmatprep.subr.mxu0 0.0
      %3387 = vmatpush1.msra.mxu0 0.0
      %3388 = vmatprep.subr.mxu0 0.0
      %3389 = vmatpush1.msra.mxu0 0.0
      %3390 = vmatprep.subr.mxu0 0.0
      %3391 = vmatpush1.msra.mxu0 0.0
      %3392 = vmatprep.subr.mxu0 0.0
      %3393 = vmatpush1.msra.mxu0 0.0
      %3394 = vmatprep.subr.mxu0 0.0
      %3395 = vmatpush1.msra.mxu0 0.0
      %3396 = vmatprep.subr.mxu0 0.0
      %3397 = vmatpush1.msra.mxu0 0.0
      %3398 = vmatprep.subr.mxu0 0.0
      %3399 = vmatpush1.msra.mxu0 0.0
      %3400 = vmatprep.subr.mxu0 0.0
      %3401 = vmatpush1.msra.mxu0 0.0
      %3402 = vmatprep.subr.mxu0 0.0
      %3403 = vmatpush1.msra.mxu0 0.0
      %3404 = vmatprep.subr.mxu0 0.0
      %3405 = vmatpush1.msra.mxu0 0.0
      %3406 = vmatprep.subr.mxu0 0.0
      %3407 = vmatpush1.msra.mxu0 0.0
      %3408 = vmatprep.subr.mxu0 0.0
      %3409 = vmatpush1.msra.mxu0 0.0
      %3410 = vmatprep.subr.mxu0 0.0
      %3411 = vmatpush1.msra.mxu0 0.0
      %3412 = vmatprep.subr.mxu0 0.0
      %3413 = vmatpush1.msra.mxu0 0.0
      %3414 = vmatprep.subr.mxu0 0.0
      %3415 = vmatpush1.msra.mxu0 0.0
      %3416 = vmatprep.subr.mxu0 0.0
      %3417 = vmatpush1.msra.mxu0 0.0
      %3418 = vmatprep.subr.mxu0 0.0
      %3419 = vmatpush1.msra.mxu0 0.0
      %3420 = vmatprep.subr.mxu0 0.0
      %3421 = vmatpush1.msra.mxu0 0.0
      %3422 = vmatprep.subr.mxu0 0.0
      %3423 = vmatpush1.msra.mxu0 0.0
      %3424 = vmatprep.subr.mxu0 0.0
      %3425 = vmatpush1.msra.mxu0 0.0
      %3426 = vmatprep.subr.mxu0 0.0
      %3427 = vmatpush1.msra.mxu0 0.0
      %3428 = vmatprep.subr.mxu0 0.0
      %3429 = vmatpush1.msra.mxu0 0.0
      %3430 = vmatprep.subr.mxu0 0.0
      %3431 = vmatpush1.msra.mxu0 0.0
      %3432 = vmatprep.subr.mxu0 0.0
      %3433 = vmatpush1.msra.mxu0 0.0
      %3434 = vmatprep.subr.mxu0 0.0
      %3435 = vmatpush1.msra.mxu0 0.0
      %3436 = vmatprep.subr.mxu0 0.0
      %3437 = vmatpush1.msra.mxu0 0.0
      %3438 = vmatprep.subr.mxu0 0.0
      %3439 = vmatpush1.msra.mxu0 0.0
      %3440 = vmatprep.subr.mxu0 0.0
      %3441 = vmatpush1.msra.mxu0 0.0
      %3442 = vmatprep.subr.mxu0 0.0
      %3443 = vmatpush1.msra.mxu0 0.0
      %3444 = vmatprep.subr.mxu0 0.0
      %3445 = vmatpush1.msra.mxu0 0.0
      %3446 = vmatprep.subr.mxu0 0.0
      %3447 = vmatpush1.msra.mxu0 0.0
      %3448 = vmatprep.mubr.f32.mxu0 0.0
      %3449 = vmatmul.mubr.f32.gmra.mrb[0].mxu0 %v3289
      %v3450 = vpop.f32.mrb[0].mxu0
      %v3451 = vadd.f32 0.0, %v3450
      %v3452 = vpop.f32.mrb[0].mxu0
      %3453 = vmatprep.mubr.f32.mxu0 0.0
      %3454 = vmatmul.mubr.f32.gmra.mrb[0].mxu0 %v3292
      %v3455 = vpop.f32.mrb[0].mxu0
      %v3456 = vadd.f32 0.0, %v3455
      %v3457 = vpop.f32.mrb[0].mxu0
      %3458 = vmatprep.mubr.f32.mxu0 0.0
      %3459 = vmatmul.mubr.f32.gmra.mrb[0].mxu0 %v3295
      %v3460 = vpop.f32.mrb[0].mxu0
      %v3461 = vadd.f32 0.0, %v3460
      %v3462 = vpop.f32.mrb[0].mxu0
      %3463 = vmatprep.mubr.f32.mxu0 0.0
      %3464 = vmatmul.mubr.f32.gmra.mrb[0].mxu0 %v3298
      %v3465 = vpop.f32.mrb[0].mxu0
      %v3466 = vadd.f32 0.0, %v3465
      %v3467 = vpop.f32.mrb[0].mxu0
      %3468 = vmatprep.mubr.f32.mxu0 0.0
      %3469 = vmatmul.mubr.f32.gmra.mrb[0].mxu0 %v3301
      %v3470 = vpop.f32.mrb[0].mxu0
      %v3471 = vadd.f32 0.0, %v3470
      %v3472 = vpop.f32.mrb[0].mxu0
      %3473 = vmatprep.mubr.f32.mxu0 0.0
      %3474 = vmatmul.mubr.f32.gmra.mrb[0].mxu0 %v3304
      %v3475 = vpop.f32.mrb[0].mxu0
      %v3476 = vadd.f32 0.0, %v3475
      %v3477 = vpop.f32.mrb[0].mxu0
      %3478 = vmatprep.mubr.f32.mxu0 0.0
      %3479 = vmatmul.mubr.f32.gmra.mrb[0].mxu0 %v3307
      %v3480 = vpop.f32.mrb[0].mxu0
      %v3481 = vadd.f32 0.0, %v3480
      %v3482 = vpop.f32.mrb[0].mxu0
      %3483 = vmatprep.mubr.f32.mxu0 0.0
      %3484 = vmatmul.mubr.f32.gmra.mrb[0].mxu0 %v3310
      %v3485 = vpop.f32.mrb[0].mxu0
      %v3486 = vadd.f32 0.0, %v3485
      %v3487 = vpop.f32.mrb[0].mxu0
      %3488 = vmatprep.mubr.f32.mxu0 0.0
      %3489 = vmatmul.mubr.f32.gmra.mrb[0].mxu0 %v3313
      %v3490 = vpop.f32.mrb[0].mxu0
      %v3491 = vadd.f32 0.0, %v3490
      %v3492 = vpop.f32.mrb[0].mxu0
      %3493 = vmatprep.mubr.f32.mxu0 0.0
      %3494 = vmatmul.mubr.f32.gmra.mrb[0].mxu0 %v3316
      %v3495 = vpop.f32.mrb[0].mxu0
      %v3496 = vadd.f32 0.0, %v3495
      %v3497 = vpop.f32.mrb[0].mxu0
      %3498 = vmatprep.mubr.f32.mxu0 0.0
      %3499 = vmatmul.mubr.f32.gmra.mrb[0].mxu0 %v3319
      %v3500 = vpop.f32.mrb[0].mxu0
      %v3501 = vadd.f32 0.0, %v3500
      %v3502 = vpop.f32.mrb[0].mxu0
      %3503 = vmatprep.mubr.f32.mxu0 0.0
      %3504 = vmatmul.mubr.f32.gmra.mrb[0].mxu0 %v3322
      %v3505 = vpop.f32.mrb[0].mxu0
      %v3506 = vadd.f32 0.0, %v3505
      %v3507 = vpop.f32.mrb[0].mxu0
      %3508 = vmatprep.mubr.f32.mxu0 0.0
      %3509 = vmatmul.mubr.f32.gmra.mrb[0].mxu0 %v3325
      %v3510 = vpop.f32.mrb[0].mxu0
      %v3511 = vadd.f32 0.0, %v3510
      %v3512 = vpop.f32.mrb[0].mxu0
      %3513 = vmatprep.mubr.f32.mxu0 0.0
      %3514 = vmatmul.mubr.f32.gmra.mrb[0].mxu0 %v3328
      %v3515 = vpop.f32.mrb[0].mxu0
      %v3516 = vadd.f32 0.0, %v3515
      %v3517 = vpop.f32.mrb[0].mxu0
      %3518 = vmatprep.mubr.f32.mxu0 0.0
      %3519 = vmatmul.mubr.f32.gmra.mrb[0].mxu0 %v3331
      %v3520 = vpop.f32.mrb[0].mxu0
      %v3521 = vadd.f32 0.0, %v3520
      %v3522 = vpop.f32.mrb[0].mxu0
      %3523 = vmatprep.mubr.f32.mxu0 0.0
      %3524 = vmatmul.mubr.f32.gmra.mrb[0].mxu0 %v3334
      %v3525 = vpop.f32.mrb[0].mxu0
      %v3526 = vadd.f32 0.0, %v3525
      %v3527 = vpop.f32.mrb[0].mxu0
      %3528 = vmatprep.mubr.f32.mxu0 0.0
      %3529 = vmatmul.mubr.f32.gmra.mrb[0].mxu0 %v3337
      %v3530 = vpop.f32.mrb[0].mxu0
      %v3531 = vadd.f32 0.0, %v3530
      %v3532 = vpop.f32.mrb[0].mxu0
      %3533 = vmatprep.mubr.f32.mxu0 0.0
      %3534 = vmatmul.mubr.f32.gmra.mrb[0].mxu0 %v3340
      %v3535 = vpop.f32.mrb[0].mxu0
      %v3536 = vadd.f32 0.0, %v3535
      %v3537 = vpop.f32.mrb[0].mxu0
      %3538 = vmatprep.mubr.f32.mxu0 0.0
      %3539 = vmatmul.mubr.f32.gmra.mrb[0].mxu0 %v3343
      %v3540 = vpop.f32.mrb[0].mxu0
      %v3541 = vadd.f32 0.0, %v3540
      %v3542 = vpop.f32.mrb[0].mxu0
      %3543 = vmatprep.mubr.f32.mxu0 0.0
      %3544 = vmatmul.mubr.f32.gmra.mrb[0].mxu0 %v3346
      %v3545 = vpop.f32.mrb[0].mxu0
      %v3546 = vadd.f32 0.0, %v3545
      %v3547 = vpop.f32.mrb[0].mxu0
      %3548 = vmatprep.mubr.f32.mxu0 0.0
      %3549 = vmatmul.mubr.f32.gmra.mrb[0].mxu0 %v3349
      %v3550 = vpop.f32.mrb[0].mxu0
      %v3551 = vadd.f32 0.0, %v3550
      %v3552 = vpop.f32.mrb[0].mxu0
      %3553 = vmatprep.mubr.f32.mxu0 0.0
      %3554 = vmatmul.mubr.f32.gmra.mrb[0].mxu0 %v3352
      %v3555 = vpop.f32.mrb[0].mxu0
      %v3556 = vadd.f32 0.0, %v3555
      %v3557 = vpop.f32.mrb[0].mxu0
      %3558 = vmatprep.mubr.f32.mxu0 0.0
      %3559 = vmatmul.mubr.f32.gmra.mrb[0].mxu0 %v3355
      %v3560 = vpop.f32.mrb[0].mxu0
      %v3561 = vadd.f32 0.0, %v3560
      %v3562 = vpop.f32.mrb[0].mxu0
      %3563 = vmatprep.mubr.f32.mxu0 0.0
      %3564 = vmatmul.mubr.f32.gmra.mrb[0].mxu0 %v3358
      %v3565 = vpop.f32.mrb[0].mxu0
      %v3566 = vadd.f32 0.0, %v3565
      %v3567 = vpop.f32.mrb[0].mxu0
      %3568 = vmatprep.mubr.f32.mxu0 0.0
      %3569 = vmatmul.mubr.f32.gmra.mrb[0].mxu0 %v3361
      %v3570 = vpop.f32.mrb[0].mxu0
      %v3571 = vadd.f32 0.0, %v3570
      %v3572 = vpop.f32.mrb[0].mxu0
      %3573 = vmatprep.mubr.f32.mxu0 0.0
      %3574 = vmatmul.mubr.f32.gmra.mrb[0].mxu0 %v3364
      %v3575 = vpop.f32.mrb[0].mxu0
      %v3576 = vadd.f32 0.0, %v3575
      %v3577 = vpop.f32.mrb[0].mxu0
      %3578 = vmatprep.mubr.f32.mxu0 0.0
      %3579 = vmatmul.mubr.f32.gmra.mrb[0].mxu0 %v3367
      %v3580 = vpop.f32.mrb[0].mxu0
      %v3581 = vadd.f32 0.0, %v3580
      %v3582 = vpop.f32.mrb[0].mxu0
      %3583 = vmatprep.mubr.f32.mxu0 0.0
      %3584 = vmatmul.mubr.f32.gmra.mrb[0].mxu0 %v3370
      %v3585 = vpop.f32.mrb[0].mxu0
      %v3586 = vadd.f32 0.0, %v3585
      %v3587 = vpop.f32.mrb[0].mxu0
      %3588 = vmatprep.mubr.f32.mxu0 0.0
      %3589 = vmatmul.mubr.f32.gmra.mrb[0].mxu0 %v3373
      %v3590 = vpop.f32.mrb[0].mxu0
      %v3591 = vadd.f32 0.0, %v3590
      %v3592 = vpop.f32.mrb[0].mxu0
      %3593 = vmatprep.mubr.f32.mxu0 0.0
      %3594 = vmatmul.mubr.f32.gmra.mrb[0].mxu0 %v3376
      %v3595 = vpop.f32.mrb[0].mxu0
      %v3596 = vadd.f32 0.0, %v3595
      %v3597 = vpop.f32.mrb[0].mxu0
      %3598 = vmatprep.mubr.f32.mxu0 0.0
      %3599 = vmatmul.mubr.f32.gmra.mrb[0].mxu0 %v3379
      %v3600 = vpop.f32.mrb[0].mxu0
      %v3601 = vadd.f32 0.0, %v3600
      %v3602 = vpop.f32.mrb[0].mxu0
      %3603 = vmatprep.mubr.f32.mxu0 0.0
      %3604 = vmatmul.mubr.f32.gmra.mrb[0].mxu0 %v3382
      %v3605 = vpop.f32.mrb[0].mxu0
      %v3606 = vadd.f32 0.0, %v3605
      %v3607 = vpop.f32.mrb[0].mxu0
      %3608 = vdwg.mxu0
      %v3609 = vadd.f32 %v3222, %v3451
      %v3610 = vadd.f32 %v3223, %v3456
      %v3611 = vadd.f32 %v3224, %v3461
      %v3612 = vadd.f32 %v3225, %v3466
      %v3613 = vadd.f32 %v3226, %v3471
      %v3614 = vadd.f32 %v3227, %v3476
      %v3615 = vadd.f32 %v3228, %v3481
      %v3616 = vadd.f32 %v3229, %v3486
      %v3617 = vadd.f32 %v3230, %v3491
      %v3618 = vadd.f32 %v3231, %v3496
      %v3619 = vadd.f32 %v3232, %v3501
      %v3620 = vadd.f32 %v3233, %v3506
      %v3621 = vadd.f32 %v3234, %v3511
      %v3622 = vadd.f32 %v3235, %v3516
      %v3623 = vadd.f32 %v3236, %v3521
      %v3624 = vadd.f32 %v3237, %v3526
      %v3625 = vadd.f32 %v3238, %v3531
      %v3626 = vadd.f32 %v3239, %v3536
      %v3627 = vadd.f32 %v3240, %v3541
      %v3628 = vadd.f32 %v3241, %v3546
      %v3629 = vadd.f32 %v3242, %v3551
      %v3630 = vadd.f32 %v3243, %v3556
      %v3631 = vadd.f32 %v3244, %v3561
      %v3632 = vadd.f32 %v3245, %v3566
      %v3633 = vadd.f32 %v3246, %v3571
      %v3634 = vadd.f32 %v3247, %v3576
      %v3635 = vadd.f32 %v3248, %v3581
      %v3636 = vadd.f32 %v3249, %v3586
      %v3637 = vadd.f32 %v3250, %v3591
      %v3638 = vadd.f32 %v3251, %v3596
      %v3639 = vadd.f32 %v3252, %v3601
      %v3640 = vadd.f32 %v3253, %v3606
      %3641 = vst.msk [vmem:[%s210] sm:$0xff] %vm287, %v3609
      %3642 = vst.msk [vmem:[%s210 + $0x8] sm:$0xff] %vm287, %v3610
      %3643 = vst.msk [vmem:[%s210 + $0x10] sm:$0xff] %vm287, %v3611
      %3644 = vst.msk [vmem:[%s210 + $0x18] sm:$0xff] %vm287, %v3612
      %3645 = vst.msk [vmem:[%s210 + $0x20] sm:$0xff] %vm287, %v3613
      %3646 = vst.msk [vmem:[%s210 + $0x28] sm:$0xff] %vm287, %v3614
      %3647 = vst.msk [vmem:[%s210 + $0x30] sm:$0xff] %vm287, %v3615
      %3648 = vst.msk [vmem:[%s210 + $0x38] sm:$0xff] %vm287, %v3616
      %3649 = vst.msk [vmem:[%s210 + $0x40] sm:$0xff] %vm287, %v3617
      %3650 = vst.msk [vmem:[%s210 + $0x48] sm:$0xff] %vm287, %v3618
      %3651 = vst.msk [vmem:[%s210 + $0x50] sm:$0xff] %vm287, %v3619
      %3652 = vst.msk [vmem:[%s210 + $0x58] sm:$0xff] %vm287, %v3620
      %3653 = vst.msk [vmem:[%s210 + $0x60] sm:$0xff] %vm287, %v3621
      %3654 = vst.msk [vmem:[%s210 + $0x68] sm:$0xff] %vm287, %v3622
      %3655 = vst.msk [vmem:[%s210 + $0x70] sm:$0xff] %vm287, %v3623
      %3656 = vst.msk [vmem:[%s210 + $0x78] sm:$0xff] %vm287, %v3624
      %3657 = vst.msk [vmem:[%s210 + $0x80] sm:$0xff] %vm287, %v3625
      %3658 = vst.msk [vmem:[%s210 + $0x88] sm:$0xff] %vm287, %v3626
      %3659 = vst.msk [vmem:[%s210 + $0x90] sm:$0xff] %vm287, %v3627
      %3660 = vst.msk [vmem:[%s210 + $0x98] sm:$0xff] %vm287, %v3628
      %3661 = vst.msk [vmem:[%s210 + $0xa0] sm:$0xff] %vm287, %v3629
      %3662 = vst.msk [vmem:[%s210 + $0xa8] sm:$0xff] %vm287, %v3630
      %3663 = vst.msk [vmem:[%s210 + $0xb0] sm:$0xff] %vm287, %v3631
      %3664 = vst.msk [vmem:[%s210 + $0xb8] sm:$0xff] %vm287, %v3632
      %3665 = vst.msk [vmem:[%s210 + $0xc0] sm:$0xff] %vm287, %v3633
      %3666 = vst.msk [vmem:[%s210 + $0xc8] sm:$0xff] %vm287, %v3634
      %3667 = vst.msk [vmem:[%s210 + $0xd0] sm:$0xff] %vm287, %v3635
      %3668 = vst.msk [vmem:[%s210 + $0xd8] sm:$0xff] %vm287, %v3636
      %3669 = vst.msk [vmem:[%s210 + $0xe0] sm:$0xff] %vm287, %v3637
      %3670 = vst.msk [vmem:[%s210 + $0xe8] sm:$0xff] %vm287, %v3638
      %3671 = vst.msk [vmem:[%s210 + $0xf0] sm:$0xff] %vm287, %v3639
      %3672 = vst.msk [vmem:[%s210 + $0xf8] sm:$0xff] %vm287, %v3640
      %v3673 = vsel %vm287, %v3609, 0.0
      %v3674 = vsel %vm287, %v3610, 0.0
      %v3675 = vadd.f32 %v3673, %v3674
      %v3676 = vsel %vm287, %v3611, 0.0
      %v3677 = vadd.f32 %v3675, %v3676
      %v3678 = vsel %vm287, %v3612, 0.0
      %v3679 = vadd.f32 %v3677, %v3678
      %v3680 = vsel %vm287, %v3613, 0.0
      %v3681 = vadd.f32 %v3679, %v3680
      %v3682 = vsel %vm287, %v3614, 0.0
      %v3683 = vadd.f32 %v3681, %v3682
      %v3684 = vsel %vm287, %v3615, 0.0
      %v3685 = vadd.f32 %v3683, %v3684
      %v3686 = vsel %vm287, %v3616, 0.0
      %v3687 = vadd.f32 %v3685, %v3686
      %v3688 = vsel %vm287, %v3617, 0.0
      %v3689 = vadd.f32 %v3687, %v3688
      %v3690 = vsel %vm287, %v3618, 0.0
      %v3691 = vadd.f32 %v3689, %v3690
      %v3692 = vsel %vm287, %v3619, 0.0
      %v3693 = vadd.f32 %v3691, %v3692
      %v3694 = vsel %vm287, %v3620, 0.0
      %v3695 = vadd.f32 %v3693, %v3694
      %v3696 = vsel %vm287, %v3621, 0.0
      %v3697 = vadd.f32 %v3695, %v3696
      %v3698 = vsel %vm287, %v3622, 0.0
      %v3699 = vadd.f32 %v3697, %v3698
      %v3700 = vsel %vm287, %v3623, 0.0
      %v3701 = vadd.f32 %v3699, %v3700
      %v3702 = vsel %vm287, %v3624, 0.0
      %v3703 = vadd.f32 %v3701, %v3702
      %v3704 = vsel %vm287, %v3625, 0.0
      %v3705 = vadd.f32 %v3703, %v3704
      %v3706 = vsel %vm287, %v3626, 0.0
      %v3707 = vadd.f32 %v3705, %v3706
      %v3708 = vsel %vm287, %v3627, 0.0
      %v3709 = vadd.f32 %v3707, %v3708
      %v3710 = vsel %vm287, %v3628, 0.0
      %v3711 = vadd.f32 %v3709, %v3710
      %v3712 = vsel %vm287, %v3629, 0.0
      %v3713 = vadd.f32 %v3711, %v3712
      %v3714 = vsel %vm287, %v3630, 0.0
      %v3715 = vadd.f32 %v3713, %v3714
      %v3716 = vsel %vm287, %v3631, 0.0
      %v3717 = vadd.f32 %v3715, %v3716
      %v3718 = vsel %vm287, %v3632, 0.0
      %v3719 = vadd.f32 %v3717, %v3718
      %v3720 = vsel %vm287, %v3633, 0.0
      %v3721 = vadd.f32 %v3719, %v3720
      %v3722 = vsel %vm287, %v3634, 0.0
      %v3723 = vadd.f32 %v3721, %v3722
      %v3724 = vsel %vm287, %v3635, 0.0
      %v3725 = vadd.f32 %v3723, %v3724
      %v3726 = vsel %vm287, %v3636, 0.0
      %v3727 = vadd.f32 %v3725, %v3726
      %v3728 = vsel %vm287, %v3637, 0.0
      %v3729 = vadd.f32 %v3727, %v3728
      %v3730 = vsel %vm287, %v3638, 0.0
      %v3731 = vadd.f32 %v3729, %v3730
      %v3732 = vsel %vm287, %v3639, 0.0
      %v3733 = vadd.f32 %v3731, %v3732
      %v3734 = vsel %vm287, %v3640, 0.0
      %v3735 = vadd.f32 %v3733, %v3734
      %v3736 = vrot.slane %v3735, 4
      %v3737 = vadd.f32 %v3735, %v3736
      %v3738 = vrot.slane %v3737, 2
      %v3739 = vadd.f32 %v3737, %v3738
      %v3740 = vrot.slane %v3739, 1
      %v3741 = vadd.f32 %v3739, %v3740
      %v3742 = vmul.f32 %v3609, %v3609
      %v3743 = vmul.f32 %v3610, %v3610
      %v3744 = vmul.f32 %v3611, %v3611
      %v3745 = vmul.f32 %v3612, %v3612
      %v3746 = vmul.f32 %v3613, %v3613
      %v3747 = vmul.f32 %v3614, %v3614
      %v3748 = vmul.f32 %v3615, %v3615
      %v3749 = vmul.f32 %v3616, %v3616
      %v3750 = vmul.f32 %v3617, %v3617
      %v3751 = vmul.f32 %v3618, %v3618
      %v3752 = vmul.f32 %v3619, %v3619
      %v3753 = vmul.f32 %v3620, %v3620
      %v3754 = vmul.f32 %v3621, %v3621
      %v3755 = vmul.f32 %v3622, %v3622
      %v3756 = vmul.f32 %v3623, %v3623
      %v3757 = vmul.f32 %v3624, %v3624
      %v3758 = vmul.f32 %v3625, %v3625
      %v3759 = vmul.f32 %v3626, %v3626
      %v3760 = vmul.f32 %v3627, %v3627
      %v3761 = vmul.f32 %v3628, %v3628
      %v3762 = vmul.f32 %v3629, %v3629
      %v3763 = vmul.f32 %v3630, %v3630
      %v3764 = vmul.f32 %v3631, %v3631
      %v3765 = vmul.f32 %v3632, %v3632
      %v3766 = vmul.f32 %v3633, %v3633
      %v3767 = vmul.f32 %v3634, %v3634
      %v3768 = vmul.f32 %v3635, %v3635
      %v3769 = vmul.f32 %v3636, %v3636
      %v3770 = vmul.f32 %v3637, %v3637
      %v3771 = vmul.f32 %v3638, %v3638
      %v3772 = vmul.f32 %v3639, %v3639
      %v3773 = vmul.f32 %v3640, %v3640
      %v3774 = vsel %vm287, %v3742, 0.0
      %v3775 = vsel %vm287, %v3743, 0.0
      %v3776 = vadd.f32 %v3774, %v3775
      %v3777 = vsel %vm287, %v3744, 0.0
      %v3778 = vadd.f32 %v3776, %v3777
      %v3779 = vsel %vm287, %v3745, 0.0
      %v3780 = vadd.f32 %v3778, %v3779
      %v3781 = vsel %vm287, %v3746, 0.0
      %v3782 = vadd.f32 %v3780, %v3781
      %v3783 = vsel %vm287, %v3747, 0.0
      %v3784 = vadd.f32 %v3782, %v3783
      %v3785 = vsel %vm287, %v3748, 0.0
      %v3786 = vadd.f32 %v3784, %v3785
      %v3787 = vsel %vm287, %v3749, 0.0
      %v3788 = vadd.f32 %v3786, %v3787
      %v3789 = vsel %vm287, %v3750, 0.0
      %v3790 = vadd.f32 %v3788, %v3789
      %v3791 = vsel %vm287, %v3751, 0.0
      %v3792 = vadd.f32 %v3790, %v3791
      %v3793 = vsel %vm287, %v3752, 0.0
      %v3794 = vadd.f32 %v3792, %v3793
      %v3795 = vsel %vm287, %v3753, 0.0
      %v3796 = vadd.f32 %v3794, %v3795
      %v3797 = vsel %vm287, %v3754, 0.0
      %v3798 = vadd.f32 %v3796, %v3797
      %v3799 = vsel %vm287, %v3755, 0.0
      %v3800 = vadd.f32 %v3798, %v3799
      %v3801 = vsel %vm287, %v3756, 0.0
      %v3802 = vadd.f32 %v3800, %v3801
      %v3803 = vsel %vm287, %v3757, 0.0
      %v3804 = vadd.f32 %v3802, %v3803
      %v3805 = vsel %vm287, %v3758, 0.0
      %v3806 = vadd.f32 %v3804, %v3805
      %v3807 = vsel %vm287, %v3759, 0.0
      %v3808 = vadd.f32 %v3806, %v3807
      %v3809 = vsel %vm287, %v3760, 0.0
      %v3810 = vadd.f32 %v3808, %v3809
      %v3811 = vsel %vm287, %v3761, 0.0
      %v3812 = vadd.f32 %v3810, %v3811
      %v3813 = vsel %vm287, %v3762, 0.0
      %v3814 = vadd.f32 %v3812, %v3813
      %v3815 = vsel %vm287, %v3763, 0.0
      %v3816 = vadd.f32 %v3814, %v3815
      %v3817 = vsel %vm287, %v3764, 0.0
      %v3818 = vadd.f32 %v3816, %v3817
      %v3819 = vsel %vm287, %v3765, 0.0
      %v3820 = vadd.f32 %v3818, %v3819
      %v3821 = vsel %vm287, %v3766, 0.0
      %v3822 = vadd.f32 %v3820, %v3821
      %v3823 = vsel %vm287, %v3767, 0.0
      %v3824 = vadd.f32 %v3822, %v3823
      %v3825 = vsel %vm287, %v3768, 0.0
      %v3826 = vadd.f32 %v3824, %v3825
      %v3827 = vsel %vm287, %v3769, 0.0
      %v3828 = vadd.f32 %v3826, %v3827
      %v3829 = vsel %vm287, %v3770, 0.0
      %v3830 = vadd.f32 %v3828, %v3829
      %v3831 = vsel %vm287, %v3771, 0.0
      %v3832 = vadd.f32 %v3830, %v3831
      %v3833 = vsel %vm287, %v3772, 0.0
      %v3834 = vadd.f32 %v3832, %v3833
      %v3835 = vsel %vm287, %v3773, 0.0
      %v3836 = vadd.f32 %v3834, %v3835
      %v3837 = vrot.slane %v3836, 4
      %v3838 = vadd.f32 %v3836, %v3837
      %v3839 = vrot.slane %v3838, 2
      %v3840 = vadd.f32 %v3838, %v3839
      %v3841 = vrot.slane %v3840, 1
      %v3842 = vadd.f32 %v3840, %v3841
      %3843 = vst.msk [vmem:[%s215] sm:$0xff] %vm287, %v3741
      %3844 = vst.msk [vmem:[%s219] sm:$0xff] %vm287, %v3842
      %s3845 = smul.u32 32, %s16
      %p3846 = scmp.lt.s32.totalorder %s3845, 63
      %s3847 = scalar_select %p3846, %s3845, 63
      %s3848 = smul.addr %s3847, 8
      %s3849 = scalar_lea.vmem %s2, %s3848
      %p3850 = scmp.lt.s32.totalorder %s16, 1
      %s3851 = scalar_select %p3850, %s16, 1
      %s3852 = smul.addr %s3851, 8
      %s3853 = scalar_lea.vmem %s3, %s3852
      %p3854 = scmp.lt.s32.totalorder %s16, 1
      %s3855 = scalar_select %p3854, %s16, 1
      %s3856 = smul.addr %s3855, 8
      %s3857 = scalar_lea.vmem %s4, %s3856
      // Predicated region
      $region29: #{conv_block_forward.1} parent=27 // pred_check
        %p3858 = pneg %p81
      $region30: #{conv_block_forward.1} parent=27 // pred_check_branch
        %3860 = sbr.rel (%p3858) target = $region32
      $region31: #{conv_block_forward.1} parent=27 // pred_region
        %s3861 = smul.u32 32, %s16
      $region32: #{conv_block_forward.1} parent=27 // pred_fallthru
        _
      // Predicated region
      $region33: #{conv_block_forward.1} parent=27 // pred_check
        %p3862 = pneg %p107
      $region34: #{conv_block_forward.1} parent=27 // pred_check_branch
        %3864 = sbr.rel (%p3862) target = $region36
      $region35: #{conv_block_forward.1} parent=27 // pred_region
        _
      $region36: #{conv_block_forward.1} parent=27 // pred_fallthru
        _
      // Predicated region
      $region37: #{conv_block_forward.1} parent=27 // pred_check
        %p3865 = pneg %p133
      $region38: #{conv_block_forward.1} parent=27 // pred_check_branch
        %3867 = sbr.rel (%p3865) target = $region40
      $region39: #{conv_block_forward.1} parent=27 // pred_region
        _
      $region40: #{conv_block_forward.1} parent=27 // pred_fallthru
        _
    $region28: #{conv_block_forward.1} parent=5 // pred_fallthru
      _
    %p3868 = scmp.le.s32.totalorder 2, %s11
    // Predicated region
    $region41: #{conv_block_forward.1} parent=5 // pred_check
      %p3869 = pneg %p3868
    $region42: #{conv_block_forward.1} parent=5 // pred_check_branch
      %3871 = sbr.rel (%p3869) target = $region44
    $region43: #{conv_block_forward.1} parent=5 // pred_region
      %s3872 = ssub.s32 %s11, 2
      // Predicated region
      $region45: #{conv_block_forward.1} parent=43 // pred_check
        %p3873 = pneg %p87
      $region46: #{conv_block_forward.1} parent=43 // pred_check_branch
        %3875 = sbr.rel (%p3873) target = $region48
      $region47: #{conv_block_forward.1} parent=43 // pred_region
        %s3876 = smul.u32 32, %s17
        %p3877 = scmp.lt.s32.totalorder %s3876, 63
        %s3878 = scalar_select %p3877, %s3876, 63
        %s3879 = smul.addr %s3878, 8
        %s3880 = scalar_lea.vmem %s2, %s3879
      $region48: #{conv_block_forward.1} parent=43 // pred_fallthru
        _
      // Predicated region
      $region49: #{conv_block_forward.1} parent=43 // pred_check
        %p3881 = pneg %p113
      $region50: #{conv_block_forward.1} parent=43 // pred_check_branch
        %3883 = sbr.rel (%p3881) target = $region52
      $region51: #{conv_block_forward.1} parent=43 // pred_region
        %p3884 = scmp.lt.s32.totalorder %s17, 1
        %s3885 = scalar_select %p3884, %s17, 1
        %s3886 = smul.addr %s3885, 8
        %s3887 = scalar_lea.vmem %s3, %s3886
      $region52: #{conv_block_forward.1} parent=43 // pred_fallthru
        _
      // Predicated region
      $region53: #{conv_block_forward.1} parent=43 // pred_check
        %p3888 = pneg %p139
      $region54: #{conv_block_forward.1} parent=43 // pred_check_branch
        %3890 = sbr.rel (%p3888) target = $region56
      $region55: #{conv_block_forward.1} parent=43 // pred_region
        %p3891 = scmp.lt.s32.totalorder %s17, 1
        %s3892 = scalar_select %p3891, %s17, 1
        %s3893 = smul.addr %s3892, 8
        %s3894 = scalar_lea.vmem %s4, %s3893
      $region56: #{conv_block_forward.1} parent=43 // pred_fallthru
        _
    $region44: #{conv_block_forward.1} parent=5 // pred_fallthru
      _
  $region6: #{conv_block_forward.1} parent=0 // loop_footer
    %s15 = sadd.s32 1, %s11
  $region7: #{conv_block_forward.1} parent=0 // loop_footer_branch
    %10 = sbr.rel target = $region3
  $region8: #{conv_block_forward.1} parent=0 // loop_exit
    _

</llo_original>
